<compile_context>
chip_gen: v7x
topology: tpu7x:2x2x1
jax: 0.10.0
libtpu: 0.0.40
codegen_flags: <defaults>
</compile_context>

<pallas_src>
import math
import functools

import jax
import jax.numpy as jnp
from jax.experimental import pallas as pl
from jax.experimental.pallas import tpu as pltpu


# ---------------------------------------------------------------------------
# In-kernel helpers (f32 element-wise math)
# ---------------------------------------------------------------------------
def _layernorm(x, w, b, eps=1e-6):
    # x: (M, D); w, b: (1, D).  eps=1e-6 matches the reference norm_layer.
    mu = jnp.mean(x, axis=-1, keepdims=True)
    xc = x - mu
    var = jnp.mean(xc * xc, axis=-1, keepdims=True)
    return xc * jax.lax.rsqrt(var + eps) * w + b


def _gelu(x):
    # TODO(synk): PyTorch nn.GELU default is the exact erf GELU; tanh approx is
    # used for guaranteed Mosaic lowering (per-element diff ~1e-3).
    c = math.sqrt(2.0 / math.pi)
    return 0.5 * x * (1.0 + jnp.tanh(c * (x + 0.044715 * x * x * x)))


# ---------------------------------------------------------------------------
# Fully fused ViT editor kernel: patch-embed -> depth x block -> LN -> convT
# Grid = (batch, depth); tokens for one batch live in a persistent VMEM scratch
# across the depth axis (residual stream never round-trips HBM).
# ---------------------------------------------------------------------------
def _fused_vit_kernel(N, Ntot, num_heads,
                      patches_ref, wpe_ref, bpe_ref, pos_patch_ref, filtpad_ref,
                      wcat_ref, wfc2_ref, small_ref,
                      normw_ref, normb_ref, whead_ref, bhead_ref,
                      o_ref, x_ref):
    layer = pl.program_id(1)
    depth = pl.num_programs(1)
    Tp, D = x_ref.shape
    Dh = D // num_heads
    hidden = wfc2_ref.shape[1]
    scale = 1.0 / math.sqrt(Dh)
    bf16 = jnp.bfloat16

    # ------------- step-0 prologue: build the per-batch token slab ------------
    @pl.when(layer == 0)
    def _prologue():
        # patch-embed (Conv2d k=stride=ps) as one GEMM, fused with bias+pos-embed
        p2 = patches_ref[0].astype(bf16)                              # (N, C*ps*ps)
        tok = jnp.dot(p2, wpe_ref[...], preferred_element_type=jnp.float32)
        tok = tok + bpe_ref[...] + pos_patch_ref[0]                   # (N, D)
        # filter tokens (+ their pos-embed) and zero pad rows come pre-packed
        # from the wrapper: ONE aligned full-slab store.
        x_ref[...] = jnp.concatenate([tok, filtpad_ref[0]], axis=0)   # (Tp, D)

    # ---------------- per-layer packed parameter views (static slices) --------
    w_qkv = wcat_ref[0, :, :3 * D]                                    # (D, 3D)  bf16
    w_proj = wcat_ref[0, :, 3 * D:4 * D]                              # (D, D)   bf16
    w_fc1 = wcat_ref[0, :, 4 * D:4 * D + hidden]                      # (D, H)   bf16
    w_fc2 = wfc2_ref[0]                                               # (H, D)   bf16
    ln1w = small_ref[0, 0:1, :D]
    ln1b = small_ref[0, 1:2, :D]
    b_qkv = small_ref[0, 2:3, :3 * D]
    b_proj = small_ref[0, 3:4, :D]
    ln2w = small_ref[0, 4:5, :D]
    ln2b = small_ref[0, 5:6, :D]
    b_fc1 = small_ref[0, 6:7, :hidden]
    b_fc2 = small_ref[0, 7:8, :D]

    x = x_ref[...]                                                    # (Tp, D) f32

    # ------------------------------- attention --------------------------------
    h = _layernorm(x, ln1w, ln1b)
    qkv = jnp.dot(h.astype(bf16), w_qkv,
                  preferred_element_type=jnp.float32) + b_qkv         # (Tp, 3D)
    qkv = qkv.astype(bf16)
    q = jnp.stack([qkv[:, hd * Dh:(hd + 1) * Dh]
                   for hd in range(num_heads)], axis=0)               # (nh, Tp, Dh)
    k = jnp.stack([qkv[:, D + hd * Dh:D + (hd + 1) * Dh]
                   for hd in range(num_heads)], axis=0)
    v = jnp.stack([qkv[:, 2 * D + hd * Dh:2 * D + (hd + 1) * Dh]
                   for hd in range(num_heads)], axis=0)

    # one batched QK^T / mask / softmax / PV over all heads
    s = jnp.einsum('hqd,hkd->hqk', q, k,
                   preferred_element_type=jnp.float32) * scale        # (nh, Tp, Tp)
    if Tp > Ntot:   # mask padding tokens out of the key axis (single broadcast add)
        kidx = jax.lax.broadcasted_iota(jnp.int32, (1, Tp), 1)
        s = s + jnp.where(kidx < Ntot, 0.0, -1e30).astype(jnp.float32)
    s = s - jnp.max(s, axis=-1, keepdims=True)
    p = jnp.exp(s)
    inv = pl.reciprocal(jnp.sum(p, axis=-1, keepdims=True), approx=True)
    o = jnp.einsum('hqk,hkd->hqd', p.astype(bf16), v,
                   preferred_element_type=jnp.float32) * inv          # (nh, Tp, Dh)

    # lane-concat heads -> ONE K=D projection GEMM (replaces 4 K=Dh GEMMs + adds)
    o_cat = jnp.concatenate([o[hd] for hd in range(num_heads)], axis=-1)  # (Tp, D)
    attn = jnp.dot(o_cat.astype(bf16), w_proj,
                   preferred_element_type=jnp.float32) + b_proj
    x = x + attn

    # ---------------------------------- MLP ------------------------------------
    h2 = _layernorm(x, ln2w, ln2b)
    m = jnp.dot(h2.astype(bf16), w_fc1, preferred_element_type=jnp.float32) + b_fc1
    m = _gelu(m)
    m = jnp.dot(m.astype(bf16), w_fc2, preferred_element_type=jnp.float32) + b_fc2
    x = x + m
    x_ref[...] = x

    # --------- last-step epilogue: final LN + ConvTranspose2d head GEMM --------
    @pl.when(layer == depth - 1)
    def _epilogue():
        y = _layernorm(x, normw_ref[...], normb_ref[...])             # (Tp, D)
        yp = y[:N, :]                                                 # patch tokens only
        out = jnp.dot(yp.astype(bf16), whead_ref[...],
                      preferred_element_type=jnp.float32) + bhead_ref[...]
        o_ref[...] = out                                              # (N, 3*ps*ps)


def _const_spec(arr):
    nd = arr.ndim
    return pl.BlockSpec(arr.shape, lambda b, l: (0,) * nd)


def _stacked_spec(arr):
    nd = arr.ndim
    return pl.BlockSpec((1,) + arr.shape[1:], lambda b, l: (l,) + (0,) * (nd - 1))


def vit_editor_forward(params, x, cfg):
    B, C, H, W = x.shape
    ps = cfg['patch_size']
    D = cfg['embed_dim']
    nh = cfg['num_heads']
    nf = cfg['num_filters']
    depth = cfg['depth']
    Hp, Wp = H // ps, W // ps
    N = Hp * Wp
    Ntot = N + nf
    Tp = ((Ntot + 7) // 8) * 8          # pad token count to sublane multiple
    Cout = 3
    assert D % nh == 0

    # im2col for Conv2d(k=stride=ps): NCHW -> (B, N, C*ps*ps), n = h'*Wp + w'
    patches = (x.reshape(B, C, Hp, ps, Wp, ps)
                 .transpose(0, 2, 4, 1, 3, 5)
                 .reshape(B, N, C * ps * ps))

    pos_patch = params['pos_embed'][:, :N, :]
    pos_filt = params['pos_embed'][:, N:, :]
    # filter tokens with their pos-embed folded in, zero-padded to (Tp - N) rows
    # so the in-kernel prologue is a single aligned full-slab store.
    filt_pad = jnp.concatenate(
        [params['filter_tokens'] + pos_filt,
         jnp.zeros((1, Tp - Ntot, D), jnp.float32)], axis=1)          # (1, Tp-N, D)

    inputs = [patches, params['w_pe'], params['b_pe'], pos_patch, filt_pad,
              params['w_cat'], params['w_fc2'], params['small'],
              params['norm_w'], params['norm_b'], params['w_head'], params['b_head']]

    in_specs = ([pl.BlockSpec((1, N, C * ps * ps), lambda b, l: (b, 0, 0))] +
                [_const_spec(a) for a in inputs[1:5]] +
                [_stacked_spec(a) for a in inputs[5:8]] +
                [_const_spec(a) for a in inputs[8:]])

    out = pl.pallas_call(
        functools.partial(_fused_vit_kernel, N, Ntot, nh),
        out_shape=jax.ShapeDtypeStruct((B * N, Cout * ps * ps), jnp.float32),
        grid=(B, depth),
        in_specs=in_specs,
        out_specs=pl.BlockSpec((N, Cout * ps * ps), lambda b, l: (b, 0)),
        scratch_shapes=[pltpu.VMEM((Tp, D), jnp.float32)],
        compiler_params=pltpu.CompilerParams(
            dimension_semantics=("parallel", "arbitrary")),
    )(*inputs)

    # un-patch the ConvTranspose2d (k=stride=ps) GEMM output back to NCHW
    out = (out.reshape(B, Hp, Wp, Cout, ps, ps)
              .transpose(0, 3, 1, 4, 2, 5)
              .reshape(B, Cout, Hp * ps, Wp * ps))
    return out


# ---------------------------------------------------------------------------
# Deterministic synthetic parameters (weights pre-laid-out / packed for kernel)
# ---------------------------------------------------------------------------
def init_params(key, *, img_size, patch_size, in_chans, embed_dim, depth,
                num_heads, mlp_ratio, num_filters):
    N = (img_size // patch_size) ** 2
    D = embed_dim
    hidden = int(embed_dim * mlp_ratio)
    ps = patch_size
    ks = jax.random.split(key, 8)

    def tn(k, shape, std=0.02):
        return (std * jax.random.normal(k, shape)).astype(jnp.float32)

    # --- per-layer bf16 GEMM weights packed into one K=D slab (+ w_fc2) ------
    w_qkv = tn(ks[4], (depth, D, 3 * D))
    w_proj = tn(ks[5], (depth, D, D))
    w_fc1 = tn(ks[6], (depth, D, hidden))
    w_cat = jnp.concatenate([w_qkv, w_proj, w_fc1], axis=-1).astype(jnp.bfloat16)
    w_fc2 = tn(ks[7], (depth, hidden, D)).astype(jnp.bfloat16)

    # --- per-layer small f32 params packed into one (depth, 8, maxw) slab ----
    # rows: 0 ln1_w | 1 ln1_b | 2 b_qkv | 3 b_proj | 4 ln2_w | 5 ln2_b
    #       6 b_fc1 | 7 b_fc2     (PyTorch init: LN weight=1, all biases=0)
    maxw = max(3 * D, hidden, D)

    def row(v):  # (depth, w) -> (depth, 1, maxw), zero-padded on lanes
        return jnp.pad(v, ((0, 0), (0, maxw - v.shape[1])))[:, None, :]

    ones_d = jnp.ones((depth, D), jnp.float32)
    zeros_d = jnp.zeros((depth, D), jnp.float32)
    small = jnp.concatenate([
        row(ones_d), row(zeros_d),
        row(jnp.zeros((depth, 3 * D), jnp.float32)), row(zeros_d),
        row(ones_d), row(zeros_d),
        row(jnp.zeros((depth, hidden), jnp.float32)), row(zeros_d),
    ], axis=1)                                                  # (depth, 8, maxw)

    return dict(
        # patch-embed Conv2d weight in GEMM layout (C*ps*ps, D), bf16 MXU operand
        w_pe=tn(ks[0], (in_chans * ps * ps, D)).astype(jnp.bfloat16),
        b_pe=jnp.zeros((1, D), jnp.float32),
        pos_embed=tn(ks[1], (1, N + num_filters, D)),
        filter_tokens=tn(ks[2], (1, num_filters, D)),
        # ConvTranspose2d weight in GEMM layout (D, 3*ps*ps); bias is the
        # per-channel bias repeated ps*ps times per output channel (zeros here).
        w_head=tn(ks[3], (D, 3 * ps * ps)).astype(jnp.bfloat16),
        b_head=jnp.zeros((1, 3 * ps * ps), jnp.float32),
        norm_w=jnp.ones((1, D), jnp.float32),
        norm_b=jnp.zeros((1, D), jnp.float32),
        w_cat=w_cat, w_fc2=w_fc2, small=small,
    )


if __name__ == "__main__":
    cfg = dict(img_size=32, patch_size=8, in_chans=3, embed_dim=128, depth=2,
               num_heads=4, mlp_ratio=4.0, num_filters=5)
    key = jax.random.PRNGKey(0)
    kp, kx = jax.random.split(key, 2)
    params = init_params(kp, **cfg)

    x = jax.random.normal(kx, (2, cfg['in_chans'], cfg['img_size'], cfg['img_size']),
                          jnp.float32)

    fwd = jax.jit(functools.partial(vit_editor_forward, cfg=cfg))
    out = fwd(params, x)
    jax.block_until_ready(out)
    assert out.shape == (2, 3, cfg['img_size'], cfg['img_size'])
    assert bool(jnp.all(jnp.isfinite(out)))
    print("KERNEL_OK")
</pallas_src>

<mosaic_0001>
module attributes {stable_mosaic.version = 11 : i64} {
  func.func @_fused_vit_kernel(%arg0: i32, %arg1: i32, %arg2: memref<1x16x192xf32, #tpu.memory_space<vmem>>, %arg3: memref<192x128xbf16, #tpu.memory_space<vmem>>, %arg4: memref<1x128xf32, #tpu.memory_space<vmem>>, %arg5: memref<1x16x128xf32, #tpu.memory_space<vmem>>, %arg6: memref<1x8x128xf32, #tpu.memory_space<vmem>>, %arg7: memref<1x128x1024xbf16, #tpu.memory_space<vmem>>, %arg8: memref<1x512x128xbf16, #tpu.memory_space<vmem>>, %arg9: memref<1x8x512xf32, #tpu.memory_space<vmem>>, %arg10: memref<1x128xf32, #tpu.memory_space<vmem>>, %arg11: memref<1x128xf32, #tpu.memory_space<vmem>>, %arg12: memref<128x192xbf16, #tpu.memory_space<vmem>>, %arg13: memref<1x192xf32, #tpu.memory_space<vmem>>, %arg14: memref<16x192xf32, #tpu.memory_space<vmem>>, %arg15: memref<24x128xf32, #tpu.memory_space<vmem>>) attributes {dimension_semantics = [#tpu.dimension_semantics<parallel>, #tpu.dimension_semantics<arbitrary>], iteration_bounds = array<i64: 2, 2>, scalar_prefetch = 0 : i64, scratch_operands = 1 : i64, tpu.core_type = #tpu.core_type<tc>, window_params = [{transform_indices = @transform_0, window_bounds = array<i64: 1, 16, 192>}, {pipeline_mode = #tpu.pipeline_mode<synchronous>, transform_indices = @transform_1, window_bounds = array<i64: 192, 128>}, {pipeline_mode = #tpu.pipeline_mode<synchronous>, transform_indices = @transform_2, window_bounds = array<i64: 1, 128>}, {pipeline_mode = #tpu.pipeline_mode<synchronous>, transform_indices = @transform_3, window_bounds = array<i64: 1, 16, 128>}, {pipeline_mode = #tpu.pipeline_mode<synchronous>, transform_indices = @transform_4, window_bounds = array<i64: 1, 8, 128>}, {transform_indices = @transform_5, window_bounds = array<i64: 1, 128, 1024>}, {transform_indices = @transform_6, window_bounds = array<i64: 1, 512, 128>}, {transform_indices = @transform_7, window_bounds = array<i64: 1, 8, 512>}, {pipeline_mode = #tpu.pipeline_mode<synchronous>, transform_indices = @transform_8, window_bounds = array<i64: 1, 128>}, {pipeline_mode = #tpu.pipeline_mode<synchronous>, transform_indices = @transform_9, window_bounds = array<i64: 1, 128>}, {pipeline_mode = #tpu.pipeline_mode<synchronous>, transform_indices = @transform_10, window_bounds = array<i64: 128, 192>}, {pipeline_mode = #tpu.pipeline_mode<synchronous>, transform_indices = @transform_11, window_bounds = array<i64: 1, 192>}, {transform_indices = @transform_12, window_bounds = array<i64: 16, 192>}]} {
    %c0_i32 = arith.constant 0 : i32
    %0 = arith.cmpi eq, %arg1, %c0_i32 : i32
    %1 = arith.extui %0 : i1 to i32
    %c0_i32_0 = arith.constant 0 : i32
    %2 = arith.cmpi ne, %1, %c0_i32_0 : i32
    scf.if %2 {
      %c0_56 = arith.constant 0 : index
      %c0_57 = arith.constant 0 : index
      %c0_58 = arith.constant 0 : index
      %164 = vector.load %arg2[%c0_56, %c0_57, %c0_58] : memref<1x16x192xf32, #tpu.memory_space<vmem>>, vector<1x16x192xf32>
      %165 = vector.shape_cast %164 : vector<1x16x192xf32> to vector<16x192xf32>
      %166 = arith.truncf %165 : vector<16x192xf32> to vector<16x192xbf16>
      %c0_59 = arith.constant 0 : index
      %c0_60 = arith.constant 0 : index
      %167 = vector.load %arg3[%c0_59, %c0_60] : memref<192x128xbf16, #tpu.memory_space<vmem>>, vector<192x128xbf16>
      %cst_61 = arith.constant dense<0.000000e+00> : vector<16x128xf32>
      %168 = tpu.matmul %166, %167, %cst_61 {dimension_numbers = #tpu.dot_dimension_numbers<[1], [0], [0], [1], [0, 0, 1, 1], [], []>} : vector<16x192xbf16>, vector<192x128xbf16>, vector<16x128xf32> -> vector<16x128xf32>
      %c0_62 = arith.constant 0 : index
      %c0_63 = arith.constant 0 : index
      %169 = vector.load %arg4[%c0_62, %c0_63] : memref<1x128xf32, #tpu.memory_space<vmem>>, vector<1x128xf32>
      %170 = vector.broadcast %169 : vector<1x128xf32> to vector<16x128xf32>
      %171 = arith.addf %168, %170 : vector<16x128xf32>
      %c0_64 = arith.constant 0 : index
      %c0_65 = arith.constant 0 : index
      %c0_66 = arith.constant 0 : index
      %172 = vector.load %arg5[%c0_64, %c0_65, %c0_66] : memref<1x16x128xf32, #tpu.memory_space<vmem>>, vector<1x16x128xf32>
      %173 = vector.shape_cast %172 : vector<1x16x128xf32> to vector<16x128xf32>
      %174 = arith.addf %171, %173 : vector<16x128xf32>
      %c0_67 = arith.constant 0 : index
      %c0_68 = arith.constant 0 : index
      %c0_69 = arith.constant 0 : index
      %175 = vector.load %arg6[%c0_67, %c0_68, %c0_69] : memref<1x8x128xf32, #tpu.memory_space<vmem>>, vector<1x8x128xf32>
      %176 = vector.shape_cast %175 : vector<1x8x128xf32> to vector<8x128xf32>
      %177 = tpu.concatenate %174, %176 in 0 : vector<16x128xf32>, vector<8x128xf32> -> vector<24x128xf32>
      %c0_70 = arith.constant 0 : index
      %c0_71 = arith.constant 0 : index
      %178 = vector.load %arg15[%c0_70, %c0_71] : memref<24x128xf32, #tpu.memory_space<vmem>>, vector<24x128xf32>
      tpu.vector_store %arg15[%c0_70, %c0_71], %177 {strides = array<i32>} : memref<24x128xf32, #tpu.memory_space<vmem>>, vector<24x128xf32>,
    } else {
    }
    %c0 = arith.constant 0 : index
    %c0_1 = arith.constant 0 : index
    %c0_2 = arith.constant 0 : index
    %3 = vector.load %arg7[%c0, %c0_1, %c0_2] : memref<1x128x1024xbf16, #tpu.memory_space<vmem>>, vector<1x128x384xbf16>
    %4 = vector.shape_cast %3 : vector<1x128x384xbf16> to vector<128x384xbf16>
    %c0_3 = arith.constant 0 : index
    %c0_4 = arith.constant 0 : index
    %c384 = arith.constant 384 : index
    %5 = vector.load %arg7[%c0_3, %c0_4, %c384] : memref<1x128x1024xbf16, #tpu.memory_space<vmem>>, vector<1x128x128xbf16>
    %6 = vector.shape_cast %5 : vector<1x128x128xbf16> to vector<128x128xbf16>
    %c0_5 = arith.constant 0 : index
    %c0_6 = arith.constant 0 : index
    %c512 = arith.constant 512 : index
    %7 = vector.load %arg7[%c0_5, %c0_6, %c512] : memref<1x128x1024xbf16, #tpu.memory_space<vmem>>, vector<1x128x512xbf16>
    %8 = vector.shape_cast %7 : vector<1x128x512xbf16> to vector<128x512xbf16>
    %c0_7 = arith.constant 0 : index
    %c0_8 = arith.constant 0 : index
    %c0_9 = arith.constant 0 : index
    %9 = vector.load %arg8[%c0_7, %c0_8, %c0_9] : memref<1x512x128xbf16, #tpu.memory_space<vmem>>, vector<1x512x128xbf16>
    %10 = vector.shape_cast %9 : vector<1x512x128xbf16> to vector<512x128xbf16>
    %c0_10 = arith.constant 0 : index
    %c0_11 = arith.constant 0 : index
    %c0_12 = arith.constant 0 : index
    %11 = vector.load %arg9[%c0_10, %c0_11, %c0_12] : memref<1x8x512xf32, #tpu.memory_space<vmem>>, vector<1x1x128xf32>
    %12 = vector.shape_cast %11 : vector<1x1x128xf32> to vector<1x128xf32>
    %c0_13 = arith.constant 0 : index
    %c1 = arith.constant 1 : index
    %c0_14 = arith.constant 0 : index
    %13 = vector.load %arg9[%c0_13, %c1, %c0_14] : memref<1x8x512xf32, #tpu.memory_space<vmem>>, vector<1x1x128xf32>
    %14 = vector.shape_cast %13 : vector<1x1x128xf32> to vector<1x128xf32>
    %c0_15 = arith.constant 0 : index
    %c2 = arith.constant 2 : index
    %c0_16 = arith.constant 0 : index
    %15 = vector.load %arg9[%c0_15, %c2, %c0_16] : memref<1x8x512xf32, #tpu.memory_space<vmem>>, vector<1x1x384xf32>
    %16 = vector.shape_cast %15 : vector<1x1x384xf32> to vector<1x384xf32>
    %c0_17 = arith.constant 0 : index
    %c3 = arith.constant 3 : index
    %c0_18 = arith.constant 0 : index
    %17 = vector.load %arg9[%c0_17, %c3, %c0_18] : memref<1x8x512xf32, #tpu.memory_space<vmem>>, vector<1x1x128xf32>
    %18 = vector.shape_cast %17 : vector<1x1x128xf32> to vector<1x128xf32>
    %c0_19 = arith.constant 0 : index
    %c4 = arith.constant 4 : index
    %c0_20 = arith.constant 0 : index
    %19 = vector.load %arg9[%c0_19, %c4, %c0_20] : memref<1x8x512xf32, #tpu.memory_space<vmem>>, vector<1x1x128xf32>
    %20 = vector.shape_cast %19 : vector<1x1x128xf32> to vector<1x128xf32>
    %c0_21 = arith.constant 0 : index
    %c5 = arith.constant 5 : index
    %c0_22 = arith.constant 0 : index
    %21 = vector.load %arg9[%c0_21, %c5, %c0_22] : memref<1x8x512xf32, #tpu.memory_space<vmem>>, vector<1x1x128xf32>
    %22 = vector.shape_cast %21 : vector<1x1x128xf32> to vector<1x128xf32>
    %c0_23 = arith.constant 0 : index
    %c6 = arith.constant 6 : index
    %c0_24 = arith.constant 0 : index
    %23 = vector.load %arg9[%c0_23, %c6, %c0_24] : memref<1x8x512xf32, #tpu.memory_space<vmem>>, vector<1x1x512xf32>
    %24 = vector.shape_cast %23 : vector<1x1x512xf32> to vector<1x512xf32>
    %c0_25 = arith.constant 0 : index
    %c7 = arith.constant 7 : index
    %c0_26 = arith.constant 0 : index
    %25 = vector.load %arg9[%c0_25, %c7, %c0_26] : memref<1x8x512xf32, #tpu.memory_space<vmem>>, vector<1x1x128xf32>
    %26 = vector.shape_cast %25 : vector<1x1x128xf32> to vector<1x128xf32>
    %c0_27 = arith.constant 0 : index
    %c0_28 = arith.constant 0 : index
    %27 = vector.load %arg15[%c0_27, %c0_28] : memref<24x128xf32, #tpu.memory_space<vmem>>, vector<24x128xf32>
    %cst = arith.constant dense<0.000000e+00> : vector<24xf32>
    %28 = vector.multi_reduction <add>, %27, %cst [1] : vector<24x128xf32> to vector<24xf32>
    %29 = vector.shape_cast %28 : vector<24xf32> to vector<24x1xf32>
    %cst_29 = arith.constant 1.280000e+02 : f32
    %30 = vector.broadcast %cst_29 : f32 to vector<24x1xf32>
    %31 = arith.divf %29, %30 : vector<24x1xf32>
    %32 = vector.broadcast %31 : vector<24x1xf32> to vector<24x128xf32>
    %33 = arith.subf %27, %32 : vector<24x128xf32>
    %34 = arith.mulf %33, %33 : vector<24x128xf32>
    %cst_30 = arith.constant dense<0.000000e+00> : vector<24xf32>
    %35 = vector.multi_reduction <add>, %34, %cst_30 [1] : vector<24x128xf32> to vector<24xf32>
    %36 = vector.shape_cast %35 : vector<24xf32> to vector<24x1xf32>
    %cst_31 = arith.constant 1.280000e+02 : f32
    %37 = vector.broadcast %cst_31 : f32 to vector<24x1xf32>
    %38 = arith.divf %36, %37 : vector<24x1xf32>
    %cst_32 = arith.constant 9.99999997E-7 : f32
    %39 = vector.broadcast %cst_32 : f32 to vector<24x1xf32>
    %40 = arith.addf %38, %39 : vector<24x1xf32>
    %41 = math.rsqrt %40 : vector<24x1xf32>
    %42 = vector.broadcast %41 : vector<24x1xf32> to vector<24x128xf32>
    %43 = arith.mulf %33, %42 : vector<24x128xf32>
    %44 = vector.broadcast %12 : vector<1x128xf32> to vector<24x128xf32>
    %45 = arith.mulf %43, %44 : vector<24x128xf32>
    %46 = vector.broadcast %14 : vector<1x128xf32> to vector<24x128xf32>
    %47 = arith.addf %45, %46 : vector<24x128xf32>
    %48 = arith.truncf %47 : vector<24x128xf32> to vector<24x128xbf16>
    %cst_33 = arith.constant dense<0.000000e+00> : vector<24x384xf32>
    %49 = tpu.matmul %48, %4, %cst_33 {dimension_numbers = #tpu.dot_dimension_numbers<[1], [0], [0], [1], [0, 0, 1, 1], [], []>} : vector<24x128xbf16>, vector<128x384xbf16>, vector<24x384xf32> -> vector<24x384xf32>
    %50 = vector.broadcast %16 : vector<1x384xf32> to vector<24x384xf32>
    %51 = arith.addf %49, %50 : vector<24x384xf32>
    %52 = arith.truncf %51 : vector<24x384xf32> to vector<24x384xbf16>
    %53 = vector.extract_strided_slice %52 {offsets = [0, 0], sizes = [24, 32], strides = [1, 1]} : vector<24x384xbf16> to vector<24x32xbf16>
    %54 = vector.extract_strided_slice %52 {offsets = [0, 32], sizes = [24, 32], strides = [1, 1]} : vector<24x384xbf16> to vector<24x32xbf16>
    %55 = vector.extract_strided_slice %52 {offsets = [0, 64], sizes = [24, 32], strides = [1, 1]} : vector<24x384xbf16> to vector<24x32xbf16>
    %56 = vector.extract_strided_slice %52 {offsets = [0, 96], sizes = [24, 32], strides = [1, 1]} : vector<24x384xbf16> to vector<24x32xbf16>
    %57 = vector.shape_cast %53 : vector<24x32xbf16> to vector<1x24x32xbf16>
    %58 = vector.shape_cast %54 : vector<24x32xbf16> to vector<1x24x32xbf16>
    %59 = vector.shape_cast %55 : vector<24x32xbf16> to vector<1x24x32xbf16>
    %60 = vector.shape_cast %56 : vector<24x32xbf16> to vector<1x24x32xbf16>
    %61 = tpu.concatenate %57, %58, %59, %60 in 0 : vector<1x24x32xbf16>, vector<1x24x32xbf16>, vector<1x24x32xbf16>, vector<1x24x32xbf16> -> vector<4x24x32xbf16>
    %62 = vector.extract_strided_slice %52 {offsets = [0, 128], sizes = [24, 32], strides = [1, 1]} : vector<24x384xbf16> to vector<24x32xbf16>
    %63 = vector.extract_strided_slice %52 {offsets = [0, 160], sizes = [24, 32], strides = [1, 1]} : vector<24x384xbf16> to vector<24x32xbf16>
    %64 = vector.extract_strided_slice %52 {offsets = [0, 192], sizes = [24, 32], strides = [1, 1]} : vector<24x384xbf16> to vector<24x32xbf16>
    %65 = vector.extract_strided_slice %52 {offsets = [0, 224], sizes = [24, 32], strides = [1, 1]} : vector<24x384xbf16> to vector<24x32xbf16>
    %66 = vector.shape_cast %62 : vector<24x32xbf16> to vector<1x24x32xbf16>
    %67 = vector.shape_cast %63 : vector<24x32xbf16> to vector<1x24x32xbf16>
    %68 = vector.shape_cast %64 : vector<24x32xbf16> to vector<1x24x32xbf16>
    %69 = vector.shape_cast %65 : vector<24x32xbf16> to vector<1x24x32xbf16>
    %70 = tpu.concatenate %66, %67, %68, %69 in 0 : vector<1x24x32xbf16>, vector<1x24x32xbf16>, vector<1x24x32xbf16>, vector<1x24x32xbf16> -> vector<4x24x32xbf16>
    %71 = vector.extract_strided_slice %52 {offsets = [0, 256], sizes = [24, 32], strides = [1, 1]} : vector<24x384xbf16> to vector<24x32xbf16>
    %72 = vector.extract_strided_slice %52 {offsets = [0, 288], sizes = [24, 32], strides = [1, 1]} : vector<24x384xbf16> to vector<24x32xbf16>
    %73 = vector.extract_strided_slice %52 {offsets = [0, 320], sizes = [24, 32], strides = [1, 1]} : vector<24x384xbf16> to vector<24x32xbf16>
    %74 = vector.extract_strided_slice %52 {offsets = [0, 352], sizes = [24, 32], strides = [1, 1]} : vector<24x384xbf16> to vector<24x32xbf16>
    %75 = vector.shape_cast %71 : vector<24x32xbf16> to vector<1x24x32xbf16>
    %76 = vector.shape_cast %72 : vector<24x32xbf16> to vector<1x24x32xbf16>
    %77 = vector.shape_cast %73 : vector<24x32xbf16> to vector<1x24x32xbf16>
    %78 = vector.shape_cast %74 : vector<24x32xbf16> to vector<1x24x32xbf16>
    %79 = tpu.concatenate %75, %76, %77, %78 in 0 : vector<1x24x32xbf16>, vector<1x24x32xbf16>, vector<1x24x32xbf16>, vector<1x24x32xbf16> -> vector<4x24x32xbf16>
    "tpu.trace_start"() <{level = 10 : i32, message = "hqd,hkd->hqk"}> : () -> ()
    %cst_34 = arith.constant dense<0.000000e+00> : vector<4x24x24xf32>
    %80 = tpu.matmul %61, %70, %cst_34 {dimension_numbers = #tpu.dot_dimension_numbers<[2], [2], [1], [1], [0, 0, 0, 1, 1, 1], [0], [0]>} : vector<4x24x32xbf16>, vector<4x24x32xbf16>, vector<4x24x24xf32> -> vector<4x24x24xf32>
    "tpu.trace_stop"() : () -> ()
    %cst_35 = arith.constant 0.176776692 : f32
    %81 = vector.broadcast %cst_35 : f32 to vector<4x24x24xf32>
    %82 = arith.mulf %80, %81 : vector<4x24x24xf32>
    %83 = tpu.iota {dimensions = array<i32: 1>} : vector<1x24xi32>
    %c21_i32 = arith.constant 21 : i32
    %84 = vector.broadcast %c21_i32 : i32 to vector<1x24xi32>
    %85 = arith.cmpi slt, %83, %84 : vector<1x24xi32>
    %cst_36 = arith.constant 0.000000e+00 : f32
    %cst_37 = arith.constant -1.000000e+30 : f32
    %86 = vector.broadcast %cst_36 : f32 to vector<1x24xf32>
    %87 = vector.broadcast %cst_37 : f32 to vector<1x24xf32>
    %88 = arith.select %85, %86, %87 : vector<1x24xi1>, vector<1x24xf32>
    %89 = vector.shape_cast %88 : vector<1x24xf32> to vector<1x1x24xf32>
    %90 = vector.broadcast %89 : vector<1x1x24xf32> to vector<4x24x24xf32>
    %91 = arith.addf %82, %90 : vector<4x24x24xf32>
    %cst_38 = arith.constant dense<0xFF800000> : vector<4x24xf32>
    %92 = vector.multi_reduction <maximumf>, %91, %cst_38 [2] : vector<4x24x24xf32> to vector<4x24xf32>
    %93 = vector.shape_cast %92 : vector<4x24xf32> to vector<4x24x1xf32>
    %94 = vector.broadcast %93 : vector<4x24x1xf32> to vector<4x24x24xf32>
    %95 = arith.subf %91, %94 : vector<4x24x24xf32>
    %96 = math.exp %95 : vector<4x24x24xf32>
    %cst_39 = arith.constant dense<0.000000e+00> : vector<4x24xf32>
    %97 = vector.multi_reduction <add>, %96, %cst_39 [2] : vector<4x24x24xf32> to vector<4x24xf32>
    %98 = vector.shape_cast %97 : vector<4x24xf32> to vector<4x24x1xf32>
    %99 = tpu.reciprocal %98 {approx = true} : vector<4x24x1xf32> -> vector<4x24x1xf32>
    %100 = arith.truncf %96 : vector<4x24x24xf32> to vector<4x24x24xbf16>
    "tpu.trace_start"() <{level = 10 : i32, message = "hqk,hkd->hqd"}> : () -> ()
    %cst_40 = arith.constant dense<0.000000e+00> : vector<4x24x32xf32>
    %101 = tpu.matmul %100, %79, %cst_40 {dimension_numbers = #tpu.dot_dimension_numbers<[2], [1], [1], [2], [0, 0, 0, 1, 1, 2], [0], [0]>} : vector<4x24x24xbf16>, vector<4x24x32xbf16>, vector<4x24x32xf32> -> vector<4x24x32xf32>
    "tpu.trace_stop"() : () -> ()
    %102 = vector.broadcast %99 : vector<4x24x1xf32> to vector<4x24x32xf32>
    %103 = arith.mulf %101, %102 : vector<4x24x32xf32>
    %104 = vector.extract_strided_slice %103 {offsets = [0, 0, 0], sizes = [1, 24, 32], strides = [1, 1, 1]} : vector<4x24x32xf32> to vector<1x24x32xf32>
    %105 = vector.shape_cast %104 : vector<1x24x32xf32> to vector<24x32xf32>
    %106 = vector.extract_strided_slice %103 {offsets = [1, 0, 0], sizes = [1, 24, 32], strides = [1, 1, 1]} : vector<4x24x32xf32> to vector<1x24x32xf32>
    %107 = vector.shape_cast %106 : vector<1x24x32xf32> to vector<24x32xf32>
    %108 = vector.extract_strided_slice %103 {offsets = [2, 0, 0], sizes = [1, 24, 32], strides = [1, 1, 1]} : vector<4x24x32xf32> to vector<1x24x32xf32>
    %109 = vector.shape_cast %108 : vector<1x24x32xf32> to vector<24x32xf32>
    %110 = vector.extract_strided_slice %103 {offsets = [3, 0, 0], sizes = [1, 24, 32], strides = [1, 1, 1]} : vector<4x24x32xf32> to vector<1x24x32xf32>
    %111 = vector.shape_cast %110 : vector<1x24x32xf32> to vector<24x32xf32>
    %112 = tpu.concatenate %105, %107, %109, %111 in 1 : vector<24x32xf32>, vector<24x32xf32>, vector<24x32xf32>, vector<24x32xf32> -> vector<24x128xf32>
    %113 = arith.truncf %112 : vector<24x128xf32> to vector<24x128xbf16>
    %cst_41 = arith.constant dense<0.000000e+00> : vector<24x128xf32>
    %114 = tpu.matmul %113, %6, %cst_41 {dimension_numbers = #tpu.dot_dimension_numbers<[1], [0], [0], [1], [0, 0, 1, 1], [], []>} : vector<24x128xbf16>, vector<128x128xbf16>, vector<24x128xf32> -> vector<24x128xf32>
    %115 = vector.broadcast %18 : vector<1x128xf32> to vector<24x128xf32>
    %116 = arith.addf %114, %115 : vector<24x128xf32>
    %117 = arith.addf %27, %116 : vector<24x128xf32>
    %cst_42 = arith.constant dense<0.000000e+00> : vector<24xf32>
    %118 = vector.multi_reduction <add>, %117, %cst_42 [1] : vector<24x128xf32> to vector<24xf32>
    %119 = vector.shape_cast %118 : vector<24xf32> to vector<24x1xf32>
    %cst_43 = arith.constant 1.280000e+02 : f32
    %120 = vector.broadcast %cst_43 : f32 to vector<24x1xf32>
    %121 = arith.divf %119, %120 : vector<24x1xf32>
    %122 = vector.broadcast %121 : vector<24x1xf32> to vector<24x128xf32>
    %123 = arith.subf %117, %122 : vector<24x128xf32>
    %124 = arith.mulf %123, %123 : vector<24x128xf32>
    %cst_44 = arith.constant dense<0.000000e+00> : vector<24xf32>
    %125 = vector.multi_reduction <add>, %124, %cst_44 [1] : vector<24x128xf32> to vector<24xf32>
    %126 = vector.shape_cast %125 : vector<24xf32> to vector<24x1xf32>
    %cst_45 = arith.constant 1.280000e+02 : f32
    %127 = vector.broadcast %cst_45 : f32 to vector<24x1xf32>
    %128 = arith.divf %126, %127 : vector<24x1xf32>
    %cst_46 = arith.constant 9.99999997E-7 : f32
    %129 = vector.broadcast %cst_46 : f32 to vector<24x1xf32>
    %130 = arith.addf %128, %129 : vector<24x1xf32>
    %131 = math.rsqrt %130 : vector<24x1xf32>
    %132 = vector.broadcast %131 : vector<24x1xf32> to vector<24x128xf32>
    %133 = arith.mulf %123, %132 : vector<24x128xf32>
    %134 = vector.broadcast %20 : vector<1x128xf32> to vector<24x128xf32>
    %135 = arith.mulf %133, %134 : vector<24x128xf32>
    %136 = vector.broadcast %22 : vector<1x128xf32> to vector<24x128xf32>
    %137 = arith.addf %135, %136 : vector<24x128xf32>
    %138 = arith.truncf %137 : vector<24x128xf32> to vector<24x128xbf16>
    %cst_47 = arith.constant dense<0.000000e+00> : vector<24x512xf32>
    %139 = tpu.matmul %138, %8, %cst_47 {dimension_numbers = #tpu.dot_dimension_numbers<[1], [0], [0], [1], [0, 0, 1, 1], [], []>} : vector<24x128xbf16>, vector<128x512xbf16>, vector<24x512xf32> -> vector<24x512xf32>
    %140 = vector.broadcast %24 : vector<1x512xf32> to vector<24x512xf32>
    %141 = arith.addf %139, %140 : vector<24x512xf32>
    %cst_48 = arith.constant 5.000000e-01 : f32
    %142 = vector.broadcast %cst_48 : f32 to vector<24x512xf32>
    %143 = arith.mulf %142, %141 : vector<24x512xf32>
    %cst_49 = arith.constant 4.471500e-02 : f32
    %144 = vector.broadcast %cst_49 : f32 to vector<24x512xf32>
    %145 = arith.mulf %144, %141 : vector<24x512xf32>
    %146 = arith.mulf %145, %141 : vector<24x512xf32>
    %147 = arith.mulf %146, %141 : vector<24x512xf32>
    %148 = arith.addf %141, %147 : vector<24x512xf32>
    %cst_50 = arith.constant 0.797884583 : f32
    %149 = vector.broadcast %cst_50 : f32 to vector<24x512xf32>
    %150 = arith.mulf %149, %148 : vector<24x512xf32>
    %151 = math.tanh %150 : vector<24x512xf32>
    %cst_51 = arith.constant 1.000000e+00 : f32
    %152 = vector.broadcast %cst_51 : f32 to vector<24x512xf32>
    %153 = arith.addf %152, %151 : vector<24x512xf32>
    %154 = arith.mulf %143, %153 : vector<24x512xf32>
    %155 = arith.truncf %154 : vector<24x512xf32> to vector<24x512xbf16>
    %cst_52 = arith.constant dense<0.000000e+00> : vector<24x128xf32>
    %156 = tpu.matmul %155, %10, %cst_52 {dimension_numbers = #tpu.dot_dimension_numbers<[1], [0], [0], [1], [0, 0, 1, 1], [], []>} : vector<24x512xbf16>, vector<512x128xbf16>, vector<24x128xf32> -> vector<24x128xf32>
    %157 = vector.broadcast %26 : vector<1x128xf32> to vector<24x128xf32>
    %158 = arith.addf %156, %157 : vector<24x128xf32>
    %159 = arith.addf %117, %158 : vector<24x128xf32>
    %c0_53 = arith.constant 0 : index
    %c0_54 = arith.constant 0 : index
    %160 = vector.load %arg15[%c0_53, %c0_54] : memref<24x128xf32, #tpu.memory_space<vmem>>, vector<24x128xf32>
    tpu.vector_store %arg15[%c0_53, %c0_54], %159 {strides = array<i32>} : memref<24x128xf32, #tpu.memory_space<vmem>>, vector<24x128xf32>,
    %c1_i32 = arith.constant 1 : i32
    %161 = arith.cmpi eq, %arg1, %c1_i32 : i32
    %162 = arith.extui %161 : i1 to i32
    %c0_i32_55 = arith.constant 0 : i32
    %163 = arith.cmpi ne, %162, %c0_i32_55 : i32
    scf.if %163 {
      %c0_56 = arith.constant 0 : index
      %c0_57 = arith.constant 0 : index
      %164 = vector.load %arg10[%c0_56, %c0_57] : memref<1x128xf32, #tpu.memory_space<vmem>>, vector<1x128xf32>
      %c0_58 = arith.constant 0 : index
      %c0_59 = arith.constant 0 : index
      %165 = vector.load %arg11[%c0_58, %c0_59] : memref<1x128xf32, #tpu.memory_space<vmem>>, vector<1x128xf32>
      %cst_60 = arith.constant dense<0.000000e+00> : vector<24xf32>
      %166 = vector.multi_reduction <add>, %159, %cst_60 [1] : vector<24x128xf32> to vector<24xf32>
      %167 = vector.shape_cast %166 : vector<24xf32> to vector<24x1xf32>
      %cst_61 = arith.constant 1.280000e+02 : f32
      %168 = vector.broadcast %cst_61 : f32 to vector<24x1xf32>
      %169 = arith.divf %167, %168 : vector<24x1xf32>
      %170 = vector.broadcast %169 : vector<24x1xf32> to vector<24x128xf32>
      %171 = arith.subf %159, %170 : vector<24x128xf32>
      %172 = arith.mulf %171, %171 : vector<24x128xf32>
      %cst_62 = arith.constant dense<0.000000e+00> : vector<24xf32>
      %173 = vector.multi_reduction <add>, %172, %cst_62 [1] : vector<24x128xf32> to vector<24xf32>
      %174 = vector.shape_cast %173 : vector<24xf32> to vector<24x1xf32>
      %cst_63 = arith.constant 1.280000e+02 : f32
      %175 = vector.broadcast %cst_63 : f32 to vector<24x1xf32>
      %176 = arith.divf %174, %175 : vector<24x1xf32>
      %cst_64 = arith.constant 9.99999997E-7 : f32
      %177 = vector.broadcast %cst_64 : f32 to vector<24x1xf32>
      %178 = arith.addf %176, %177 : vector<24x1xf32>
      %179 = math.rsqrt %178 : vector<24x1xf32>
      %180 = vector.broadcast %179 : vector<24x1xf32> to vector<24x128xf32>
      %181 = arith.mulf %171, %180 : vector<24x128xf32>
      %182 = vector.broadcast %164 : vector<1x128xf32> to vector<24x128xf32>
      %183 = arith.mulf %181, %182 : vector<24x128xf32>
      %184 = vector.broadcast %165 : vector<1x128xf32> to vector<24x128xf32>
      %185 = arith.addf %183, %184 : vector<24x128xf32>
      %186 = vector.extract_strided_slice %185 {offsets = [0, 0], sizes = [16, 128], strides = [1, 1]} : vector<24x128xf32> to vector<16x128xf32>
      %187 = arith.truncf %186 : vector<16x128xf32> to vector<16x128xbf16>
      %c0_65 = arith.constant 0 : index
      %c0_66 = arith.constant 0 : index
      %188 = vector.load %arg12[%c0_65, %c0_66] : memref<128x192xbf16, #tpu.memory_space<vmem>>, vector<128x192xbf16>
      %cst_67 = arith.constant dense<0.000000e+00> : vector<16x192xf32>
      %189 = tpu.matmul %187, %188, %cst_67 {dimension_numbers = #tpu.dot_dimension_numbers<[1], [0], [0], [1], [0, 0, 1, 1], [], []>} : vector<16x128xbf16>, vector<128x192xbf16>, vector<16x192xf32> -> vector<16x192xf32>
      %c0_68 = arith.constant 0 : index
      %c0_69 = arith.constant 0 : index
      %190 = vector.load %arg13[%c0_68, %c0_69] : memref<1x192xf32, #tpu.memory_space<vmem>>, vector<1x192xf32>
      %191 = vector.broadcast %190 : vector<1x192xf32> to vector<16x192xf32>
      %192 = arith.addf %189, %191 : vector<16x192xf32>
      %c0_70 = arith.constant 0 : index
      %c0_71 = arith.constant 0 : index
      %193 = vector.load %arg14[%c0_70, %c0_71] : memref<16x192xf32, #tpu.memory_space<vmem>>, vector<16x192xf32>
      tpu.vector_store %arg14[%c0_70, %c0_71], %192 {strides = array<i32>} : memref<16x192xf32, #tpu.memory_space<vmem>>, vector<16x192xf32>,
    } else {
    }
    return
  }
  func.func @transform_0(%arg0: i32, %arg1: i32) -> (i32, i32, i32) {
    %c0_i32 = arith.constant 0 : i32
    %c0_i32_0 = arith.constant 0 : i32
    %c0_i32_1 = arith.constant 0 : i32
    return %arg0, %c0_i32, %c0_i32_0 : i32, i32, i32
  }
  func.func @transform_1(%arg0: i32, %arg1: i32) -> (i32, i32) {
    %c0_i32 = arith.constant 0 : i32
    %c0_i32_0 = arith.constant 0 : i32
    %c0_i32_1 = arith.constant 0 : i32
    return %c0_i32, %c0_i32_0 : i32, i32
  }
  func.func @transform_2(%arg0: i32, %arg1: i32) -> (i32, i32) {
    %c0_i32 = arith.constant 0 : i32
    %c0_i32_0 = arith.constant 0 : i32
    %c0_i32_1 = arith.constant 0 : i32
    return %c0_i32, %c0_i32_0 : i32, i32
  }
  func.func @transform_3(%arg0: i32, %arg1: i32) -> (i32, i32, i32) {
    %c0_i32 = arith.constant 0 : i32
    %c0_i32_0 = arith.constant 0 : i32
    %c0_i32_1 = arith.constant 0 : i32
    %c0_i32_2 = arith.constant 0 : i32
    return %c0_i32, %c0_i32_0, %c0_i32_1 : i32, i32, i32
  }
  func.func @transform_4(%arg0: i32, %arg1: i32) -> (i32, i32, i32) {
    %c0_i32 = arith.constant 0 : i32
    %c0_i32_0 = arith.constant 0 : i32
    %c0_i32_1 = arith.constant 0 : i32
    %c0_i32_2 = arith.constant 0 : i32
    return %c0_i32, %c0_i32_0, %c0_i32_1 : i32, i32, i32
  }
  func.func @transform_5(%arg0: i32, %arg1: i32) -> (i32, i32, i32) {
    %c0_i32 = arith.constant 0 : i32
    %c0_i32_0 = arith.constant 0 : i32
    %c0_i32_1 = arith.constant 0 : i32
    return %arg1, %c0_i32, %c0_i32_0 : i32, i32, i32
  }
  func.func @transform_6(%arg0: i32, %arg1: i32) -> (i32, i32, i32) {
    %c0_i32 = arith.constant 0 : i32
    %c0_i32_0 = arith.constant 0 : i32
    %c0_i32_1 = arith.constant 0 : i32
    return %arg1, %c0_i32, %c0_i32_0 : i32, i32, i32
  }
  func.func @transform_7(%arg0: i32, %arg1: i32) -> (i32, i32, i32) {
    %c0_i32 = arith.constant 0 : i32
    %c0_i32_0 = arith.constant 0 : i32
    %c0_i32_1 = arith.constant 0 : i32
    return %arg1, %c0_i32, %c0_i32_0 : i32, i32, i32
  }
  func.func @transform_8(%arg0: i32, %arg1: i32) -> (i32, i32) {
    %c0_i32 = arith.constant 0 : i32
    %c0_i32_0 = arith.constant 0 : i32
    %c0_i32_1 = arith.constant 0 : i32
    return %c0_i32, %c0_i32_0 : i32, i32
  }
  func.func @transform_9(%arg0: i32, %arg1: i32) -> (i32, i32) {
    %c0_i32 = arith.constant 0 : i32
    %c0_i32_0 = arith.constant 0 : i32
    %c0_i32_1 = arith.constant 0 : i32
    return %c0_i32, %c0_i32_0 : i32, i32
  }
  func.func @transform_10(%arg0: i32, %arg1: i32) -> (i32, i32) {
    %c0_i32 = arith.constant 0 : i32
    %c0_i32_0 = arith.constant 0 : i32
    %c0_i32_1 = arith.constant 0 : i32
    return %c0_i32, %c0_i32_0 : i32, i32
  }
  func.func @transform_11(%arg0: i32, %arg1: i32) -> (i32, i32) {
    %c0_i32 = arith.constant 0 : i32
    %c0_i32_0 = arith.constant 0 : i32
    %c0_i32_1 = arith.constant 0 : i32
    return %c0_i32, %c0_i32_0 : i32, i32
  }
  func.func @transform_12(%arg0: i32, %arg1: i32) -> (i32, i32) {
    %c0_i32 = arith.constant 0 : i32
    %c0_i32_0 = arith.constant 0 : i32
    return %arg0, %c0_i32 : i32, i32
  }
}

</mosaic_0001>

<llo_original>
// kernel: vit_editor_forward.1
$region0: #{vit_editor_forward.1}
  #allocation0 [shape = 'u32[]', space=smem, size = 0x4, offset = 0x4, fixed_abs, tag = 'smem constant byte address 0x4 - core index']
  #allocation1 [shape = 'u32[144,128]{1,0:T(1,128)}', space=vmem, size = 0x12000, scoped, tag = 'internal scratch']
  #allocation2 [shape = 'f32[24,128]{1,0:T(8,128)}', space=vmem, size = 0x3000, scoped, tag = 'scratch operand']
  %s0 = inlined_call_operand.vmem [shape: f32[2,16,192], index: 0, kind: input, shape index: {}]
  %s1 = inlined_call_operand.vmem [shape: bf16[192,128], index: 1, kind: input, shape index: {}]
  %s2 = inlined_call_operand.vmem [shape: f32[1,128], index: 2, kind: input, shape index: {}]
  %s3 = inlined_call_operand.vmem [shape: f32[1,16,128], index: 3, kind: input, shape index: {}]
  %s4 = inlined_call_operand.vmem [shape: f32[1,8,128], index: 4, kind: input, shape index: {}]
  %s5 = inlined_call_operand.vmem [shape: bf16[2,128,1024], index: 5, kind: input, shape index: {}]
  %s6 = inlined_call_operand.vmem [shape: bf16[2,512,128], index: 6, kind: input, shape index: {}]
  %s7 = inlined_call_operand.vmem [shape: f32[2,8,512], index: 7, kind: input, shape index: {}]
  %s8 = inlined_call_operand.vmem [shape: f32[1,128], index: 8, kind: input, shape index: {}]
  %s9 = inlined_call_operand.vmem [shape: f32[1,128], index: 9, kind: input, shape index: {}]
  %s10 = inlined_call_operand.vmem [shape: bf16[128,192], index: 10, kind: input, shape index: {}]
  %s11 = inlined_call_operand.vmem [shape: f32[1,192], index: 11, kind: input, shape index: {}]
  %s12 = inlined_call_operand.vmem [shape: f32[32,192], index: 12, kind: output, shape index: {}]
  %s13 = sld [smem:[#allocation0]]
  $region89: #{vit_editor_forward.1} parent=0
    _
  %s15 = ssub.s32 1, %s13
  %s16 = scalar_select 0, %s15, %s13
  loop: start=0, step=1, limit=6
  $region2: #{vit_editor_forward.1} parent=0 // loop_pre_header
    _
  $region3: #{vit_editor_forward.1} parent=0 // loop_header
    %s18 = sphi 0, %s22
    %p19 = scmp.ge.s32.totalorder %s18, 6
    %s25 = sphi 0, %s37
    %s26 = sphi 0, %s33
    %s27 = sphi 0, %s25
    %s28 = sphi 0, %s26
    %s29 = sphi 0, %s27
    %s30 = sphi 0, %s28
    %s40 = sphi 0, %s42
    %s43 = sphi 0, %s40
    %s44 = sphi 0, %s43
    %s60 = sphi 0, %s44
    %s64 = sphi 0, %s64
    %s66 = sphi 0, %s64
    %s67 = sphi 0, %s66
    %s81 = sphi 0, %s67
    %s85 = sphi 0, %s85
    %s87 = sphi 0, %s85
    %s88 = sphi 0, %s87
    %s102 = sphi 0, %s88
    %s106 = sphi 0, %s106
    %s108 = sphi 0, %s106
    %s109 = sphi 0, %s108
    %s123 = sphi 0, %s109
    %s127 = sphi 0, %s127
    %s129 = sphi 0, %s127
    %s130 = sphi 0, %s129
    %s144 = sphi 0, %s130
    %s150 = sphi 0, %s152
    %s153 = sphi 0, %s150
    %s154 = sphi 0, %s153
    %s170 = sphi 0, %s154
    %s176 = sphi 0, %s178
    %s179 = sphi 0, %s176
    %s180 = sphi 0, %s179
    %s196 = sphi 0, %s180
    %s202 = sphi 0, %s204
    %s205 = sphi 0, %s202
    %s206 = sphi 0, %s205
    %s222 = sphi 0, %s206
    %s226 = sphi 0, %s226
    %s228 = sphi 0, %s226
    %s229 = sphi 0, %s228
    %s243 = sphi 0, %s229
    %s247 = sphi 0, %s247
    %s249 = sphi 0, %s247
    %s250 = sphi 0, %s249
    %s264 = sphi 0, %s250
    %s268 = sphi 0, %s268
    %s270 = sphi 0, %s268
    %s271 = sphi 0, %s270
    %s285 = sphi 0, %s271
    %s289 = sphi 0, %s289
    %s291 = sphi 0, %s289
    %s292 = sphi 0, %s291
    %s306 = sphi 0, %s292
    %s312 = sphi 0, %s314
    %s315 = sphi 0, %s312
    %s316 = sphi 0, %s315
    %s332 = sphi 0, %s316
  $region4: #{vit_editor_forward.1} parent=0 // loop_header_branch
    %21 = sbr.rel (%p19) target = $region8
  $region5: #{vit_editor_forward.1} parent=0 // loop_body
    %s23 = ssub.s32 %s18, 1
    %s24 = ssub.s32 %s18, 2
    %s31 = sadd.s32 1, %s26
    %p32 = scmp.ge.s32.totalorder %s31, 2
    %s33 = scalar_select %p32, 0, %s31
    %s34 = sadd.s32 1, %s25
    %s35 = scalar_select %p32, %s34, %s25
    %p36 = scmp.ge.s32.totalorder %s35, 2
    %s37 = scalar_select %p36, 0, %s35
    %s38 = ssub.s32 %s25, %s37
    %p39 = scmp.eq.s32.totalorder %s38, 0
    %s41 = sadd.s32 %s40, 1
    %s42 = scalar_select %p39, %s40, %s41
    %p45 = pneg %p39
    %p46 = scmp.eq.s32.totalorder %s18, 3
    %p47 = por %p45, %p46
    %p48 = scmp.ne.s32.totalorder %s40, %s43
    %p49 = scmp.eq.s32.totalorder %s18, 0
    %p50 = por %p48, %p49
    %p51 = scmp.ne.s32.totalorder %s40, %s43
    %p52 = scmp.eq.s32.totalorder %s23, 3
    %p53 = por %p51, %p52
    %p54 = scmp.ne.s32.totalorder %s43, %s44
    %p55 = scmp.eq.s32.totalorder %s23, 0
    %p56 = por %p54, %p55
    %p57 = scmp.ne.s32.totalorder %s43, %s44
    %p58 = scmp.eq.s32.totalorder %s24, 3
    %p59 = por %p57, %p58
    %p61 = scmp.ne.s32.totalorder %s44, %s60
    %p62 = scmp.eq.s32.totalorder %s24, 0
    %p63 = por %p61, %p62
    %s65 = sadd.s32 %s64, 1
    %p68 = scmp.eq.s32.totalorder %s18, 3
    %p69 = scmp.ne.s32.totalorder %s64, %s66
    %p70 = scmp.eq.s32.totalorder %s18, 0
    %p71 = por %p69, %p70
    %p72 = scmp.ne.s32.totalorder %s64, %s66
    %p73 = scmp.eq.s32.totalorder %s23, 3
    %p74 = por %p72, %p73
    %p75 = scmp.ne.s32.totalorder %s66, %s67
    %p76 = scmp.eq.s32.totalorder %s23, 0
    %p77 = por %p75, %p76
    %p78 = scmp.ne.s32.totalorder %s66, %s67
    %p79 = scmp.eq.s32.totalorder %s24, 3
    %p80 = por %p78, %p79
    %p82 = scmp.ne.s32.totalorder %s67, %s81
    %p83 = scmp.eq.s32.totalorder %s24, 0
    %p84 = por %p82, %p83
    %s86 = sadd.s32 %s85, 1
    %p89 = scmp.eq.s32.totalorder %s18, 3
    %p90 = scmp.ne.s32.totalorder %s85, %s87
    %p91 = scmp.eq.s32.totalorder %s18, 0
    %p92 = por %p90, %p91
    %p93 = scmp.ne.s32.totalorder %s85, %s87
    %p94 = scmp.eq.s32.totalorder %s23, 3
    %p95 = por %p93, %p94
    %p96 = scmp.ne.s32.totalorder %s87, %s88
    %p97 = scmp.eq.s32.totalorder %s23, 0
    %p98 = por %p96, %p97
    %p99 = scmp.ne.s32.totalorder %s87, %s88
    %p100 = scmp.eq.s32.totalorder %s24, 3
    %p101 = por %p99, %p100
    %p103 = scmp.ne.s32.totalorder %s88, %s102
    %p104 = scmp.eq.s32.totalorder %s24, 0
    %p105 = por %p103, %p104
    %s107 = sadd.s32 %s106, 1
    %p110 = scmp.eq.s32.totalorder %s18, 3
    %p111 = scmp.ne.s32.totalorder %s106, %s108
    %p112 = scmp.eq.s32.totalorder %s18, 0
    %p113 = por %p111, %p112
    %p114 = scmp.ne.s32.totalorder %s106, %s108
    %p115 = scmp.eq.s32.totalorder %s23, 3
    %p116 = por %p114, %p115
    %p117 = scmp.ne.s32.totalorder %s108, %s109
    %p118 = scmp.eq.s32.totalorder %s23, 0
    %p119 = por %p117, %p118
    %p120 = scmp.ne.s32.totalorder %s108, %s109
    %p121 = scmp.eq.s32.totalorder %s24, 3
    %p122 = por %p120, %p121
    %p124 = scmp.ne.s32.totalorder %s109, %s123
    %p125 = scmp.eq.s32.totalorder %s24, 0
    %p126 = por %p124, %p125
    %s128 = sadd.s32 %s127, 1
    %p131 = scmp.eq.s32.totalorder %s18, 3
    %p132 = scmp.ne.s32.totalorder %s127, %s129
    %p133 = scmp.eq.s32.totalorder %s18, 0
    %p134 = por %p132, %p133
    %p135 = scmp.ne.s32.totalorder %s127, %s129
    %p136 = scmp.eq.s32.totalorder %s23, 3
    %p137 = por %p135, %p136
    %p138 = scmp.ne.s32.totalorder %s129, %s130
    %p139 = scmp.eq.s32.totalorder %s23, 0
    %p140 = por %p138, %p139
    %p141 = scmp.ne.s32.totalorder %s129, %s130
    %p142 = scmp.eq.s32.totalorder %s24, 3
    %p143 = por %p141, %p142
    %p145 = scmp.ne.s32.totalorder %s130, %s144
    %p146 = scmp.eq.s32.totalorder %s24, 0
    %p147 = por %p145, %p146
    %s148 = ssub.s32 %s26, %s33
    %p149 = scmp.eq.s32.totalorder %s148, 0
    %s151 = sadd.s32 %s150, 1
    %s152 = scalar_select %p149, %s150, %s151
    %p155 = pneg %p149
    %p156 = scmp.eq.s32.totalorder %s18, 3
    %p157 = por %p155, %p156
    %p158 = scmp.ne.s32.totalorder %s150, %s153
    %p159 = scmp.eq.s32.totalorder %s18, 0
    %p160 = por %p158, %p159
    %p161 = scmp.ne.s32.totalorder %s150, %s153
    %p162 = scmp.eq.s32.totalorder %s23, 3
    %p163 = por %p161, %p162
    %p164 = scmp.ne.s32.totalorder %s153, %s154
    %p165 = scmp.eq.s32.totalorder %s23, 0
    %p166 = por %p164, %p165
    %p167 = scmp.ne.s32.totalorder %s153, %s154
    %p168 = scmp.eq.s32.totalorder %s24, 3
    %p169 = por %p167, %p168
    %p171 = scmp.ne.s32.totalorder %s154, %s170
    %p172 = scmp.eq.s32.totalorder %s24, 0
    %p173 = por %p171, %p172
    %s174 = ssub.s32 %s26, %s33
    %p175 = scmp.eq.s32.totalorder %s174, 0
    %s177 = sadd.s32 %s176, 1
    %s178 = scalar_select %p175, %s176, %s177
    %p181 = pneg %p175
    %p182 = scmp.eq.s32.totalorder %s18, 3
    %p183 = por %p181, %p182
    %p184 = scmp.ne.s32.totalorder %s176, %s179
    %p185 = scmp.eq.s32.totalorder %s18, 0
    %p186 = por %p184, %p185
    %p187 = scmp.ne.s32.totalorder %s176, %s179
    %p188 = scmp.eq.s32.totalorder %s23, 3
    %p189 = por %p187, %p188
    %p190 = scmp.ne.s32.totalorder %s179, %s180
    %p191 = scmp.eq.s32.totalorder %s23, 0
    %p192 = por %p190, %p191
    %p193 = scmp.ne.s32.totalorder %s179, %s180
    %p194 = scmp.eq.s32.totalorder %s24, 3
    %p195 = por %p193, %p194
    %p197 = scmp.ne.s32.totalorder %s180, %s196
    %p198 = scmp.eq.s32.totalorder %s24, 0
    %p199 = por %p197, %p198
    %s200 = ssub.s32 %s26, %s33
    %p201 = scmp.eq.s32.totalorder %s200, 0
    %s203 = sadd.s32 %s202, 1
    %s204 = scalar_select %p201, %s202, %s203
    %p207 = pneg %p201
    %p208 = scmp.eq.s32.totalorder %s18, 3
    %p209 = por %p207, %p208
    %p210 = scmp.ne.s32.totalorder %s202, %s205
    %p211 = scmp.eq.s32.totalorder %s18, 0
    %p212 = por %p210, %p211
    %p213 = scmp.ne.s32.totalorder %s202, %s205
    %p214 = scmp.eq.s32.totalorder %s23, 3
    %p215 = por %p213, %p214
    %p216 = scmp.ne.s32.totalorder %s205, %s206
    %p217 = scmp.eq.s32.totalorder %s23, 0
    %p218 = por %p216, %p217
    %p219 = scmp.ne.s32.totalorder %s205, %s206
    %p220 = scmp.eq.s32.totalorder %s24, 3
    %p221 = por %p219, %p220
    %p223 = scmp.ne.s32.totalorder %s206, %s222
    %p224 = scmp.eq.s32.totalorder %s24, 0
    %p225 = por %p223, %p224
    %s227 = sadd.s32 %s226, 1
    %p230 = scmp.eq.s32.totalorder %s18, 3
    %p231 = scmp.ne.s32.totalorder %s226, %s228
    %p232 = scmp.eq.s32.totalorder %s18, 0
    %p233 = por %p231, %p232
    %p234 = scmp.ne.s32.totalorder %s226, %s228
    %p235 = scmp.eq.s32.totalorder %s23, 3
    %p236 = por %p234, %p235
    %p237 = scmp.ne.s32.totalorder %s228, %s229
    %p238 = scmp.eq.s32.totalorder %s23, 0
    %p239 = por %p237, %p238
    %p240 = scmp.ne.s32.totalorder %s228, %s229
    %p241 = scmp.eq.s32.totalorder %s24, 3
    %p242 = por %p240, %p241
    %p244 = scmp.ne.s32.totalorder %s229, %s243
    %p245 = scmp.eq.s32.totalorder %s24, 0
    %p246 = por %p244, %p245
    %s248 = sadd.s32 %s247, 1
    %p251 = scmp.eq.s32.totalorder %s18, 3
    %p252 = scmp.ne.s32.totalorder %s247, %s249
    %p253 = scmp.eq.s32.totalorder %s18, 0
    %p254 = por %p252, %p253
    %p255 = scmp.ne.s32.totalorder %s247, %s249
    %p256 = scmp.eq.s32.totalorder %s23, 3
    %p257 = por %p255, %p256
    %p258 = scmp.ne.s32.totalorder %s249, %s250
    %p259 = scmp.eq.s32.totalorder %s23, 0
    %p260 = por %p258, %p259
    %p261 = scmp.ne.s32.totalorder %s249, %s250
    %p262 = scmp.eq.s32.totalorder %s24, 3
    %p263 = por %p261, %p262
    %p265 = scmp.ne.s32.totalorder %s250, %s264
    %p266 = scmp.eq.s32.totalorder %s24, 0
    %p267 = por %p265, %p266
    %s269 = sadd.s32 %s268, 1
    %p272 = scmp.eq.s32.totalorder %s18, 3
    %p273 = scmp.ne.s32.totalorder %s268, %s270
    %p274 = scmp.eq.s32.totalorder %s18, 0
    %p275 = por %p273, %p274
    %p276 = scmp.ne.s32.totalorder %s268, %s270
    %p277 = scmp.eq.s32.totalorder %s23, 3
    %p278 = por %p276, %p277
    %p279 = scmp.ne.s32.totalorder %s270, %s271
    %p280 = scmp.eq.s32.totalorder %s23, 0
    %p281 = por %p279, %p280
    %p282 = scmp.ne.s32.totalorder %s270, %s271
    %p283 = scmp.eq.s32.totalorder %s24, 3
    %p284 = por %p282, %p283
    %p286 = scmp.ne.s32.totalorder %s271, %s285
    %p287 = scmp.eq.s32.totalorder %s24, 0
    %p288 = por %p286, %p287
    %s290 = sadd.s32 %s289, 1
    %p293 = scmp.eq.s32.totalorder %s18, 3
    %p294 = scmp.ne.s32.totalorder %s289, %s291
    %p295 = scmp.eq.s32.totalorder %s18, 0
    %p296 = por %p294, %p295
    %p297 = scmp.ne.s32.totalorder %s289, %s291
    %p298 = scmp.eq.s32.totalorder %s23, 3
    %p299 = por %p297, %p298
    %p300 = scmp.ne.s32.totalorder %s291, %s292
    %p301 = scmp.eq.s32.totalorder %s23, 0
    %p302 = por %p300, %p301
    %p303 = scmp.ne.s32.totalorder %s291, %s292
    %p304 = scmp.eq.s32.totalorder %s24, 3
    %p305 = por %p303, %p304
    %p307 = scmp.ne.s32.totalorder %s292, %s306
    %p308 = scmp.eq.s32.totalorder %s24, 0
    %p309 = por %p307, %p308
    %s310 = ssub.s32 %s25, %s37
    %p311 = scmp.eq.s32.totalorder %s310, 0
    %s313 = sadd.s32 %s312, 1
    %s314 = scalar_select %p311, %s312, %s313
    %p317 = pneg %p311
    %p318 = scmp.eq.s32.totalorder %s18, 3
    %p319 = por %p317, %p318
    %p320 = scmp.ne.s32.totalorder %s312, %s315
    %p321 = scmp.eq.s32.totalorder %s18, 0
    %p322 = por %p320, %p321
    %p323 = scmp.ne.s32.totalorder %s312, %s315
    %p324 = scmp.eq.s32.totalorder %s23, 3
    %p325 = por %p323, %p324
    %p326 = scmp.ne.s32.totalorder %s315, %s316
    %p327 = scmp.eq.s32.totalorder %s23, 0
    %p328 = por %p326, %p327
    %p329 = scmp.ne.s32.totalorder %s315, %s316
    %p330 = scmp.eq.s32.totalorder %s24, 3
    %p331 = por %p329, %p330
    %p333 = scmp.ne.s32.totalorder %s316, %s332
    %p334 = scmp.eq.s32.totalorder %s24, 0
    %p335 = por %p333, %p334
    %p336 = scmp.le.s32.totalorder 1, %s18
    %p337 = scmp.lt.s32.totalorder %s18, 5
    %p338 = pnand %p336, %p337
    %p339 = pneg %p338
    // Predicated region
    $region9: #{vit_editor_forward.1} parent=5 // pred_check
      _
    $region10: #{vit_editor_forward.1} parent=5 // pred_check_branch
      %341 = sbr.rel (%p338) target = $region12
    $region11: #{vit_editor_forward.1} parent=5 // pred_region
      %s342 = ssub.s32 %s18, 1
      // Predicated region
      $region13: #{vit_editor_forward.1} parent=11 // pred_check
        %p343 = pneg %p77
      $region14: #{vit_editor_forward.1} parent=11 // pred_check_branch
        %345 = sbr.rel (%p343) target = $region16
      $region15: #{vit_editor_forward.1} parent=11 // pred_region
        _
      $region16: #{vit_editor_forward.1} parent=11 // pred_fallthru
        _
      // Predicated region
      $region17: #{vit_editor_forward.1} parent=11 // pred_check
        %p346 = pneg %p98
      $region18: #{vit_editor_forward.1} parent=11 // pred_check_branch
        %348 = sbr.rel (%p346) target = $region20
      $region19: #{vit_editor_forward.1} parent=11 // pred_region
        _
      $region20: #{vit_editor_forward.1} parent=11 // pred_fallthru
        _
      // Predicated region
      $region21: #{vit_editor_forward.1} parent=11 // pred_check
        %p349 = pneg %p119
      $region22: #{vit_editor_forward.1} parent=11 // pred_check_branch
        %351 = sbr.rel (%p349) target = $region24
      $region23: #{vit_editor_forward.1} parent=11 // pred_region
        _
      $region24: #{vit_editor_forward.1} parent=11 // pred_fallthru
        _
      // Predicated region
      $region25: #{vit_editor_forward.1} parent=11 // pred_check
        %p352 = pneg %p140
      $region26: #{vit_editor_forward.1} parent=11 // pred_check_branch
        %354 = sbr.rel (%p352) target = $region28
      $region27: #{vit_editor_forward.1} parent=11 // pred_region
        _
      $region28: #{vit_editor_forward.1} parent=11 // pred_fallthru
        _
      // Predicated region
      $region29: #{vit_editor_forward.1} parent=11 // pred_check
        %p355 = pneg %p239
      $region30: #{vit_editor_forward.1} parent=11 // pred_check_branch
        %357 = sbr.rel (%p355) target = $region32
      $region31: #{vit_editor_forward.1} parent=11 // pred_region
        _
      $region32: #{vit_editor_forward.1} parent=11 // pred_fallthru
        _
      // Predicated region
      $region33: #{vit_editor_forward.1} parent=11 // pred_check
        %p358 = pneg %p260
      $region34: #{vit_editor_forward.1} parent=11 // pred_check_branch
        %360 = sbr.rel (%p358) target = $region36
      $region35: #{vit_editor_forward.1} parent=11 // pred_region
        _
      $region36: #{vit_editor_forward.1} parent=11 // pred_fallthru
        _
      // Predicated region
      $region37: #{vit_editor_forward.1} parent=11 // pred_check
        %p361 = pneg %p281
      $region38: #{vit_editor_forward.1} parent=11 // pred_check_branch
        %363 = sbr.rel (%p361) target = $region40
      $region39: #{vit_editor_forward.1} parent=11 // pred_region
        _
      $region40: #{vit_editor_forward.1} parent=11 // pred_fallthru
        _
      // Predicated region
      $region41: #{vit_editor_forward.1} parent=11 // pred_check
        %p364 = pneg %p302
      $region42: #{vit_editor_forward.1} parent=11 // pred_check_branch
        %366 = sbr.rel (%p364) target = $region44
      $region43: #{vit_editor_forward.1} parent=11 // pred_region
        _
      $region44: #{vit_editor_forward.1} parent=11 // pred_fallthru
        _
    $region12: #{vit_editor_forward.1} parent=5 // pred_fallthru
      _
    %p367 = scmp.lt.s32.totalorder %s18, 4
    // Predicated region
    $region45: #{vit_editor_forward.1} parent=5 // pred_check
      %p368 = pneg %p367
    $region46: #{vit_editor_forward.1} parent=5 // pred_check_branch
      %370 = sbr.rel (%p368) target = $region48
    $region47: #{vit_editor_forward.1} parent=5 // pred_region
      // Predicated region
      $region49: #{vit_editor_forward.1} parent=47 // pred_check
        %p371 = pneg %p50
      $region50: #{vit_editor_forward.1} parent=47 // pred_check_branch
        %373 = sbr.rel (%p371) target = $region52
      $region51: #{vit_editor_forward.1} parent=47 // pred_region
        %p374 = scmp.lt.s32.totalorder %s25, 1
        %s375 = scalar_select %p374, %s25, 1
        %s376 = smul.addr %s375, 4
        %s377 = smul.addr %s376, 8
        %s378 = scalar_lea.vmem %s0, %s377
      $region52: #{vit_editor_forward.1} parent=47 // pred_fallthru
        _
      // Predicated region
      $region53: #{vit_editor_forward.1} parent=47 // pred_check
        %p379 = pneg %p160
      $region54: #{vit_editor_forward.1} parent=47 // pred_check_branch
        %381 = sbr.rel (%p379) target = $region56
      $region55: #{vit_editor_forward.1} parent=47 // pred_region
        %p382 = scmp.lt.s32.totalorder %s26, 1
        %s383 = scalar_select %p382, %s26, 1
        %s384 = smul.addr %s383, 128
        %s385 = smul.addr %s384, 4
        %s386 = scalar_lea.vmem %s5, %s385
      $region56: #{vit_editor_forward.1} parent=47 // pred_fallthru
        _
      // Predicated region
      $region57: #{vit_editor_forward.1} parent=47 // pred_check
        %p387 = pneg %p186
      $region58: #{vit_editor_forward.1} parent=47 // pred_check_branch
        %389 = sbr.rel (%p387) target = $region60
      $region59: #{vit_editor_forward.1} parent=47 // pred_region
        %p390 = scmp.lt.s32.totalorder %s26, 1
        %s391 = scalar_select %p390, %s26, 1
        %s392 = smul.addr %s391, 64
        %s393 = smul.addr %s392, 4
        %s394 = scalar_lea.vmem %s6, %s393
      $region60: #{vit_editor_forward.1} parent=47 // pred_fallthru
        _
      // Predicated region
      $region61: #{vit_editor_forward.1} parent=47 // pred_check
        %p395 = pneg %p212
      $region62: #{vit_editor_forward.1} parent=47 // pred_check_branch
        %397 = sbr.rel (%p395) target = $region64
      $region63: #{vit_editor_forward.1} parent=47 // pred_region
        %p398 = scmp.lt.s32.totalorder %s26, 1
        %s399 = scalar_select %p398, %s26, 1
        %s400 = smul.addr %s399, 4
        %s401 = smul.addr %s400, 8
        %s402 = scalar_lea.vmem %s7, %s401
      $region64: #{vit_editor_forward.1} parent=47 // pred_fallthru
        _
    $region48: #{vit_editor_forward.1} parent=5 // pred_fallthru
      _
    %p403 = scmp.le.s32.totalorder 1, %s18
    %p404 = scmp.lt.s32.totalorder %s18, 5
    %p405 = pnand %p403, %p404
    %p406 = pneg %p405
    // Predicated region
    $region65: #{vit_editor_forward.1} parent=5 // pred_check
      _
    $region66: #{vit_editor_forward.1} parent=5 // pred_check_branch
      %408 = sbr.rel (%p405) target = $region68
    $region67: #{vit_editor_forward.1} parent=5 // pred_region
      %s409 = ssub.s32 %s18, 1
      %p410 = scmp.lt.s32.totalorder %s27, 1
      %s411 = scalar_select %p410, %s27, 1
      %s412 = smul.addr %s411, 4
      %s413 = smul.addr %s412, 8
      %s414 = scalar_lea.vmem %s0, %s413
      %p415 = pneg %p56
      %p416 = pneg %p53
      %p417 = pneg %p77
      %p418 = pneg %p74
      %p419 = pneg %p98
      %p420 = pneg %p95
      %p421 = pneg %p119
      %p422 = pneg %p116
      %p423 = pneg %p140
      %p424 = pneg %p137
      %p425 = scmp.lt.s32.totalorder %s28, 1
      %s426 = scalar_select %p425, %s28, 1
      %s427 = smul.addr %s426, 128
      %s428 = smul.addr %s427, 4
      %s429 = scalar_lea.vmem %s5, %s428
      %p430 = pneg %p166
      %p431 = pneg %p163
      %p432 = scmp.lt.s32.totalorder %s28, 1
      %s433 = scalar_select %p432, %s28, 1
      %s434 = smul.addr %s433, 64
      %s435 = smul.addr %s434, 4
      %s436 = scalar_lea.vmem %s6, %s435
      %p437 = pneg %p192
      %p438 = pneg %p189
      %p439 = scmp.lt.s32.totalorder %s28, 1
      %s440 = scalar_select %p439, %s28, 1
      %s441 = smul.addr %s440, 4
      %s442 = smul.addr %s441, 8
      %s443 = scalar_lea.vmem %s7, %s442
      %p444 = pneg %p218
      %p445 = pneg %p215
      %p446 = pneg %p239
      %p447 = pneg %p236
      %p448 = pneg %p260
      %p449 = pneg %p257
      %p450 = pneg %p281
      %p451 = pneg %p278
      %p452 = pneg %p302
      %p453 = pneg %p299
      %p454 = pneg %p328
      %p455 = pneg %p325
      %s456 = smul.u32 2, %s27
      %p457 = scmp.lt.s32.totalorder %s456, 3
      %s458 = scalar_select %p457, %s456, 3
      %s459 = smul.addr %s458, 2
      %s460 = smul.addr %s459, 8
      %s461 = scalar_lea.vmem %s12, %s460
      %p462 = scmp.lt.s32.totalorder %s27, 1
      %s463 = scalar_select %p462, %s27, 1
      %s464 = smul.addr %s463, 4
      %s465 = smul.addr %s464, 8
      %s466 = scalar_lea.vmem %s0, %s465
      %p467 = scmp.lt.s32.totalorder %s28, 1
      %s468 = scalar_select %p467, %s28, 1
      %s469 = smul.addr %s468, 128
      %s470 = smul.addr %s469, 4
      %s471 = scalar_lea.vmem %s5, %s470
      %p472 = scmp.lt.s32.totalorder %s28, 1
      %s473 = scalar_select %p472, %s28, 1
      %s474 = smul.addr %s473, 64
      %s475 = smul.addr %s474, 4
      %s476 = scalar_lea.vmem %s6, %s475
      %p477 = scmp.lt.s32.totalorder %s28, 1
      %s478 = scalar_select %p477, %s28, 1
      %s479 = smul.addr %s478, 4
      %s480 = smul.addr %s479, 8
      %s481 = scalar_lea.vmem %s7, %s480
      %s482 = smul.u32 2, %s27
      %p483 = scmp.lt.s32.totalorder %s482, 3
      %s484 = scalar_select %p483, %s482, 3
      %s485 = smul.addr %s484, 2
      %s486 = smul.addr %s485, 8
      %s487 = scalar_lea.vmem %s12, %s486
      %s488 = smul.u32 2, %s27
      %p490 = scmp.eq.s32.totalorder %s28, 0
      // Predicated region
      $region69: #{vit_editor_forward.1} parent=67 // pred_check
        %p491 = pneg %p490
      $region70: #{vit_editor_forward.1} parent=67 // pred_check_branch
        %493 = sbr.rel (%p491) target = $region72
      $region71: #{vit_editor_forward.1} parent=67 // pred_region
        %v494 = vld [vmem:[%s466] sm:$0xff]
        %v495 = vld [vmem:[%s466 + $0x8] sm:$0xff]
        %v496 = vld [vmem:[%s466 + $0x10] sm:$0xff]
        %v497 = vld [vmem:[%s466 + $0x18] sm:$0xff]
        %v498 = vpack.c.bf16 %v496, %v494
        %v499 = vpack.c.bf16 %v497, %v495
        %v500 = vld [vmem:[%s1] sm:$0xf]
        %v501 = vld [vmem:[%s1 + $0x4] sm:$0xf]
        %v502 = vld [vmem:[%s1 + $0x8] sm:$0xf]
        %v503 = vld [vmem:[%s1 + $0xc] sm:$0xf]
        %v504 = vld [vmem:[%s1 + $0x10] sm:$0xf]
        %v505 = vld [vmem:[%s1 + $0x14] sm:$0xf]
        %v506 = vld [vmem:[%s1 + $0x18] sm:$0xf]
        %v507 = vld [vmem:[%s1 + $0x1c] sm:$0xf]
        %v508 = vld [vmem:[%s1 + $0x20] sm:$0xf]
        %v509 = vld [vmem:[%s1 + $0x24] sm:$0xf]
        %v510 = vld [vmem:[%s1 + $0x28] sm:$0xf]
        %v511 = vld [vmem:[%s1 + $0x2c] sm:$0xf]
        %v512 = vld [vmem:[%s1 + $0x30] sm:$0xf]
        %v513 = vld [vmem:[%s1 + $0x34] sm:$0xf]
        %v514 = vld [vmem:[%s1 + $0x38] sm:$0xf]
        %v515 = vld [vmem:[%s1 + $0x3c] sm:$0xf]
        %v516 = vld [vmem:[%s1 + $0x40] sm:$0xf]
        %v517 = vld [vmem:[%s1 + $0x44] sm:$0xf]
        %v518 = vld [vmem:[%s1 + $0x48] sm:$0xf]
        %v519 = vld [vmem:[%s1 + $0x4c] sm:$0xf]
        %v520 = vld [vmem:[%s1 + $0x50] sm:$0xf]
        %v521 = vld [vmem:[%s1 + $0x54] sm:$0xf]
        %v522 = vld [vmem:[%s1 + $0x58] sm:$0xf]
        %v523 = vld [vmem:[%s1 + $0x5c] sm:$0xf]
        %v524 = vld [vmem:[%s2] sm:$0x1]
        %v526 = vlaneseq
        %v527 = vshrl.u32 %v526, 7
        %v528 = vsub.s32 0, %v527
        %v529 = vrot.slane %v524, %v528
        %v555 = vunpack.c.l.b16 %v500
        %v556 = vunpack.c.l.b16 %v501
        %v557 = vunpack.c.l.b16 %v502
        %v558 = vunpack.c.l.b16 %v503
        %v559 = vunpack.c.l.b16 %v504
        %v560 = vunpack.c.l.b16 %v505
        %v561 = vunpack.c.l.b16 %v506
        %v562 = vunpack.c.l.b16 %v507
        %v563 = vunpack.c.l.b16 %v508
        %v564 = vunpack.c.l.b16 %v509
        %v565 = vunpack.c.l.b16 %v510
        %v566 = vunpack.c.l.b16 %v511
        %v567 = vunpack.c.l.b16 %v512
        %v568 = vunpack.c.l.b16 %v513
        %v569 = vunpack.c.l.b16 %v514
        %v570 = vunpack.c.l.b16 %v515
        %v571 = vunpack.c.l.b16 %v516
        %v572 = vunpack.c.l.b16 %v517
        %v573 = vunpack.c.l.b16 %v518
        %v574 = vunpack.c.l.b16 %v519
        %v575 = vunpack.c.l.b16 %v520
        %v576 = vunpack.c.l.b16 %v521
        %v577 = vunpack.c.l.b16 %v522
        %v578 = vunpack.c.l.b16 %v523
        %v579 = vpack.c.b16 %v556, %v555
        %v580 = vpack.c.b16 %v558, %v557
        %v581 = vpack.c.b16 %v560, %v559
        %v582 = vpack.c.b16 %v562, %v561
        %v583 = vpack.c.b16 %v564, %v563
        %v584 = vpack.c.b16 %v566, %v565
        %v585 = vpack.c.b16 %v568, %v567
        %v586 = vpack.c.b16 %v570, %v569
        %v587 = vpack.c.b16 %v572, %v571
        %v588 = vpack.c.b16 %v574, %v573
        %v589 = vpack.c.b16 %v576, %v575
        %v590 = vpack.c.b16 %v578, %v577
        %vm603 = vcmask 523264
        %v605 = vsel %vm603, %v499, 0
        %607 = vmatprep.subr.bf16.mxu0 0
        %608 = vmatpush1.bf16.msra.mxu0 %v579
        %609 = vmatprep.subr.bf16.mxu0 0
        %610 = vmatpush1.bf16.msra.mxu0 %v580
        %611 = vmatprep.subr.bf16.mxu0 0
        %612 = vmatpush1.bf16.msra.mxu0 %v581
        %613 = vmatprep.subr.bf16.mxu0 0
        %614 = vmatpush1.bf16.msra.mxu0 %v582
        %615 = vmatprep.subr.bf16.mxu0 0
        %616 = vmatpush1.bf16.msra.mxu0 %v583
        %617 = vmatprep.subr.bf16.mxu0 0
        %618 = vmatpush1.bf16.msra.mxu0 %v584
        %619 = vmatprep.subr.bf16.mxu0 0
        %620 = vmatpush1.bf16.msra.mxu0 %v585
        %621 = vmatprep.subr.bf16.mxu0 0
        %622 = vmatpush1.bf16.msra.mxu0 %v586
        %623 = vmatprep.subr.bf16.mxu0 0
        %624 = vmatpush1.bf16.msra.mxu0 %v587
        %625 = vmatprep.subr.bf16.mxu0 0
        %626 = vmatpush1.bf16.msra.mxu0 %v588
        %627 = vmatprep.subr.bf16.mxu0 0
        %628 = vmatpush1.bf16.msra.mxu0 %v589
        %629 = vmatprep.subr.bf16.mxu0 0
        %630 = vmatpush1.bf16.msra.mxu0 %v590
        %631 = vmatprep.subr.bf16.mxu0 0
        %632 = vmatpush1.bf16.msra.mxu0 0
        %633 = vmatprep.subr.bf16.mxu0 0
        %634 = vmatpush1.bf16.msra.mxu0 0
        %635 = vmatprep.subr.bf16.mxu0 0
        %636 = vmatpush1.bf16.msra.mxu0 0
        %637 = vmatprep.subr.bf16.mxu0 0
        %638 = vmatpush1.bf16.msra.mxu0 0
        %639 = vmatprep.mubr.bf16.mxu0 %v605
        %640 = vmatmul.mubr.bf16.gmra.mrb[0].mxu0 %v498
        %v641 = vpop.f32.mrb[0].mxu0
        %v642 = vadd.f32 %v529, %v641
        %v643 = vpop.f32.mrb[0].mxu0
        %v644 = vpop.f32.mrb[0].mxu0
        %v645 = vadd.f32 %v529, %v644
        %v646 = vpop.f32.mrb[0].mxu0
        %647 = vdwg.mxu0
        %v648 = vld [vmem:[%s3] sm:$0xff]
        %v649 = vld [vmem:[%s3 + $0x8] sm:$0xff]
        %v650 = vadd.f32 %v642, %v648
        %v651 = vadd.f32 %v645, %v649
        %v652 = vld [vmem:[%s4] sm:$0xff]
        %653 = vst [vmem:[#allocation2] sm:$0xff] %v650
        %654 = vst [vmem:[#allocation2 + $0x8] sm:$0xff] %v651
        %655 = vst [vmem:[#allocation2 + $0x10] sm:$0xff] %v652
      $region72: #{vit_editor_forward.1} parent=67 // pred_fallthru
        _
      %v656 = vld [vmem:[%s471] sm:$0xff]
      %v657 = vld [vmem:[%s471 + $0x8] sm:$0xf]
      %v658 = vld [vmem:[%s471 + $0x20] sm:$0xff]
      %v659 = vld [vmem:[%s471 + $0x28] sm:$0xf]
      %v660 = vld [vmem:[%s471 + $0x40] sm:$0xff]
      %v661 = vld [vmem:[%s471 + $0x48] sm:$0xf]
      %v662 = vld [vmem:[%s471 + $0x60] sm:$0xff]
      %v663 = vld [vmem:[%s471 + $0x68] sm:$0xf]
      %v664 = vld [vmem:[%s471 + $0x80] sm:$0xff]
      %v665 = vld [vmem:[%s471 + $0x88] sm:$0xf]
      %v666 = vld [vmem:[%s471 + $0xa0] sm:$0xff]
      %v667 = vld [vmem:[%s471 + $0xa8] sm:$0xf]
      %v668 = vld [vmem:[%s471 + $0xc0] sm:$0xff]
      %v669 = vld [vmem:[%s471 + $0xc8] sm:$0xf]
      %v670 = vld [vmem:[%s471 + $0xe0] sm:$0xff]
      %v671 = vld [vmem:[%s471 + $0xe8] sm:$0xf]
      %v672 = vld [vmem:[%s471 + $0x100] sm:$0xff]
      %v673 = vld [vmem:[%s471 + $0x108] sm:$0xf]
      %v674 = vld [vmem:[%s471 + $0x120] sm:$0xff]
      %v675 = vld [vmem:[%s471 + $0x128] sm:$0xf]
      %v676 = vld [vmem:[%s471 + $0x140] sm:$0xff]
      %v677 = vld [vmem:[%s471 + $0x148] sm:$0xf]
      %v678 = vld [vmem:[%s471 + $0x160] sm:$0xff]
      %v679 = vld [vmem:[%s471 + $0x168] sm:$0xf]
      %v680 = vld [vmem:[%s471 + $0x180] sm:$0xff]
      %v681 = vld [vmem:[%s471 + $0x188] sm:$0xf]
      %v682 = vld [vmem:[%s471 + $0x1a0] sm:$0xff]
      %v683 = vld [vmem:[%s471 + $0x1a8] sm:$0xf]
      %v684 = vld [vmem:[%s471 + $0x1c0] sm:$0xff]
      %v685 = vld [vmem:[%s471 + $0x1c8] sm:$0xf]
      %v686 = vld [vmem:[%s471 + $0x1e0] sm:$0xff]
      %v687 = vld [vmem:[%s471 + $0x1e8] sm:$0xf]
      %v688 = vld [vmem:[%s471 + $0xc] sm:$0xf]
      %v689 = vld [vmem:[%s471 + $0x2c] sm:$0xf]
      %v690 = vld [vmem:[%s471 + $0x4c] sm:$0xf]
      %v691 = vld [vmem:[%s471 + $0x6c] sm:$0xf]
      %v692 = vld [vmem:[%s471 + $0x8c] sm:$0xf]
      %v693 = vld [vmem:[%s471 + $0xac] sm:$0xf]
      %v694 = vld [vmem:[%s471 + $0xcc] sm:$0xf]
      %v695 = vld [vmem:[%s471 + $0xec] sm:$0xf]
      %v696 = vld [vmem:[%s471 + $0x10c] sm:$0xf]
      %v697 = vld [vmem:[%s471 + $0x12c] sm:$0xf]
      %v698 = vld [vmem:[%s471 + $0x14c] sm:$0xf]
      %v699 = vld [vmem:[%s471 + $0x16c] sm:$0xf]
      %v700 = vld [vmem:[%s471 + $0x18c] sm:$0xf]
      %v701 = vld [vmem:[%s471 + $0x1ac] sm:$0xf]
      %v702 = vld [vmem:[%s471 + $0x1cc] sm:$0xf]
      %v703 = vld [vmem:[%s471 + $0x1ec] sm:$0xf]
      %v704 = vld [vmem:[%s471 + $0x10] sm:$0xff]
      %v705 = vld [vmem:[%s471 + $0x18] sm:$0xff]
      %v706 = vld [vmem:[%s471 + $0x30] sm:$0xff]
      %v707 = vld [vmem:[%s471 + $0x38] sm:$0xff]
      %v708 = vld [vmem:[%s471 + $0x50] sm:$0xff]
      %v709 = vld [vmem:[%s471 + $0x58] sm:$0xff]
      %v710 = vld [vmem:[%s471 + $0x70] sm:$0xff]
      %v711 = vld [vmem:[%s471 + $0x78] sm:$0xff]
      %v712 = vld [vmem:[%s471 + $0x90] sm:$0xff]
      %v713 = vld [vmem:[%s471 + $0x98] sm:$0xff]
      %v714 = vld [vmem:[%s471 + $0xb0] sm:$0xff]
      %v715 = vld [vmem:[%s471 + $0xb8] sm:$0xff]
      %v716 = vld [vmem:[%s471 + $0xd0] sm:$0xff]
      %v717 = vld [vmem:[%s471 + $0xd8] sm:$0xff]
      %v718 = vld [vmem:[%s471 + $0xf0] sm:$0xff]
      %v719 = vld [vmem:[%s471 + $0xf8] sm:$0xff]
      %v720 = vld [vmem:[%s471 + $0x110] sm:$0xff]
      %v721 = vld [vmem:[%s471 + $0x118] sm:$0xff]
      %v722 = vld [vmem:[%s471 + $0x130] sm:$0xff]
      %v723 = vld [vmem:[%s471 + $0x138] sm:$0xff]
      %v724 = vld [vmem:[%s471 + $0x150] sm:$0xff]
      %v725 = vld [vmem:[%s471 + $0x158] sm:$0xff]
      %v726 = vld [vmem:[%s471 + $0x170] sm:$0xff]
      %v727 = vld [vmem:[%s471 + $0x178] sm:$0xff]
      %v728 = vld [vmem:[%s471 + $0x190] sm:$0xff]
      %v729 = vld [vmem:[%s471 + $0x198] sm:$0xff]
      %v730 = vld [vmem:[%s471 + $0x1b0] sm:$0xff]
      %v731 = vld [vmem:[%s471 + $0x1b8] sm:$0xff]
      %v732 = vld [vmem:[%s471 + $0x1d0] sm:$0xff]
      %v733 = vld [vmem:[%s471 + $0x1d8] sm:$0xff]
      %v734 = vld [vmem:[%s471 + $0x1f0] sm:$0xff]
      %v735 = vld [vmem:[%s471 + $0x1f8] sm:$0xff]
      %v736 = vld [vmem:[%s476] sm:$0xf]
      %v737 = vld [vmem:[%s476 + $0x4] sm:$0xf]
      %v738 = vld [vmem:[%s476 + $0x8] sm:$0xf]
      %v739 = vld [vmem:[%s476 + $0xc] sm:$0xf]
      %v740 = vld [vmem:[%s476 + $0x10] sm:$0xf]
      %v741 = vld [vmem:[%s476 + $0x14] sm:$0xf]
      %v742 = vld [vmem:[%s476 + $0x18] sm:$0xf]
      %v743 = vld [vmem:[%s476 + $0x1c] sm:$0xf]
      %v744 = vld [vmem:[%s476 + $0x20] sm:$0xf]
      %v745 = vld [vmem:[%s476 + $0x24] sm:$0xf]
      %v746 = vld [vmem:[%s476 + $0x28] sm:$0xf]
      %v747 = vld [vmem:[%s476 + $0x2c] sm:$0xf]
      %v748 = vld [vmem:[%s476 + $0x30] sm:$0xf]
      %v749 = vld [vmem:[%s476 + $0x34] sm:$0xf]
      %v750 = vld [vmem:[%s476 + $0x38] sm:$0xf]
      %v751 = vld [vmem:[%s476 + $0x3c] sm:$0xf]
      %v752 = vld [vmem:[%s476 + $0x40] sm:$0xf]
      %v753 = vld [vmem:[%s476 + $0x44] sm:$0xf]
      %v754 = vld [vmem:[%s476 + $0x48] sm:$0xf]
      %v755 = vld [vmem:[%s476 + $0x4c] sm:$0xf]
      %v756 = vld [vmem:[%s476 + $0x50] sm:$0xf]
      %v757 = vld [vmem:[%s476 + $0x54] sm:$0xf]
      %v758 = vld [vmem:[%s476 + $0x58] sm:$0xf]
      %v759 = vld [vmem:[%s476 + $0x5c] sm:$0xf]
      %v760 = vld [vmem:[%s476 + $0x60] sm:$0xf]
      %v761 = vld [vmem:[%s476 + $0x64] sm:$0xf]
      %v762 = vld [vmem:[%s476 + $0x68] sm:$0xf]
      %v763 = vld [vmem:[%s476 + $0x6c] sm:$0xf]
      %v764 = vld [vmem:[%s476 + $0x70] sm:$0xf]
      %v765 = vld [vmem:[%s476 + $0x74] sm:$0xf]
      %v766 = vld [vmem:[%s476 + $0x78] sm:$0xf]
      %v767 = vld [vmem:[%s476 + $0x7c] sm:$0xf]
      %v768 = vld [vmem:[%s476 + $0x80] sm:$0xf]
      %v769 = vld [vmem:[%s476 + $0x84] sm:$0xf]
      %v770 = vld [vmem:[%s476 + $0x88] sm:$0xf]
      %v771 = vld [vmem:[%s476 + $0x8c] sm:$0xf]
      %v772 = vld [vmem:[%s476 + $0x90] sm:$0xf]
      %v773 = vld [vmem:[%s476 + $0x94] sm:$0xf]
      %v774 = vld [vmem:[%s476 + $0x98] sm:$0xf]
      %v775 = vld [vmem:[%s476 + $0x9c] sm:$0xf]
      %v776 = vld [vmem:[%s476 + $0xa0] sm:$0xf]
      %v777 = vld [vmem:[%s476 + $0xa4] sm:$0xf]
      %v778 = vld [vmem:[%s476 + $0xa8] sm:$0xf]
      %v779 = vld [vmem:[%s476 + $0xac] sm:$0xf]
      %v780 = vld [vmem:[%s476 + $0xb0] sm:$0xf]
      %v781 = vld [vmem:[%s476 + $0xb4] sm:$0xf]
      %v782 = vld [vmem:[%s476 + $0xb8] sm:$0xf]
      %v783 = vld [vmem:[%s476 + $0xbc] sm:$0xf]
      %v784 = vld [vmem:[%s476 + $0xc0] sm:$0xf]
      %v785 = vld [vmem:[%s476 + $0xc4] sm:$0xf]
      %v786 = vld [vmem:[%s476 + $0xc8] sm:$0xf]
      %v787 = vld [vmem:[%s476 + $0xcc] sm:$0xf]
      %v788 = vld [vmem:[%s476 + $0xd0] sm:$0xf]
      %v789 = vld [vmem:[%s476 + $0xd4] sm:$0xf]
      %v790 = vld [vmem:[%s476 + $0xd8] sm:$0xf]
      %v791 = vld [vmem:[%s476 + $0xdc] sm:$0xf]
      %v792 = vld [vmem:[%s476 + $0xe0] sm:$0xf]
      %v793 = vld [vmem:[%s476 + $0xe4] sm:$0xf]
      %v794 = vld [vmem:[%s476 + $0xe8] sm:$0xf]
      %v795 = vld [vmem:[%s476 + $0xec] sm:$0xf]
      %v796 = vld [vmem:[%s476 + $0xf0] sm:$0xf]
      %v797 = vld [vmem:[%s476 + $0xf4] sm:$0xf]
      %v798 = vld [vmem:[%s476 + $0xf8] sm:$0xf]
      %v799 = vld [vmem:[%s476 + $0xfc] sm:$0xf]
      %v800 = vld [vmem:[%s481] ss:$0 sm:$0xff]
      %v801 = vld [vmem:[%s481 + $0x1] ss:$0 sm:$0xff]
      %s802 = scalar_lea.vmem %s481, 2
      %v803 = vld [vmem:[%s802] ss:$8 sm:$0x7]
      %v804 = vld [vmem:[%s481 + $0x3] ss:$0 sm:$0xff]
      %v805 = vld [vmem:[%s481 + $0x4] ss:$0 sm:$0xff]
      %v806 = vld [vmem:[%s481 + $0x5] ss:$0 sm:$0xff]
      %s807 = scalar_lea.vmem %s481, 6
      %v808 = vld [vmem:[%s807] ss:$8 sm:$0xf]
      %v809 = vld [vmem:[%s481 + $0x7] ss:$0 sm:$0xff]
      %v810 = vld [vmem:[#allocation2] sm:$0xff]
      %v811 = vld [vmem:[#allocation2 + $0x8] sm:$0xff]
      %v812 = vld [vmem:[#allocation2 + $0x10] sm:$0xff]
      %813 = vadd.xlane.f32.xlu0 %v810
      %v814 = vpop.xlane.xlu0 %813
      %815 = vadd.xlane.f32.xlu0 %v811
      %v816 = vpop.xlane.xlu0 %815
      %817 = vadd.xlane.f32.xlu0 %v812
      %v818 = vpop.xlane.xlu0 %817
      %v819 = vrcp.pop 128.0
      %v820 = vmul.f32 %v814, %v819
      %v821 = vmul.f32 %v816, %v819
      %v822 = vmul.f32 %v818, %v819
      %v823 = vsub.f32 %v810, %v820
      %v824 = vsub.f32 %v811, %v821
      %v825 = vsub.f32 %v812, %v822
      %v826 = vmul.f32 %v823, %v823
      %v827 = vmul.f32 %v824, %v824
      %v828 = vmul.f32 %v825, %v825
      %829 = vadd.xlane.f32.xlu0 %v826
      %v830 = vpop.xlane.xlu0 %829
      %831 = vadd.xlane.f32.xlu0 %v827
      %v832 = vpop.xlane.xlu0 %831
      %833 = vadd.xlane.f32.xlu0 %v828
      %v834 = vpop.xlane.xlu0 %833
      %v835 = vmul.f32 %v830, %v819
      %v836 = vmul.f32 %v832, %v819
      %v837 = vmul.f32 %v834, %v819
      %v838 = vadd.f32 %v835, 1e-06
      %v839 = vadd.f32 %v836, 1e-06
      %v840 = vadd.f32 %v837, 1e-06
      %v841 = vrsqrt.pop %v838
      %v842 = vrsqrt.pop %v839
      %v843 = vrsqrt.pop %v840
      %v844 = vmul.f32 %v823, %v841
      %v845 = vmul.f32 %v824, %v842
      %v846 = vmul.f32 %v825, %v843
      %v847 = vmul.f32 %v844, %v800
      %v848 = vmul.f32 %v845, %v800
      %v849 = vmul.f32 %v846, %v800
      %v850 = vadd.f32 %v847, %v801
      %v851 = vadd.f32 %v848, %v801
      %v852 = vadd.f32 %v849, %v801
      %v853 = vpack.c.bf16 %v851, %v850
      %v854 = vpack.c.bf16 %v852, %v852
      %v856 = vlaneseq
      %v857 = vshrl.u32 %v856, 7
      %v858 = vsub.s32 0, %v857
      %v859 = vrot.slane %v803, %v858
      %v860 = vlaneseq
      %v861 = vshrl.u32 %v860, 7
      %v862 = vsub.s32 1, %v861
      %v863 = vrot.slane %v803, %v862
      %v864 = vlaneseq
      %v865 = vshrl.u32 %v864, 7
      %v866 = vsub.s32 2, %v865
      %v867 = vrot.slane %v803, %v866
      %v903 = vunpack.c.l.b16 %v656
      %v904 = vunpack.c.h.b16 %v656
      %v905 = vunpack.c.l.b16 %v657
      %v906 = vunpack.c.l.b16 %v658
      %v907 = vunpack.c.h.b16 %v658
      %v908 = vunpack.c.l.b16 %v659
      %v909 = vunpack.c.l.b16 %v660
      %v910 = vunpack.c.h.b16 %v660
      %v911 = vunpack.c.l.b16 %v661
      %v912 = vunpack.c.l.b16 %v662
      %v913 = vunpack.c.h.b16 %v662
      %v914 = vunpack.c.l.b16 %v663
      %v915 = vunpack.c.l.b16 %v664
      %v916 = vunpack.c.h.b16 %v664
      %v917 = vunpack.c.l.b16 %v665
      %v918 = vunpack.c.l.b16 %v666
      %v919 = vunpack.c.h.b16 %v666
      %v920 = vunpack.c.l.b16 %v667
      %v921 = vunpack.c.l.b16 %v668
      %v922 = vunpack.c.h.b16 %v668
      %v923 = vunpack.c.l.b16 %v669
      %v924 = vunpack.c.l.b16 %v670
      %v925 = vunpack.c.h.b16 %v670
      %v926 = vunpack.c.l.b16 %v671
      %v927 = vunpack.c.l.b16 %v672
      %v928 = vunpack.c.h.b16 %v672
      %v929 = vunpack.c.l.b16 %v673
      %v930 = vunpack.c.l.b16 %v674
      %v931 = vunpack.c.h.b16 %v674
      %v932 = vunpack.c.l.b16 %v675
      %v933 = vunpack.c.l.b16 %v676
      %v934 = vunpack.c.h.b16 %v676
      %v935 = vunpack.c.l.b16 %v677
      %v936 = vunpack.c.l.b16 %v678
      %v937 = vunpack.c.h.b16 %v678
      %v938 = vunpack.c.l.b16 %v679
      %v939 = vunpack.c.l.b16 %v680
      %v940 = vunpack.c.h.b16 %v680
      %v941 = vunpack.c.l.b16 %v681
      %v942 = vunpack.c.l.b16 %v682
      %v943 = vunpack.c.h.b16 %v682
      %v944 = vunpack.c.l.b16 %v683
      %v945 = vunpack.c.l.b16 %v684
      %v946 = vunpack.c.h.b16 %v684
      %v947 = vunpack.c.l.b16 %v685
      %v948 = vunpack.c.l.b16 %v686
      %v949 = vunpack.c.h.b16 %v686
      %v950 = vunpack.c.l.b16 %v687
      %v951 = vpack.c.b16 %v906, %v903
      %v952 = vpack.c.b16 %v907, %v904
      %v953 = vpack.c.b16 %v908, %v905
      %v954 = vpack.c.b16 %v912, %v909
      %v955 = vpack.c.b16 %v913, %v910
      %v956 = vpack.c.b16 %v914, %v911
      %v957 = vpack.c.b16 %v918, %v915
      %v958 = vpack.c.b16 %v919, %v916
      %v959 = vpack.c.b16 %v920, %v917
      %v960 = vpack.c.b16 %v924, %v921
      %v961 = vpack.c.b16 %v925, %v922
      %v962 = vpack.c.b16 %v926, %v923
      %v963 = vpack.c.b16 %v930, %v927
      %v964 = vpack.c.b16 %v931, %v928
      %v965 = vpack.c.b16 %v932, %v929
      %v966 = vpack.c.b16 %v936, %v933
      %v967 = vpack.c.b16 %v937, %v934
      %v968 = vpack.c.b16 %v938, %v935
      %v969 = vpack.c.b16 %v942, %v939
      %v970 = vpack.c.b16 %v943, %v940
      %v971 = vpack.c.b16 %v944, %v941
      %v972 = vpack.c.b16 %v948, %v945
      %v973 = vpack.c.b16 %v949, %v946
      %v974 = vpack.c.b16 %v950, %v947
      %999 = vmatprep.subr.bf16.mxu0 %v952
      %1000 = vmatpush1.bf16.msra.mxu0 %v951
      %1001 = vmatprep.subr.bf16.mxu0 %v955
      %1002 = vmatpush1.bf16.msra.mxu0 %v954
      %1003 = vmatprep.subr.bf16.mxu0 %v958
      %1004 = vmatpush1.bf16.msra.mxu0 %v957
      %1005 = vmatprep.subr.bf16.mxu0 %v961
      %1006 = vmatpush1.bf16.msra.mxu0 %v960
      %1007 = vmatprep.subr.bf16.mxu0 %v964
      %1008 = vmatpush1.bf16.msra.mxu0 %v963
      %1009 = vmatprep.subr.bf16.mxu0 %v967
      %1010 = vmatpush1.bf16.msra.mxu0 %v966
      %1011 = vmatprep.subr.bf16.mxu0 %v970
      %1012 = vmatpush1.bf16.msra.mxu0 %v969
      %1013 = vmatprep.subr.bf16.mxu0 %v973
      %1014 = vmatpush1.bf16.msra.mxu0 %v972
      %1015 = vmatprep.subr.bf16.mxu0 0
      %1016 = vmatpush1.bf16.msra.mxu0 0
      %1017 = vmatprep.subr.bf16.mxu0 0
      %1018 = vmatpush1.bf16.msra.mxu0 0
      %1019 = vmatprep.subr.bf16.mxu0 0
      %1020 = vmatpush1.bf16.msra.mxu0 0
      %1021 = vmatprep.subr.bf16.mxu0 0
      %1022 = vmatpush1.bf16.msra.mxu0 0
      %1023 = vmatprep.subr.bf16.mxu0 0
      %1024 = vmatpush1.bf16.msra.mxu0 0
      %1025 = vmatprep.subr.bf16.mxu0 0
      %1026 = vmatpush1.bf16.msra.mxu0 0
      %1027 = vmatprep.subr.bf16.mxu0 0
      %1028 = vmatpush1.bf16.msra.mxu0 0
      %1029 = vmatprep.subr.bf16.mxu0 0
      %1030 = vmatpush1.bf16.msra.mxu0 0
      %1031 = vmatprep.mubr.bf16.mxu0 0
      %1032 = vmatmul.mubr.bf16.gmra.mrb[0].mxu0 %v853
      %v1033 = vpop.f32.mrb[0].mxu0
      %v1034 = vadd.f32 %v859, %v1033
      %v1035 = vpop.f32.mrb[0].mxu0
      %v1036 = vadd.f32 %v863, %v1035
      %v1037 = vpop.f32.mrb[0].mxu0
      %v1038 = vadd.f32 %v859, %v1037
      %v1039 = vpop.f32.mrb[0].mxu0
      %v1040 = vadd.f32 %v863, %v1039
      %1041 = vmatprep.mubr.bf16.mxu0 0
      %1042 = vmatmul.mubr.bf16.gmra.mrb[0].mxu0 %v854
      %v1043 = vpop.f32.mrb[0].mxu0
      %v1044 = vadd.f32 %v859, %v1043
      %v1045 = vpop.f32.mrb[0].mxu0
      %v1046 = vadd.f32 %v863, %v1045
      %v1047 = vpop.f32.mrb[0].mxu0
      %v1048 = vpop.f32.mrb[0].mxu0
      %1049 = vdwg.mxu0
      %1050 = vmatprep.subr.bf16.mxu0 0
      %1051 = vmatpush1.bf16.msra.mxu0 %v953
      %1052 = vmatprep.subr.bf16.mxu0 0
      %1053 = vmatpush1.bf16.msra.mxu0 %v956
      %1054 = vmatprep.subr.bf16.mxu0 0
      %1055 = vmatpush1.bf16.msra.mxu0 %v959
      %1056 = vmatprep.subr.bf16.mxu0 0
      %1057 = vmatpush1.bf16.msra.mxu0 %v962
      %1058 = vmatprep.subr.bf16.mxu0 0
      %1059 = vmatpush1.bf16.msra.mxu0 %v965
      %1060 = vmatprep.subr.bf16.mxu0 0
      %1061 = vmatpush1.bf16.msra.mxu0 %v968
      %1062 = vmatprep.subr.bf16.mxu0 0
      %1063 = vmatpush1.bf16.msra.mxu0 %v971
      %1064 = vmatprep.subr.bf16.mxu0 0
      %1065 = vmatpush1.bf16.msra.mxu0 %v974
      %1066 = vmatprep.subr.bf16.mxu0 0
      %1067 = vmatpush1.bf16.msra.mxu0 0
      %1068 = vmatprep.subr.bf16.mxu0 0
      %1069 = vmatpush1.bf16.msra.mxu0 0
      %1070 = vmatprep.subr.bf16.mxu0 0
      %1071 = vmatpush1.bf16.msra.mxu0 0
      %1072 = vmatprep.subr.bf16.mxu0 0
      %1073 = vmatpush1.bf16.msra.mxu0 0
      %1074 = vmatprep.subr.bf16.mxu0 0
      %1075 = vmatpush1.bf16.msra.mxu0 0
      %1076 = vmatprep.subr.bf16.mxu0 0
      %1077 = vmatpush1.bf16.msra.mxu0 0
      %1078 = vmatprep.subr.bf16.mxu0 0
      %1079 = vmatpush1.bf16.msra.mxu0 0
      %1080 = vmatprep.subr.bf16.mxu0 0
      %1081 = vmatpush1.bf16.msra.mxu0 0
      %1082 = vmatprep.mubr.bf16.mxu0 0
      %1083 = vmatmul.mubr.bf16.gmra.mrb[0].mxu0 %v853
      %v1084 = vpop.f32.mrb[0].mxu0
      %v1085 = vadd.f32 %v867, %v1084
      %v1086 = vpop.f32.mrb[0].mxu0
      %v1087 = vpop.f32.mrb[0].mxu0
      %v1088 = vadd.f32 %v867, %v1087
      %v1089 = vpop.f32.mrb[0].mxu0
      %1090 = vmatprep.mubr.bf16.mxu0 0
      %1091 = vmatmul.mubr.bf16.gmra.mrb[0].mxu0 %v854
      %v1092 = vpop.f32.mrb[0].mxu0
      %v1093 = vadd.f32 %v867, %v1092
      %v1094 = vpop.f32.mrb[0].mxu0
      %v1095 = vpop.f32.mrb[0].mxu0
      %v1096 = vpop.f32.mrb[0].mxu0
      %1097 = vdwg.mxu0
      %v1098 = vpack.c.bf16 %v1038, %v1034
      %v1099 = vpack.c.bf16 %v1040, %v1036
      %v1100 = vpack.c.bf16 %v1088, %v1085
      %v1101 = vpack.c.bf16 %v1044, %v1044
      %v1102 = vpack.c.bf16 %v1046, %v1046
      %v1103 = vpack.c.bf16 %v1093, %v1093
      %1106 = vrot.lane.b32.xlu0 %v1098, 96
      %v1107 = vpop.permute.xlu0 %1106
      %1108 = vrot.lane.b32.xlu0 %v1101, 96
      %v1109 = vpop.permute.xlu0 %1108
      %1110 = vrot.lane.b32.xlu0 %v1098, 64
      %v1111 = vpop.permute.xlu0 %1110
      %1112 = vrot.lane.b32.xlu0 %v1101, 64
      %v1113 = vpop.permute.xlu0 %1112
      %1114 = vrot.lane.b32.xlu0 %v1098, 32
      %v1115 = vpop.permute.xlu0 %1114
      %1116 = vrot.lane.b32.xlu0 %v1101, 32
      %v1117 = vpop.permute.xlu0 %1116
      %1120 = vrot.lane.b32.xlu0 %v1099, 96
      %v1121 = vpop.permute.xlu0 %1120
      %1122 = vrot.lane.b32.xlu0 %v1102, 96
      %v1123 = vpop.permute.xlu0 %1122
      %1124 = vrot.lane.b32.xlu0 %v1099, 64
      %v1125 = vpop.permute.xlu0 %1124
      %1126 = vrot.lane.b32.xlu0 %v1102, 64
      %v1127 = vpop.permute.xlu0 %1126
      %1128 = vrot.lane.b32.xlu0 %v1099, 32
      %v1129 = vpop.permute.xlu0 %1128
      %1130 = vrot.lane.b32.xlu0 %v1102, 32
      %v1131 = vpop.permute.xlu0 %1130
      %1134 = vrot.lane.b32.xlu0 %v1100, 96
      %v1135 = vpop.permute.xlu0 %1134
      %1136 = vrot.lane.b32.xlu0 %v1103, 96
      %v1137 = vpop.permute.xlu0 %1136
      %1139 = vrot.lane.b32.xlu0 %v1100, 64
      %v1140 = vpop.permute.xlu0 %1139
      %1141 = vrot.lane.b32.xlu0 %v1103, 64
      %v1142 = vpop.permute.xlu0 %1141
      %1144 = vrot.lane.b32.xlu0 %v1100, 32
      %v1145 = vpop.permute.xlu0 %1144
      %1146 = vrot.lane.b32.xlu0 %v1103, 32
      %v1147 = vpop.permute.xlu0 %1146
      %vm1149 = vcmask 261120
      %v1151 = vsel %vm1149, %v1098, 0
      %v1154 = vsel %vm1149, %v1101, 0
      %v1157 = vsel %vm1149, %v1099, 0
      %v1160 = vsel %vm1149, %v1102, 0
      %1162 = vmatprep.subr.bf16.mxu0 0
      %1163 = vmatpush1.bf16.xpose.msra.mxu0 %v1157
      %1164 = vmatprep.subr.bf16.mxu0 0
      %1165 = vmatpush1.bf16.xpose.msra.mxu0 %v1160
      %1166 = vmatprep.subr.bf16.mxu0 0
      %1167 = vmatpush1.bf16.xpose.msra.mxu0 0
      %1168 = vmatprep.subr.bf16.mxu0 0
      %1169 = vmatpush1.bf16.xpose.msra.mxu0 0
      %1170 = vmatprep.subr.bf16.mxu0 0
      %1171 = vmatpush1.bf16.xpose.msra.mxu0 0
      %1172 = vmatprep.subr.bf16.mxu0 0
      %1173 = vmatpush1.bf16.xpose.msra.mxu0 0
      %1174 = vmatprep.subr.bf16.mxu0 0
      %1175 = vmatpush1.bf16.xpose.msra.mxu0 0
      %1176 = vmatprep.subr.bf16.mxu0 0
      %1177 = vmatpush1.bf16.xpose.msra.mxu0 0
      %1178 = vmatprep.subr.bf16.mxu0 0
      %1179 = vmatpush1.bf16.xpose.msra.mxu0 0
      %1180 = vmatprep.subr.bf16.mxu0 0
      %1181 = vmatpush1.bf16.xpose.msra.mxu0 0
      %1182 = vmatprep.subr.bf16.mxu0 0
      %1183 = vmatpush1.bf16.xpose.msra.mxu0 0
      %1184 = vmatprep.subr.bf16.mxu0 0
      %1185 = vmatpush1.bf16.xpose.msra.mxu0 0
      %1186 = vmatprep.subr.bf16.mxu0 0
      %1187 = vmatpush1.bf16.xpose.msra.mxu0 0
      %1188 = vmatprep.subr.bf16.mxu0 0
      %1189 = vmatpush1.bf16.xpose.msra.mxu0 0
      %1190 = vmatprep.subr.bf16.mxu0 0
      %1191 = vmatpush1.bf16.xpose.msra.mxu0 0
      %1192 = vmatprep.subr.bf16.mxu0 0
      %1193 = vmatpush1.bf16.xpose.msra.mxu0 0
      %1194 = vmatprep.mubr.bf16.mxu0 0
      %1195 = vmatmul.mubr.bf16.gmra.mrb[0].mxu0 %v1151
      %v1196 = vpop.f32.mrb[0].mxu0
      %v1197 = vadd.f32 0.0, %v1196
      %v1198 = vpop.f32.mrb[0].mxu0
      %v1199 = vpop.f32.mrb[0].mxu0
      %v1200 = vadd.f32 0.0, %v1199
      %v1201 = vpop.f32.mrb[0].mxu0
      %1202 = vmatprep.mubr.bf16.mxu0 0
      %1203 = vmatmul.mubr.bf16.gmra.mrb[0].mxu0 %v1154
      %v1204 = vpop.f32.mrb[0].mxu0
      %v1205 = vadd.f32 0.0, %v1204
      %v1206 = vpop.f32.mrb[0].mxu0
      %v1207 = vpop.f32.mrb[0].mxu0
      %v1208 = vpop.f32.mrb[0].mxu0
      %1209 = vdwg.mxu0
      %v1211 = vsel %vm1149, %v1107, 0
      %v1214 = vsel %vm1149, %v1109, 0
      %v1217 = vsel %vm1149, %v1121, 0
      %v1220 = vsel %vm1149, %v1123, 0
      %1222 = vmatprep.subr.bf16.mxu0 0
      %1223 = vmatpush1.bf16.xpose.msra.mxu0 %v1217
      %1224 = vmatprep.subr.bf16.mxu0 0
      %1225 = vmatpush1.bf16.xpose.msra.mxu0 %v1220
      %1226 = vmatprep.subr.bf16.mxu0 0
      %1227 = vmatpush1.bf16.xpose.msra.mxu0 0
      %1228 = vmatprep.subr.bf16.mxu0 0
      %1229 = vmatpush1.bf16.xpose.msra.mxu0 0
      %1230 = vmatprep.subr.bf16.mxu0 0
      %1231 = vmatpush1.bf16.xpose.msra.mxu0 0
      %1232 = vmatprep.subr.bf16.mxu0 0
      %1233 = vmatpush1.bf16.xpose.msra.mxu0 0
      %1234 = vmatprep.subr.bf16.mxu0 0
      %1235 = vmatpush1.bf16.xpose.msra.mxu0 0
      %1236 = vmatprep.subr.bf16.mxu0 0
      %1237 = vmatpush1.bf16.xpose.msra.mxu0 0
      %1238 = vmatprep.subr.bf16.mxu0 0
      %1239 = vmatpush1.bf16.xpose.msra.mxu0 0
      %1240 = vmatprep.subr.bf16.mxu0 0
      %1241 = vmatpush1.bf16.xpose.msra.mxu0 0
      %1242 = vmatprep.subr.bf16.mxu0 0
      %1243 = vmatpush1.bf16.xpose.msra.mxu0 0
      %1244 = vmatprep.subr.bf16.mxu0 0
      %1245 = vmatpush1.bf16.xpose.msra.mxu0 0
      %1246 = vmatprep.subr.bf16.mxu0 0
      %1247 = vmatpush1.bf16.xpose.msra.mxu0 0
      %1248 = vmatprep.subr.bf16.mxu0 0
      %1249 = vmatpush1.bf16.xpose.msra.mxu0 0
      %1250 = vmatprep.subr.bf16.mxu0 0
      %1251 = vmatpush1.bf16.xpose.msra.mxu0 0
      %1252 = vmatprep.subr.bf16.mxu0 0
      %1253 = vmatpush1.bf16.xpose.msra.mxu0 0
      %1254 = vmatprep.mubr.bf16.mxu0 0
      %1255 = vmatmul.mubr.bf16.gmra.mrb[0].mxu0 %v1211
      %v1256 = vpop.f32.mrb[0].mxu0
      %v1257 = vadd.f32 0.0, %v1256
      %v1258 = vpop.f32.mrb[0].mxu0
      %v1259 = vpop.f32.mrb[0].mxu0
      %v1260 = vadd.f32 0.0, %v1259
      %v1261 = vpop.f32.mrb[0].mxu0
      %1262 = vmatprep.mubr.bf16.mxu0 0
      %1263 = vmatmul.mubr.bf16.gmra.mrb[0].mxu0 %v1214
      %v1264 = vpop.f32.mrb[0].mxu0
      %v1265 = vadd.f32 0.0, %v1264
      %v1266 = vpop.f32.mrb[0].mxu0
      %v1267 = vpop.f32.mrb[0].mxu0
      %v1268 = vpop.f32.mrb[0].mxu0
      %1269 = vdwg.mxu0
      %v1271 = vsel %vm1149, %v1111, 0
      %v1274 = vsel %vm1149, %v1113, 0
      %v1277 = vsel %vm1149, %v1125, 0
      %v1280 = vsel %vm1149, %v1127, 0
      %1282 = vmatprep.subr.bf16.mxu0 0
      %1283 = vmatpush1.bf16.xpose.msra.mxu0 %v1277
      %1284 = vmatprep.subr.bf16.mxu0 0
      %1285 = vmatpush1.bf16.xpose.msra.mxu0 %v1280
      %1286 = vmatprep.subr.bf16.mxu0 0
      %1287 = vmatpush1.bf16.xpose.msra.mxu0 0
      %1288 = vmatprep.subr.bf16.mxu0 0
      %1289 = vmatpush1.bf16.xpose.msra.mxu0 0
      %1290 = vmatprep.subr.bf16.mxu0 0
      %1291 = vmatpush1.bf16.xpose.msra.mxu0 0
      %1292 = vmatprep.subr.bf16.mxu0 0
      %1293 = vmatpush1.bf16.xpose.msra.mxu0 0
      %1294 = vmatprep.subr.bf16.mxu0 0
      %1295 = vmatpush1.bf16.xpose.msra.mxu0 0
      %1296 = vmatprep.subr.bf16.mxu0 0
      %1297 = vmatpush1.bf16.xpose.msra.mxu0 0
      %1298 = vmatprep.subr.bf16.mxu0 0
      %1299 = vmatpush1.bf16.xpose.msra.mxu0 0
      %1300 = vmatprep.subr.bf16.mxu0 0
      %1301 = vmatpush1.bf16.xpose.msra.mxu0 0
      %1302 = vmatprep.subr.bf16.mxu0 0
      %1303 = vmatpush1.bf16.xpose.msra.mxu0 0
      %1304 = vmatprep.subr.bf16.mxu0 0
      %1305 = vmatpush1.bf16.xpose.msra.mxu0 0
      %1306 = vmatprep.subr.bf16.mxu0 0
      %1307 = vmatpush1.bf16.xpose.msra.mxu0 0
      %1308 = vmatprep.subr.bf16.mxu0 0
      %1309 = vmatpush1.bf16.xpose.msra.mxu0 0
      %1310 = vmatprep.subr.bf16.mxu0 0
      %1311 = vmatpush1.bf16.xpose.msra.mxu0 0
      %1312 = vmatprep.subr.bf16.mxu0 0
      %1313 = vmatpush1.bf16.xpose.msra.mxu0 0
      %1314 = vmatprep.mubr.bf16.mxu0 0
      %1315 = vmatmul.mubr.bf16.gmra.mrb[0].mxu0 %v1271
      %v1316 = vpop.f32.mrb[0].mxu0
      %v1317 = vadd.f32 0.0, %v1316
      %v1318 = vpop.f32.mrb[0].mxu0
      %v1319 = vpop.f32.mrb[0].mxu0
      %v1320 = vadd.f32 0.0, %v1319
      %v1321 = vpop.f32.mrb[0].mxu0
      %1322 = vmatprep.mubr.bf16.mxu0 0
      %1323 = vmatmul.mubr.bf16.gmra.mrb[0].mxu0 %v1274
      %v1324 = vpop.f32.mrb[0].mxu0
      %v1325 = vadd.f32 0.0, %v1324
      %v1326 = vpop.f32.mrb[0].mxu0
      %v1327 = vpop.f32.mrb[0].mxu0
      %v1328 = vpop.f32.mrb[0].mxu0
      %1329 = vdwg.mxu0
      %v1331 = vsel %vm1149, %v1115, 0
      %v1334 = vsel %vm1149, %v1117, 0
      %v1337 = vsel %vm1149, %v1129, 0
      %v1340 = vsel %vm1149, %v1131, 0
      %1342 = vmatprep.subr.bf16.mxu0 0
      %1343 = vmatpush1.bf16.xpose.msra.mxu0 %v1337
      %1344 = vmatprep.subr.bf16.mxu0 0
      %1345 = vmatpush1.bf16.xpose.msra.mxu0 %v1340
      %1346 = vmatprep.subr.bf16.mxu0 0
      %1347 = vmatpush1.bf16.xpose.msra.mxu0 0
      %1348 = vmatprep.subr.bf16.mxu0 0
      %1349 = vmatpush1.bf16.xpose.msra.mxu0 0
      %1350 = vmatprep.subr.bf16.mxu0 0
      %1351 = vmatpush1.bf16.xpose.msra.mxu0 0
      %1352 = vmatprep.subr.bf16.mxu0 0
      %1353 = vmatpush1.bf16.xpose.msra.mxu0 0
      %1354 = vmatprep.subr.bf16.mxu0 0
      %1355 = vmatpush1.bf16.xpose.msra.mxu0 0
      %1356 = vmatprep.subr.bf16.mxu0 0
      %1357 = vmatpush1.bf16.xpose.msra.mxu0 0
      %1358 = vmatprep.subr.bf16.mxu0 0
      %1359 = vmatpush1.bf16.xpose.msra.mxu0 0
      %1360 = vmatprep.subr.bf16.mxu0 0
      %1361 = vmatpush1.bf16.xpose.msra.mxu0 0
      %1362 = vmatprep.subr.bf16.mxu0 0
      %1363 = vmatpush1.bf16.xpose.msra.mxu0 0
      %1364 = vmatprep.subr.bf16.mxu0 0
      %1365 = vmatpush1.bf16.xpose.msra.mxu0 0
      %1366 = vmatprep.subr.bf16.mxu0 0
      %1367 = vmatpush1.bf16.xpose.msra.mxu0 0
      %1368 = vmatprep.subr.bf16.mxu0 0
      %1369 = vmatpush1.bf16.xpose.msra.mxu0 0
      %1370 = vmatprep.subr.bf16.mxu0 0
      %1371 = vmatpush1.bf16.xpose.msra.mxu0 0
      %1372 = vmatprep.subr.bf16.mxu0 0
      %1373 = vmatpush1.bf16.xpose.msra.mxu0 0
      %1374 = vmatprep.mubr.bf16.mxu0 0
      %1375 = vmatmul.mubr.bf16.gmra.mrb[0].mxu0 %v1331
      %v1376 = vpop.f32.mrb[0].mxu0
      %v1377 = vadd.f32 0.0, %v1376
      %v1378 = vpop.f32.mrb[0].mxu0
      %v1379 = vpop.f32.mrb[0].mxu0
      %v1380 = vadd.f32 0.0, %v1379
      %v1381 = vpop.f32.mrb[0].mxu0
      %1382 = vmatprep.mubr.bf16.mxu0 0
      %1383 = vmatmul.mubr.bf16.gmra.mrb[0].mxu0 %v1334
      %v1384 = vpop.f32.mrb[0].mxu0
      %v1385 = vadd.f32 0.0, %v1384
      %v1386 = vpop.f32.mrb[0].mxu0
      %v1387 = vpop.f32.mrb[0].mxu0
      %v1388 = vpop.f32.mrb[0].mxu0
      %1389 = vdwg.mxu0
      %v1390 = vmul.f32 %v1197, 0.17677669
      %v1391 = vmul.f32 %v1200, 0.17677669
      %v1392 = vmul.f32 %v1205, 0.17677669
      %v1393 = vmul.f32 %v1257, 0.17677669
      %v1394 = vmul.f32 %v1260, 0.17677669
      %v1395 = vmul.f32 %v1265, 0.17677669
      %v1396 = vmul.f32 %v1317, 0.17677669
      %v1397 = vmul.f32 %v1320, 0.17677669
      %v1398 = vmul.f32 %v1325, 0.17677669
      %v1399 = vmul.f32 %v1377, 0.17677669
      %v1400 = vmul.f32 %v1380, 0.17677669
      %v1401 = vmul.f32 %v1385, 0.17677669
      %v1402 = vlaneseq
      %v1403 = vand.u32 %v1402, 127
      %vm1404 = vcmp.lt.s32.totalorder %v1403, 21
      %v1405 = vsel %vm1404, 0.0, -1e+30
      %v1406 = vadd.f32 %v1390, %v1405
      %v1407 = vadd.f32 %v1391, %v1405
      %v1408 = vadd.f32 %v1392, %v1405
      %v1409 = vadd.f32 %v1393, %v1405
      %v1410 = vadd.f32 %v1394, %v1405
      %v1411 = vadd.f32 %v1395, %v1405
      %v1412 = vadd.f32 %v1396, %v1405
      %v1413 = vadd.f32 %v1397, %v1405
      %v1414 = vadd.f32 %v1398, %v1405
      %v1415 = vadd.f32 %v1399, %v1405
      %v1416 = vadd.f32 %v1400, %v1405
      %v1417 = vadd.f32 %v1401, %v1405
      %vm1418 = vcmask 195584
      %v1419 = vsel %vm1418, %v1406, -inf
      %1420 = vmax.xlane.f32.xlu0 %v1419
      %v1421 = vpop.xlane.xlu0 %1420
      %v1422 = vsel %vm1418, %v1407, -inf
      %1423 = vmax.xlane.f32.xlu0 %v1422
      %v1424 = vpop.xlane.xlu0 %1423
      %v1425 = vsel %vm1418, %v1408, -inf
      %1426 = vmax.xlane.f32.xlu0 %v1425
      %v1427 = vpop.xlane.xlu0 %1426
      %v1428 = vsel %vm1418, %v1409, -inf
      %1429 = vmax.xlane.f32.xlu0 %v1428
      %v1430 = vpop.xlane.xlu0 %1429
      %v1431 = vsel %vm1418, %v1410, -inf
      %1432 = vmax.xlane.f32.xlu0 %v1431
      %v1433 = vpop.xlane.xlu0 %1432
      %v1434 = vsel %vm1418, %v1411, -inf
      %1435 = vmax.xlane.f32.xlu0 %v1434
      %v1436 = vpop.xlane.xlu0 %1435
      %v1437 = vsel %vm1418, %v1412, -inf
      %1438 = vmax.xlane.f32.xlu0 %v1437
      %v1439 = vpop.xlane.xlu0 %1438
      %v1440 = vsel %vm1418, %v1413, -inf
      %1441 = vmax.xlane.f32.xlu0 %v1440
      %v1442 = vpop.xlane.xlu0 %1441
      %v1443 = vsel %vm1418, %v1414, -inf
      %1444 = vmax.xlane.f32.xlu0 %v1443
      %v1445 = vpop.xlane.xlu0 %1444
      %v1446 = vsel %vm1418, %v1415, -inf
      %1447 = vmax.xlane.f32.xlu0 %v1446
      %v1448 = vpop.xlane.xlu0 %1447
      %v1449 = vsel %vm1418, %v1416, -inf
      %1450 = vmax.xlane.f32.xlu0 %v1449
      %v1451 = vpop.xlane.xlu0 %1450
      %v1452 = vsel %vm1418, %v1417, -inf
      %1453 = vmax.xlane.f32.xlu0 %v1452
      %v1454 = vpop.xlane.xlu0 %1453
      %v1455 = vsub.f32 %v1406, %v1421
      %v1456 = vsub.f32 %v1407, %v1424
      %v1457 = vsub.f32 %v1408, %v1427
      %v1458 = vsub.f32 %v1409, %v1430
      %v1459 = vsub.f32 %v1410, %v1433
      %v1460 = vsub.f32 %v1411, %v1436
      %v1461 = vsub.f32 %v1412, %v1439
      %v1462 = vsub.f32 %v1413, %v1442
      %v1463 = vsub.f32 %v1414, %v1445
      %v1464 = vsub.f32 %v1415, %v1448
      %v1465 = vsub.f32 %v1416, %v1451
      %v1466 = vsub.f32 %v1417, %v1454
      %v1467 = vmul.f32 %v1455, 1.442695
      %v1468 = vpow.pop %v1467
      %v1469 = vmul.f32 %v1456, 1.442695
      %v1470 = vpow.pop %v1469
      %v1471 = vmul.f32 %v1457, 1.442695
      %v1472 = vpow.pop %v1471
      %v1473 = vmul.f32 %v1458, 1.442695
      %v1474 = vpow.pop %v1473
      %v1475 = vmul.f32 %v1459, 1.442695
      %v1476 = vpow.pop %v1475
      %v1477 = vmul.f32 %v1460, 1.442695
      %v1478 = vpow.pop %v1477
      %v1479 = vmul.f32 %v1461, 1.442695
      %v1480 = vpow.pop %v1479
      %v1481 = vmul.f32 %v1462, 1.442695
      %v1482 = vpow.pop %v1481
      %v1483 = vmul.f32 %v1463, 1.442695
      %v1484 = vpow.pop %v1483
      %v1485 = vmul.f32 %v1464, 1.442695
      %v1486 = vpow.pop %v1485
      %v1487 = vmul.f32 %v1465, 1.442695
      %v1488 = vpow.pop %v1487
      %v1489 = vmul.f32 %v1466, 1.442695
      %v1490 = vpow.pop %v1489
      %v1491 = vsel %vm1418, %v1468, 0.0
      %1492 = vadd.xlane.f32.xlu0 %v1491
      %v1493 = vpop.xlane.xlu0 %1492
      %v1494 = vsel %vm1418, %v1470, 0.0
      %1495 = vadd.xlane.f32.xlu0 %v1494
      %v1496 = vpop.xlane.xlu0 %1495
      %v1497 = vsel %vm1418, %v1472, 0.0
      %1498 = vadd.xlane.f32.xlu0 %v1497
      %v1499 = vpop.xlane.xlu0 %1498
      %v1500 = vsel %vm1418, %v1474, 0.0
      %1501 = vadd.xlane.f32.xlu0 %v1500
      %v1502 = vpop.xlane.xlu0 %1501
      %v1503 = vsel %vm1418, %v1476, 0.0
      %1504 = vadd.xlane.f32.xlu0 %v1503
      %v1505 = vpop.xlane.xlu0 %1504
      %v1506 = vsel %vm1418, %v1478, 0.0
      %1507 = vadd.xlane.f32.xlu0 %v1506
      %v1508 = vpop.xlane.xlu0 %1507
      %v1509 = vsel %vm1418, %v1480, 0.0
      %1510 = vadd.xlane.f32.xlu0 %v1509
      %v1511 = vpop.xlane.xlu0 %1510
      %v1512 = vsel %vm1418, %v1482, 0.0
      %1513 = vadd.xlane.f32.xlu0 %v1512
      %v1514 = vpop.xlane.xlu0 %1513
      %v1515 = vsel %vm1418, %v1484, 0.0
      %1516 = vadd.xlane.f32.xlu0 %v1515
      %v1517 = vpop.xlane.xlu0 %1516
      %v1518 = vsel %vm1418, %v1486, 0.0
      %1519 = vadd.xlane.f32.xlu0 %v1518
      %v1520 = vpop.xlane.xlu0 %1519
      %v1521 = vsel %vm1418, %v1488, 0.0
      %1522 = vadd.xlane.f32.xlu0 %v1521
      %v1523 = vpop.xlane.xlu0 %1522
      %v1524 = vsel %vm1418, %v1490, 0.0
      %1525 = vadd.xlane.f32.xlu0 %v1524
      %v1526 = vpop.xlane.xlu0 %1525
      %v1527 = vrcp.pop %v1493
      %v1528 = vrcp.pop %v1496
      %v1529 = vrcp.pop %v1499
      %v1530 = vrcp.pop %v1502
      %v1531 = vrcp.pop %v1505
      %v1532 = vrcp.pop %v1508
      %v1533 = vrcp.pop %v1511
      %v1534 = vrcp.pop %v1514
      %v1535 = vrcp.pop %v1517
      %v1536 = vrcp.pop %v1520
      %v1537 = vrcp.pop %v1523
      %v1538 = vrcp.pop %v1526
      %v1539 = vpack.c.bf16 %v1470, %v1468
      %v1540 = vpack.c.bf16 %v1472, %v1472
      %v1541 = vpack.c.bf16 %v1476, %v1474
      %v1542 = vpack.c.bf16 %v1478, %v1478
      %v1543 = vpack.c.bf16 %v1482, %v1480
      %v1544 = vpack.c.bf16 %v1484, %v1484
      %v1545 = vpack.c.bf16 %v1488, %v1486
      %v1546 = vpack.c.bf16 %v1490, %v1490
      %v1548 = vsel %vm1418, %v1539, 0
      %v1551 = vsel %vm1418, %v1540, 0
      %vm1553 = vcmask 1043456
      %v1555 = vsel %vm1553, %v1103, 0
      %1557 = vmatprep.subr.bf16.mxu0 0
      %1558 = vmatpush1.bf16.msra.mxu0 %v1100
      %1559 = vmatprep.subr.bf16.mxu0 0
      %1560 = vmatpush1.bf16.msra.mxu0 %v1555
      %1561 = vmatprep.subr.bf16.mxu0 0
      %1562 = vmatpush1.bf16.msra.mxu0 0
      %1563 = vmatprep.subr.bf16.mxu0 0
      %1564 = vmatpush1.bf16.msra.mxu0 0
      %1565 = vmatprep.subr.bf16.mxu0 0
      %1566 = vmatpush1.bf16.msra.mxu0 0
      %1567 = vmatprep.subr.bf16.mxu0 0
      %1568 = vmatpush1.bf16.msra.mxu0 0
      %1569 = vmatprep.subr.bf16.mxu0 0
      %1570 = vmatpush1.bf16.msra.mxu0 0
      %1571 = vmatprep.subr.bf16.mxu0 0
      %1572 = vmatpush1.bf16.msra.mxu0 0
      %1573 = vmatprep.subr.bf16.mxu0 0
      %1574 = vmatpush1.bf16.msra.mxu0 0
      %1575 = vmatprep.subr.bf16.mxu0 0
      %1576 = vmatpush1.bf16.msra.mxu0 0
      %1577 = vmatprep.subr.bf16.mxu0 0
      %1578 = vmatpush1.bf16.msra.mxu0 0
      %1579 = vmatprep.subr.bf16.mxu0 0
      %1580 = vmatpush1.bf16.msra.mxu0 0
      %1581 = vmatprep.subr.bf16.mxu0 0
      %1582 = vmatpush1.bf16.msra.mxu0 0
      %1583 = vmatprep.subr.bf16.mxu0 0
      %1584 = vmatpush1.bf16.msra.mxu0 0
      %1585 = vmatprep.subr.bf16.mxu0 0
      %1586 = vmatpush1.bf16.msra.mxu0 0
      %1587 = vmatprep.subr.bf16.mxu0 0
      %1588 = vmatpush1.bf16.msra.mxu0 0
      %1589 = vmatprep.mubr.bf16.mxu0 0
      %1590 = vmatmul.mubr.bf16.gmra.mrb[0].mxu0 %v1548
      %v1591 = vpop.f32.mrb[0].mxu0
      %v1592 = vadd.f32 0.0, %v1591
      %v1593 = vpop.f32.mrb[0].mxu0
      %v1594 = vpop.f32.mrb[0].mxu0
      %v1595 = vadd.f32 0.0, %v1594
      %v1596 = vpop.f32.mrb[0].mxu0
      %1597 = vmatprep.mubr.bf16.mxu0 0
      %1598 = vmatmul.mubr.bf16.gmra.mrb[0].mxu0 %v1551
      %v1599 = vpop.f32.mrb[0].mxu0
      %v1600 = vadd.f32 0.0, %v1599
      %v1601 = vpop.f32.mrb[0].mxu0
      %v1602 = vpop.f32.mrb[0].mxu0
      %v1603 = vpop.f32.mrb[0].mxu0
      %1604 = vdwg.mxu0
      %v1606 = vsel %vm1418, %v1541, 0
      %v1609 = vsel %vm1418, %v1542, 0
      %v1612 = vsel %vm1553, %v1137, 0
      %1614 = vmatprep.subr.bf16.mxu0 0
      %1615 = vmatpush1.bf16.msra.mxu0 %v1135
      %1616 = vmatprep.subr.bf16.mxu0 0
      %1617 = vmatpush1.bf16.msra.mxu0 %v1612
      %1618 = vmatprep.subr.bf16.mxu0 0
      %1619 = vmatpush1.bf16.msra.mxu0 0
      %1620 = vmatprep.subr.bf16.mxu0 0
      %1621 = vmatpush1.bf16.msra.mxu0 0
      %1622 = vmatprep.subr.bf16.mxu0 0
      %1623 = vmatpush1.bf16.msra.mxu0 0
      %1624 = vmatprep.subr.bf16.mxu0 0
      %1625 = vmatpush1.bf16.msra.mxu0 0
      %1626 = vmatprep.subr.bf16.mxu0 0
      %1627 = vmatpush1.bf16.msra.mxu0 0
      %1628 = vmatprep.subr.bf16.mxu0 0
      %1629 = vmatpush1.bf16.msra.mxu0 0
      %1630 = vmatprep.subr.bf16.mxu0 0
      %1631 = vmatpush1.bf16.msra.mxu0 0
      %1632 = vmatprep.subr.bf16.mxu0 0
      %1633 = vmatpush1.bf16.msra.mxu0 0
      %1634 = vmatprep.subr.bf16.mxu0 0
      %1635 = vmatpush1.bf16.msra.mxu0 0
      %1636 = vmatprep.subr.bf16.mxu0 0
      %1637 = vmatpush1.bf16.msra.mxu0 0
      %1638 = vmatprep.subr.bf16.mxu0 0
      %1639 = vmatpush1.bf16.msra.mxu0 0
      %1640 = vmatprep.subr.bf16.mxu0 0
      %1641 = vmatpush1.bf16.msra.mxu0 0
      %1642 = vmatprep.subr.bf16.mxu0 0
      %1643 = vmatpush1.bf16.msra.mxu0 0
      %1644 = vmatprep.subr.bf16.mxu0 0
      %1645 = vmatpush1.bf16.msra.mxu0 0
      %1646 = vmatprep.mubr.bf16.mxu0 0
      %1647 = vmatmul.mubr.bf16.gmra.mrb[0].mxu0 %v1606
      %v1648 = vpop.f32.mrb[0].mxu0
      %v1649 = vadd.f32 0.0, %v1648
      %v1650 = vpop.f32.mrb[0].mxu0
      %v1651 = vpop.f32.mrb[0].mxu0
      %v1652 = vadd.f32 0.0, %v1651
      %v1653 = vpop.f32.mrb[0].mxu0
      %1654 = vmatprep.mubr.bf16.mxu0 0
      %1655 = vmatmul.mubr.bf16.gmra.mrb[0].mxu0 %v1609
      %v1656 = vpop.f32.mrb[0].mxu0
      %v1657 = vadd.f32 0.0, %v1656
      %v1658 = vpop.f32.mrb[0].mxu0
      %v1659 = vpop.f32.mrb[0].mxu0
      %v1660 = vpop.f32.mrb[0].mxu0
      %1661 = vdwg.mxu0
      %v1663 = vsel %vm1418, %v1543, 0
      %v1666 = vsel %vm1418, %v1544, 0
      %v1669 = vsel %vm1553, %v1142, 0
      %1671 = vmatprep.subr.bf16.mxu0 0
      %1672 = vmatpush1.bf16.msra.mxu0 %v1140
      %1673 = vmatprep.subr.bf16.mxu0 0
      %1674 = vmatpush1.bf16.msra.mxu0 %v1669
      %1675 = vmatprep.subr.bf16.mxu0 0
      %1676 = vmatpush1.bf16.msra.mxu0 0
      %1677 = vmatprep.subr.bf16.mxu0 0
      %1678 = vmatpush1.bf16.msra.mxu0 0
      %1679 = vmatprep.subr.bf16.mxu0 0
      %1680 = vmatpush1.bf16.msra.mxu0 0
      %1681 = vmatprep.subr.bf16.mxu0 0
      %1682 = vmatpush1.bf16.msra.mxu0 0
      %1683 = vmatprep.subr.bf16.mxu0 0
      %1684 = vmatpush1.bf16.msra.mxu0 0
      %1685 = vmatprep.subr.bf16.mxu0 0
      %1686 = vmatpush1.bf16.msra.mxu0 0
      %1687 = vmatprep.subr.bf16.mxu0 0
      %1688 = vmatpush1.bf16.msra.mxu0 0
      %1689 = vmatprep.subr.bf16.mxu0 0
      %1690 = vmatpush1.bf16.msra.mxu0 0
      %1691 = vmatprep.subr.bf16.mxu0 0
      %1692 = vmatpush1.bf16.msra.mxu0 0
      %1693 = vmatprep.subr.bf16.mxu0 0
      %1694 = vmatpush1.bf16.msra.mxu0 0
      %1695 = vmatprep.subr.bf16.mxu0 0
      %1696 = vmatpush1.bf16.msra.mxu0 0
      %1697 = vmatprep.subr.bf16.mxu0 0
      %1698 = vmatpush1.bf16.msra.mxu0 0
      %1699 = vmatprep.subr.bf16.mxu0 0
      %1700 = vmatpush1.bf16.msra.mxu0 0
      %1701 = vmatprep.subr.bf16.mxu0 0
      %1702 = vmatpush1.bf16.msra.mxu0 0
      %1703 = vmatprep.mubr.bf16.mxu0 0
      %1704 = vmatmul.mubr.bf16.gmra.mrb[0].mxu0 %v1663
      %v1705 = vpop.f32.mrb[0].mxu0
      %v1706 = vadd.f32 0.0, %v1705
      %v1707 = vpop.f32.mrb[0].mxu0
      %v1708 = vpop.f32.mrb[0].mxu0
      %v1709 = vadd.f32 0.0, %v1708
      %v1710 = vpop.f32.mrb[0].mxu0
      %1711 = vmatprep.mubr.bf16.mxu0 0
      %1712 = vmatmul.mubr.bf16.gmra.mrb[0].mxu0 %v1666
      %v1713 = vpop.f32.mrb[0].mxu0
      %v1714 = vadd.f32 0.0, %v1713
      %v1715 = vpop.f32.mrb[0].mxu0
      %v1716 = vpop.f32.mrb[0].mxu0
      %v1717 = vpop.f32.mrb[0].mxu0
      %1718 = vdwg.mxu0
      %v1720 = vsel %vm1418, %v1545, 0
      %v1723 = vsel %vm1418, %v1546, 0
      %v1726 = vsel %vm1553, %v1147, 0
      %1728 = vmatprep.subr.bf16.mxu0 0
      %1729 = vmatpush1.bf16.msra.mxu0 %v1145
      %1730 = vmatprep.subr.bf16.mxu0 0
      %1731 = vmatpush1.bf16.msra.mxu0 %v1726
      %1732 = vmatprep.subr.bf16.mxu0 0
      %1733 = vmatpush1.bf16.msra.mxu0 0
      %1734 = vmatprep.subr.bf16.mxu0 0
      %1735 = vmatpush1.bf16.msra.mxu0 0
      %1736 = vmatprep.subr.bf16.mxu0 0
      %1737 = vmatpush1.bf16.msra.mxu0 0
      %1738 = vmatprep.subr.bf16.mxu0 0
      %1739 = vmatpush1.bf16.msra.mxu0 0
      %1740 = vmatprep.subr.bf16.mxu0 0
      %1741 = vmatpush1.bf16.msra.mxu0 0
      %1742 = vmatprep.subr.bf16.mxu0 0
      %1743 = vmatpush1.bf16.msra.mxu0 0
      %1744 = vmatprep.subr.bf16.mxu0 0
      %1745 = vmatpush1.bf16.msra.mxu0 0
      %1746 = vmatprep.subr.bf16.mxu0 0
      %1747 = vmatpush1.bf16.msra.mxu0 0
      %1748 = vmatprep.subr.bf16.mxu0 0
      %1749 = vmatpush1.bf16.msra.mxu0 0
      %1750 = vmatprep.subr.bf16.mxu0 0
      %1751 = vmatpush1.bf16.msra.mxu0 0
      %1752 = vmatprep.subr.bf16.mxu0 0
      %1753 = vmatpush1.bf16.msra.mxu0 0
      %1754 = vmatprep.subr.bf16.mxu0 0
      %1755 = vmatpush1.bf16.msra.mxu0 0
      %1756 = vmatprep.subr.bf16.mxu0 0
      %1757 = vmatpush1.bf16.msra.mxu0 0
      %1758 = vmatprep.subr.bf16.mxu0 0
      %1759 = vmatpush1.bf16.msra.mxu0 0
      %1760 = vmatprep.mubr.bf16.mxu0 0
      %1761 = vmatmul.mubr.bf16.gmra.mrb[0].mxu0 %v1720
      %v1762 = vpop.f32.mrb[0].mxu0
      %v1763 = vadd.f32 0.0, %v1762
      %v1764 = vpop.f32.mrb[0].mxu0
      %v1765 = vpop.f32.mrb[0].mxu0
      %v1766 = vadd.f32 0.0, %v1765
      %v1767 = vpop.f32.mrb[0].mxu0
      %1768 = vmatprep.mubr.bf16.mxu0 0
      %1769 = vmatmul.mubr.bf16.gmra.mrb[0].mxu0 %v1723
      %v1770 = vpop.f32.mrb[0].mxu0
      %v1771 = vadd.f32 0.0, %v1770
      %v1772 = vpop.f32.mrb[0].mxu0
      %v1773 = vpop.f32.mrb[0].mxu0
      %v1774 = vpop.f32.mrb[0].mxu0
      %1775 = vdwg.mxu0
      %v1776 = vmul.f32 %v1592, %v1527
      %v1777 = vmul.f32 %v1595, %v1528
      %v1778 = vmul.f32 %v1600, %v1529
      %v1779 = vmul.f32 %v1649, %v1530
      %v1780 = vmul.f32 %v1652, %v1531
      %v1781 = vmul.f32 %v1657, %v1532
      %v1782 = vmul.f32 %v1706, %v1533
      %v1783 = vmul.f32 %v1709, %v1534
      %v1784 = vmul.f32 %v1714, %v1535
      %v1785 = vmul.f32 %v1763, %v1536
      %v1786 = vmul.f32 %v1766, %v1537
      %v1787 = vmul.f32 %v1771, %v1538
      %1791 = vrot.lane.b32.xlu0 %v1779, 32
      %v1792 = vpop.permute.xlu0 %1791
      %1793 = vrot.lane.b32.xlu0 %v1780, 32
      %v1794 = vpop.permute.xlu0 %1793
      %1795 = vrot.lane.b32.xlu0 %v1781, 32
      %v1796 = vpop.permute.xlu0 %1795
      %1803 = vrot.lane.b32.xlu0 %v1782, 64
      %v1804 = vpop.permute.xlu0 %1803
      %1805 = vrot.lane.b32.xlu0 %v1783, 64
      %v1806 = vpop.permute.xlu0 %1805
      %1807 = vrot.lane.b32.xlu0 %v1784, 64
      %v1808 = vpop.permute.xlu0 %1807
      %1815 = vrot.lane.b32.xlu0 %v1785, 96
      %v1816 = vpop.permute.xlu0 %1815
      %1817 = vrot.lane.b32.xlu0 %v1786, 96
      %v1818 = vpop.permute.xlu0 %1817
      %1819 = vrot.lane.b32.xlu0 %v1787, 96
      %v1820 = vpop.permute.xlu0 %1819
      %v1824 = vsel %vm1149, %v1776, %v1792
      %v1825 = vsel %vm1149, %v1777, %v1794
      %v1826 = vsel %vm1149, %v1778, %v1796
      %vm1827 = vcmask 523264
      %v1828 = vsel %vm1827, %v1824, %v1804
      %v1829 = vsel %vm1827, %v1825, %v1806
      %v1830 = vsel %vm1827, %v1826, %v1808
      %vm1831 = vcmask 785408
      %v1832 = vsel %vm1831, %v1828, %v1816
      %v1833 = vsel %vm1831, %v1829, %v1818
      %v1834 = vsel %vm1831, %v1830, %v1820
      %v1835 = vpack.c.bf16 %v1833, %v1832
      %v1836 = vpack.c.bf16 %v1834, %v1834
      %v1853 = vunpack.c.l.b16 %v688
      %v1854 = vunpack.c.l.b16 %v689
      %v1855 = vunpack.c.l.b16 %v690
      %v1856 = vunpack.c.l.b16 %v691
      %v1857 = vunpack.c.l.b16 %v692
      %v1858 = vunpack.c.l.b16 %v693
      %v1859 = vunpack.c.l.b16 %v694
      %v1860 = vunpack.c.l.b16 %v695
      %v1861 = vunpack.c.l.b16 %v696
      %v1862 = vunpack.c.l.b16 %v697
      %v1863 = vunpack.c.l.b16 %v698
      %v1864 = vunpack.c.l.b16 %v699
      %v1865 = vunpack.c.l.b16 %v700
      %v1866 = vunpack.c.l.b16 %v701
      %v1867 = vunpack.c.l.b16 %v702
      %v1868 = vunpack.c.l.b16 %v703
      %v1869 = vpack.c.b16 %v1854, %v1853
      %v1870 = vpack.c.b16 %v1856, %v1855
      %v1871 = vpack.c.b16 %v1858, %v1857
      %v1872 = vpack.c.b16 %v1860, %v1859
      %v1873 = vpack.c.b16 %v1862, %v1861
      %v1874 = vpack.c.b16 %v1864, %v1863
      %v1875 = vpack.c.b16 %v1866, %v1865
      %v1876 = vpack.c.b16 %v1868, %v1867
      %1885 = vmatprep.subr.bf16.mxu0 0
      %1886 = vmatpush1.bf16.msra.mxu0 %v1869
      %1887 = vmatprep.subr.bf16.mxu0 0
      %1888 = vmatpush1.bf16.msra.mxu0 %v1870
      %1889 = vmatprep.subr.bf16.mxu0 0
      %1890 = vmatpush1.bf16.msra.mxu0 %v1871
      %1891 = vmatprep.subr.bf16.mxu0 0
      %1892 = vmatpush1.bf16.msra.mxu0 %v1872
      %1893 = vmatprep.subr.bf16.mxu0 0
      %1894 = vmatpush1.bf16.msra.mxu0 %v1873
      %1895 = vmatprep.subr.bf16.mxu0 0
      %1896 = vmatpush1.bf16.msra.mxu0 %v1874
      %1897 = vmatprep.subr.bf16.mxu0 0
      %1898 = vmatpush1.bf16.msra.mxu0 %v1875
      %1899 = vmatprep.subr.bf16.mxu0 0
      %1900 = vmatpush1.bf16.msra.mxu0 %v1876
      %1901 = vmatprep.subr.bf16.mxu0 0
      %1902 = vmatpush1.bf16.msra.mxu0 0
      %1903 = vmatprep.subr.bf16.mxu0 0
      %1904 = vmatpush1.bf16.msra.mxu0 0
      %1905 = vmatprep.subr.bf16.mxu0 0
      %1906 = vmatpush1.bf16.msra.mxu0 0
      %1907 = vmatprep.subr.bf16.mxu0 0
      %1908 = vmatpush1.bf16.msra.mxu0 0
      %1909 = vmatprep.subr.bf16.mxu0 0
      %1910 = vmatpush1.bf16.msra.mxu0 0
      %1911 = vmatprep.subr.bf16.mxu0 0
      %1912 = vmatpush1.bf16.msra.mxu0 0
      %1913 = vmatprep.subr.bf16.mxu0 0
      %1914 = vmatpush1.bf16.msra.mxu0 0
      %1915 = vmatprep.subr.bf16.mxu0 0
      %1916 = vmatpush1.bf16.msra.mxu0 0
      %1917 = vmatprep.mubr.bf16.mxu0 0
      %1918 = vmatmul.mubr.bf16.gmra.mrb[0].mxu0 %v1835
      %v1919 = vpop.f32.mrb[0].mxu0
      %v1920 = vadd.f32 %v804, %v1919
      %v1921 = vpop.f32.mrb[0].mxu0
      %v1922 = vpop.f32.mrb[0].mxu0
      %v1923 = vadd.f32 %v804, %v1922
      %v1924 = vpop.f32.mrb[0].mxu0
      %1925 = vmatprep.mubr.bf16.mxu0 0
      %1926 = vmatmul.mubr.bf16.gmra.mrb[0].mxu0 %v1836
      %v1927 = vpop.f32.mrb[0].mxu0
      %v1928 = vadd.f32 %v804, %v1927
      %v1929 = vpop.f32.mrb[0].mxu0
      %v1930 = vpop.f32.mrb[0].mxu0
      %v1931 = vpop.f32.mrb[0].mxu0
      %1932 = vdwg.mxu0
      %v1933 = vadd.f32 %v810, %v1920
      %v1934 = vadd.f32 %v811, %v1923
      %v1935 = vadd.f32 %v812, %v1928
      %1936 = vadd.xlane.f32.xlu0 %v1933
      %v1937 = vpop.xlane.xlu0 %1936
      %1938 = vadd.xlane.f32.xlu0 %v1934
      %v1939 = vpop.xlane.xlu0 %1938
      %1940 = vadd.xlane.f32.xlu0 %v1935
      %v1941 = vpop.xlane.xlu0 %1940
      %v1942 = vmul.f32 %v1937, %v819
      %v1943 = vmul.f32 %v1939, %v819
      %v1944 = vmul.f32 %v1941, %v819
      %v1945 = vsub.f32 %v1933, %v1942
      %v1946 = vsub.f32 %v1934, %v1943
      %v1947 = vsub.f32 %v1935, %v1944
      %v1948 = vmul.f32 %v1945, %v1945
      %v1949 = vmul.f32 %v1946, %v1946
      %v1950 = vmul.f32 %v1947, %v1947
      %1951 = vadd.xlane.f32.xlu0 %v1948
      %v1952 = vpop.xlane.xlu0 %1951
      %1953 = vadd.xlane.f32.xlu0 %v1949
      %v1954 = vpop.xlane.xlu0 %1953
      %1955 = vadd.xlane.f32.xlu0 %v1950
      %v1956 = vpop.xlane.xlu0 %1955
      %v1957 = vmul.f32 %v1952, %v819
      %v1958 = vmul.f32 %v1954, %v819
      %v1959 = vmul.f32 %v1956, %v819
      %v1960 = vadd.f32 %v1957, 1e-06
      %v1961 = vadd.f32 %v1958, 1e-06
      %v1962 = vadd.f32 %v1959, 1e-06
      %v1963 = vrsqrt.pop %v1960
      %v1964 = vrsqrt.pop %v1961
      %v1965 = vrsqrt.pop %v1962
      %v1966 = vmul.f32 %v1945, %v1963
      %v1967 = vmul.f32 %v1946, %v1964
      %v1968 = vmul.f32 %v1947, %v1965
      %v1969 = vmul.f32 %v1966, %v805
      %v1970 = vmul.f32 %v1967, %v805
      %v1971 = vmul.f32 %v1968, %v805
      %v1972 = vadd.f32 %v1969, %v806
      %v1973 = vadd.f32 %v1970, %v806
      %v1974 = vadd.f32 %v1971, %v806
      %v1975 = vpack.c.bf16 %v1973, %v1972
      %v1976 = vpack.c.bf16 %v1974, %v1974
      %v1978 = vlaneseq
      %v1979 = vshrl.u32 %v1978, 7
      %v1980 = vsub.s32 0, %v1979
      %v1981 = vrot.slane %v808, %v1980
      %v1982 = vlaneseq
      %v1983 = vshrl.u32 %v1982, 7
      %v1984 = vsub.s32 1, %v1983
      %v1985 = vrot.slane %v808, %v1984
      %v1986 = vlaneseq
      %v1987 = vshrl.u32 %v1986, 7
      %v1988 = vsub.s32 2, %v1987
      %v1989 = vrot.slane %v808, %v1988
      %v1990 = vlaneseq
      %v1991 = vshrl.u32 %v1990, 7
      %v1992 = vsub.s32 3, %v1991
      %v1993 = vrot.slane %v808, %v1992
      %v2030 = vunpack.c.l.b16 %v704
      %v2031 = vunpack.c.h.b16 %v704
      %v2032 = vunpack.c.l.b16 %v705
      %v2033 = vunpack.c.h.b16 %v705
      %v2034 = vunpack.c.l.b16 %v706
      %v2035 = vunpack.c.h.b16 %v706
      %v2036 = vunpack.c.l.b16 %v707
      %v2037 = vunpack.c.h.b16 %v707
      %v2038 = vunpack.c.l.b16 %v708
      %v2039 = vunpack.c.h.b16 %v708
      %v2040 = vunpack.c.l.b16 %v709
      %v2041 = vunpack.c.h.b16 %v709
      %v2042 = vunpack.c.l.b16 %v710
      %v2043 = vunpack.c.h.b16 %v710
      %v2044 = vunpack.c.l.b16 %v711
      %v2045 = vunpack.c.h.b16 %v711
      %v2046 = vunpack.c.l.b16 %v712
      %v2047 = vunpack.c.h.b16 %v712
      %v2048 = vunpack.c.l.b16 %v713
      %v2049 = vunpack.c.h.b16 %v713
      %v2050 = vunpack.c.l.b16 %v714
      %v2051 = vunpack.c.h.b16 %v714
      %v2052 = vunpack.c.l.b16 %v715
      %v2053 = vunpack.c.h.b16 %v715
      %v2054 = vunpack.c.l.b16 %v716
      %v2055 = vunpack.c.h.b16 %v716
      %v2056 = vunpack.c.l.b16 %v717
      %v2057 = vunpack.c.h.b16 %v717
      %v2058 = vunpack.c.l.b16 %v718
      %v2059 = vunpack.c.h.b16 %v718
      %v2060 = vunpack.c.l.b16 %v719
      %v2061 = vunpack.c.h.b16 %v719
      %v2062 = vunpack.c.l.b16 %v720
      %v2063 = vunpack.c.h.b16 %v720
      %v2064 = vunpack.c.l.b16 %v721
      %v2065 = vunpack.c.h.b16 %v721
      %v2066 = vunpack.c.l.b16 %v722
      %v2067 = vunpack.c.h.b16 %v722
      %v2068 = vunpack.c.l.b16 %v723
      %v2069 = vunpack.c.h.b16 %v723
      %v2070 = vunpack.c.l.b16 %v724
      %v2071 = vunpack.c.h.b16 %v724
      %v2072 = vunpack.c.l.b16 %v725
      %v2073 = vunpack.c.h.b16 %v725
      %v2074 = vunpack.c.l.b16 %v726
      %v2075 = vunpack.c.h.b16 %v726
      %v2076 = vunpack.c.l.b16 %v727
      %v2077 = vunpack.c.h.b16 %v727
      %v2078 = vunpack.c.l.b16 %v728
      %v2079 = vunpack.c.h.b16 %v728
      %v2080 = vunpack.c.l.b16 %v729
      %v2081 = vunpack.c.h.b16 %v729
      %v2082 = vunpack.c.l.b16 %v730
      %v2083 = vunpack.c.h.b16 %v730
      %v2084 = vunpack.c.l.b16 %v731
      %v2085 = vunpack.c.h.b16 %v731
      %v2086 = vunpack.c.l.b16 %v732
      %v2087 = vunpack.c.h.b16 %v732
      %v2088 = vunpack.c.l.b16 %v733
      %v2089 = vunpack.c.h.b16 %v733
      %v2090 = vunpack.c.l.b16 %v734
      %v2091 = vunpack.c.h.b16 %v734
      %v2092 = vunpack.c.l.b16 %v735
      %v2093 = vunpack.c.h.b16 %v735
      %v2094 = vpack.c.b16 %v2034, %v2030
      %v2095 = vpack.c.b16 %v2035, %v2031
      %v2096 = vpack.c.b16 %v2036, %v2032
      %v2097 = vpack.c.b16 %v2037, %v2033
      %v2098 = vpack.c.b16 %v2042, %v2038
      %v2099 = vpack.c.b16 %v2043, %v2039
      %v2100 = vpack.c.b16 %v2044, %v2040
      %v2101 = vpack.c.b16 %v2045, %v2041
      %v2102 = vpack.c.b16 %v2050, %v2046
      %v2103 = vpack.c.b16 %v2051, %v2047
      %v2104 = vpack.c.b16 %v2052, %v2048
      %v2105 = vpack.c.b16 %v2053, %v2049
      %v2106 = vpack.c.b16 %v2058, %v2054
      %v2107 = vpack.c.b16 %v2059, %v2055
      %v2108 = vpack.c.b16 %v2060, %v2056
      %v2109 = vpack.c.b16 %v2061, %v2057
      %v2110 = vpack.c.b16 %v2066, %v2062
      %v2111 = vpack.c.b16 %v2067, %v2063
      %v2112 = vpack.c.b16 %v2068, %v2064
      %v2113 = vpack.c.b16 %v2069, %v2065
      %v2114 = vpack.c.b16 %v2074, %v2070
      %v2115 = vpack.c.b16 %v2075, %v2071
      %v2116 = vpack.c.b16 %v2076, %v2072
      %v2117 = vpack.c.b16 %v2077, %v2073
      %v2118 = vpack.c.b16 %v2082, %v2078
      %v2119 = vpack.c.b16 %v2083, %v2079
      %v2120 = vpack.c.b16 %v2084, %v2080
      %v2121 = vpack.c.b16 %v2085, %v2081
      %v2122 = vpack.c.b16 %v2090, %v2086
      %v2123 = vpack.c.b16 %v2091, %v2087
      %v2124 = vpack.c.b16 %v2092, %v2088
      %v2125 = vpack.c.b16 %v2093, %v2089
      %2158 = vmatprep.subr.bf16.mxu0 %v2095
      %2159 = vmatpush1.bf16.msra.mxu0 %v2094
      %2160 = vmatprep.subr.bf16.mxu0 %v2099
      %2161 = vmatpush1.bf16.msra.mxu0 %v2098
      %2162 = vmatprep.subr.bf16.mxu0 %v2103
      %2163 = vmatpush1.bf16.msra.mxu0 %v2102
      %2164 = vmatprep.subr.bf16.mxu0 %v2107
      %2165 = vmatpush1.bf16.msra.mxu0 %v2106
      %2166 = vmatprep.subr.bf16.mxu0 %v2111
      %2167 = vmatpush1.bf16.msra.mxu0 %v2110
      %2168 = vmatprep.subr.bf16.mxu0 %v2115
      %2169 = vmatpush1.bf16.msra.mxu0 %v2114
      %2170 = vmatprep.subr.bf16.mxu0 %v2119
      %2171 = vmatpush1.bf16.msra.mxu0 %v2118
      %2172 = vmatprep.subr.bf16.mxu0 %v2123
      %2173 = vmatpush1.bf16.msra.mxu0 %v2122
      %2174 = vmatprep.subr.bf16.mxu0 0
      %2175 = vmatpush1.bf16.msra.mxu0 0
      %2176 = vmatprep.subr.bf16.mxu0 0
      %2177 = vmatpush1.bf16.msra.mxu0 0
      %2178 = vmatprep.subr.bf16.mxu0 0
      %2179 = vmatpush1.bf16.msra.mxu0 0
      %2180 = vmatprep.subr.bf16.mxu0 0
      %2181 = vmatpush1.bf16.msra.mxu0 0
      %2182 = vmatprep.subr.bf16.mxu0 0
      %2183 = vmatpush1.bf16.msra.mxu0 0
      %2184 = vmatprep.subr.bf16.mxu0 0
      %2185 = vmatpush1.bf16.msra.mxu0 0
      %2186 = vmatprep.subr.bf16.mxu0 0
      %2187 = vmatpush1.bf16.msra.mxu0 0
      %2188 = vmatprep.subr.bf16.mxu0 0
      %2189 = vmatpush1.bf16.msra.mxu0 0
      %2190 = vmatprep.mubr.bf16.mxu0 0
      %2191 = vmatmul.mubr.bf16.gmra.mrb[0].mxu0 %v1975
      %v2192 = vpop.f32.mrb[0].mxu0
      %v2193 = vadd.f32 %v1981, %v2192
      %v2194 = vpop.f32.mrb[0].mxu0
      %v2195 = vadd.f32 %v1985, %v2194
      %v2196 = vpop.f32.mrb[0].mxu0
      %v2197 = vadd.f32 %v1981, %v2196
      %v2198 = vpop.f32.mrb[0].mxu0
      %v2199 = vadd.f32 %v1985, %v2198
      %2200 = vmatprep.mubr.bf16.mxu0 0
      %2201 = vmatmul.mubr.bf16.gmra.mrb[0].mxu0 %v1976
      %v2202 = vpop.f32.mrb[0].mxu0
      %v2203 = vadd.f32 %v1981, %v2202
      %v2204 = vpop.f32.mrb[0].mxu0
      %v2205 = vadd.f32 %v1985, %v2204
      %v2206 = vpop.f32.mrb[0].mxu0
      %v2207 = vpop.f32.mrb[0].mxu0
      %2208 = vdwg.mxu0
      %2209 = vmatprep.subr.bf16.mxu0 %v2097
      %2210 = vmatpush1.bf16.msra.mxu0 %v2096
      %2211 = vmatprep.subr.bf16.mxu0 %v2101
      %2212 = vmatpush1.bf16.msra.mxu0 %v2100
      %2213 = vmatprep.subr.bf16.mxu0 %v2105
      %2214 = vmatpush1.bf16.msra.mxu0 %v2104
      %2215 = vmatprep.subr.bf16.mxu0 %v2109
      %2216 = vmatpush1.bf16.msra.mxu0 %v2108
      %2217 = vmatprep.subr.bf16.mxu0 %v2113
      %2218 = vmatpush1.bf16.msra.mxu0 %v2112
      %2219 = vmatprep.subr.bf16.mxu0 %v2117
      %2220 = vmatpush1.bf16.msra.mxu0 %v2116
      %2221 = vmatprep.subr.bf16.mxu0 %v2121
      %2222 = vmatpush1.bf16.msra.mxu0 %v2120
      %2223 = vmatprep.subr.bf16.mxu0 %v2125
      %2224 = vmatpush1.bf16.msra.mxu0 %v2124
      %2225 = vmatprep.subr.bf16.mxu0 0
      %2226 = vmatpush1.bf16.msra.mxu0 0
      %2227 = vmatprep.subr.bf16.mxu0 0
      %2228 = vmatpush1.bf16.msra.mxu0 0
      %2229 = vmatprep.subr.bf16.mxu0 0
      %2230 = vmatpush1.bf16.msra.mxu0 0
      %2231 = vmatprep.subr.bf16.mxu0 0
      %2232 = vmatpush1.bf16.msra.mxu0 0
      %2233 = vmatprep.subr.bf16.mxu0 0
      %2234 = vmatpush1.bf16.msra.mxu0 0
      %2235 = vmatprep.subr.bf16.mxu0 0
      %2236 = vmatpush1.bf16.msra.mxu0 0
      %2237 = vmatprep.subr.bf16.mxu0 0
      %2238 = vmatpush1.bf16.msra.mxu0 0
      %2239 = vmatprep.subr.bf16.mxu0 0
      %2240 = vmatpush1.bf16.msra.mxu0 0
      %2241 = vmatprep.mubr.bf16.mxu0 0
      %2242 = vmatmul.mubr.bf16.gmra.mrb[0].mxu0 %v1975
      %v2243 = vpop.f32.mrb[0].mxu0
      %v2244 = vadd.f32 %v1989, %v2243
      %v2245 = vpop.f32.mrb[0].mxu0
      %v2246 = vadd.f32 %v1993, %v2245
      %v2247 = vpop.f32.mrb[0].mxu0
      %v2248 = vadd.f32 %v1989, %v2247
      %v2249 = vpop.f32.mrb[0].mxu0
      %v2250 = vadd.f32 %v1993, %v2249
      %2251 = vmatprep.mubr.bf16.mxu0 0
      %2252 = vmatmul.mubr.bf16.gmra.mrb[0].mxu0 %v1976
      %v2253 = vpop.f32.mrb[0].mxu0
      %v2254 = vadd.f32 %v1989, %v2253
      %v2255 = vpop.f32.mrb[0].mxu0
      %v2256 = vadd.f32 %v1993, %v2255
      %v2257 = vpop.f32.mrb[0].mxu0
      %v2258 = vpop.f32.mrb[0].mxu0
      %2259 = vdwg.mxu0
      %v2260 = vmul.f32 %v2193, 0.5
      %v2261 = vmul.f32 %v2195, 0.5
      %v2262 = vmul.f32 %v2244, 0.5
      %v2263 = vmul.f32 %v2246, 0.5
      %v2264 = vmul.f32 %v2197, 0.5
      %v2265 = vmul.f32 %v2199, 0.5
      %v2266 = vmul.f32 %v2248, 0.5
      %v2267 = vmul.f32 %v2250, 0.5
      %v2268 = vmul.f32 %v2203, 0.5
      %v2269 = vmul.f32 %v2205, 0.5
      %v2270 = vmul.f32 %v2254, 0.5
      %v2271 = vmul.f32 %v2256, 0.5
      %v2272 = vmul.f32 %v2193, 0.044715
      %v2273 = vmul.f32 %v2195, 0.044715
      %v2274 = vmul.f32 %v2244, 0.044715
      %v2275 = vmul.f32 %v2246, 0.044715
      %v2276 = vmul.f32 %v2197, 0.044715
      %v2277 = vmul.f32 %v2199, 0.044715
      %v2278 = vmul.f32 %v2248, 0.044715
      %v2279 = vmul.f32 %v2250, 0.044715
      %v2280 = vmul.f32 %v2203, 0.044715
      %v2281 = vmul.f32 %v2205, 0.044715
      %v2282 = vmul.f32 %v2254, 0.044715
      %v2283 = vmul.f32 %v2256, 0.044715
      %v2284 = vmul.f32 %v2272, %v2193
      %v2285 = vmul.f32 %v2273, %v2195
      %v2286 = vmul.f32 %v2274, %v2244
      %v2287 = vmul.f32 %v2275, %v2246
      %v2288 = vmul.f32 %v2276, %v2197
      %v2289 = vmul.f32 %v2277, %v2199
      %v2290 = vmul.f32 %v2278, %v2248
      %v2291 = vmul.f32 %v2279, %v2250
      %v2292 = vmul.f32 %v2280, %v2203
      %v2293 = vmul.f32 %v2281, %v2205
      %v2294 = vmul.f32 %v2282, %v2254
      %v2295 = vmul.f32 %v2283, %v2256
      %v2296 = vmul.f32 %v2284, %v2193
      %v2297 = vmul.f32 %v2285, %v2195
      %v2298 = vmul.f32 %v2286, %v2244
      %v2299 = vmul.f32 %v2287, %v2246
      %v2300 = vmul.f32 %v2288, %v2197
      %v2301 = vmul.f32 %v2289, %v2199
      %v2302 = vmul.f32 %v2290, %v2248
      %v2303 = vmul.f32 %v2291, %v2250
      %v2304 = vmul.f32 %v2292, %v2203
      %v2305 = vmul.f32 %v2293, %v2205
      %v2306 = vmul.f32 %v2294, %v2254
      %v2307 = vmul.f32 %v2295, %v2256
      %v2308 = vadd.f32 %v2193, %v2296
      %v2309 = vadd.f32 %v2195, %v2297
      %v2310 = vadd.f32 %v2244, %v2298
      %v2311 = vadd.f32 %v2246, %v2299
      %v2312 = vadd.f32 %v2197, %v2300
      %v2313 = vadd.f32 %v2199, %v2301
      %v2314 = vadd.f32 %v2248, %v2302
      %v2315 = vadd.f32 %v2250, %v2303
      %v2316 = vadd.f32 %v2203, %v2304
      %v2317 = vadd.f32 %v2205, %v2305
      %v2318 = vadd.f32 %v2254, %v2306
      %v2319 = vadd.f32 %v2256, %v2307
      %v2320 = vmul.f32 %v2308, 0.7978846
      %v2321 = vmul.f32 %v2309, 0.7978846
      %v2322 = vmul.f32 %v2310, 0.7978846
      %v2323 = vmul.f32 %v2311, 0.7978846
      %v2324 = vmul.f32 %v2312, 0.7978846
      %v2325 = vmul.f32 %v2313, 0.7978846
      %v2326 = vmul.f32 %v2314, 0.7978846
      %v2327 = vmul.f32 %v2315, 0.7978846
      %v2328 = vmul.f32 %v2316, 0.7978846
      %v2329 = vmul.f32 %v2317, 0.7978846
      %v2330 = vmul.f32 %v2318, 0.7978846
      %v2331 = vmul.f32 %v2319, 0.7978846
      %v2332 = vtanh.pop %v2320
      %v2333 = vtanh.pop %v2321
      %v2334 = vtanh.pop %v2322
      %v2335 = vtanh.pop %v2323
      %v2336 = vtanh.pop %v2324
      %v2337 = vtanh.pop %v2325
      %v2338 = vtanh.pop %v2326
      %v2339 = vtanh.pop %v2327
      %v2340 = vtanh.pop %v2328
      %v2341 = vtanh.pop %v2329
      %v2342 = vtanh.pop %v2330
      %v2343 = vtanh.pop %v2331
      %v2344 = vadd.f32 %v2332, 1.0
      %v2345 = vadd.f32 %v2333, 1.0
      %v2346 = vadd.f32 %v2334, 1.0
      %v2347 = vadd.f32 %v2335, 1.0
      %v2348 = vadd.f32 %v2336, 1.0
      %v2349 = vadd.f32 %v2337, 1.0
      %v2350 = vadd.f32 %v2338, 1.0
      %v2351 = vadd.f32 %v2339, 1.0
      %v2352 = vadd.f32 %v2340, 1.0
      %v2353 = vadd.f32 %v2341, 1.0
      %v2354 = vadd.f32 %v2342, 1.0
      %v2355 = vadd.f32 %v2343, 1.0
      %v2356 = vmul.f32 %v2260, %v2344
      %v2357 = vmul.f32 %v2261, %v2345
      %v2358 = vmul.f32 %v2262, %v2346
      %v2359 = vmul.f32 %v2263, %v2347
      %v2360 = vmul.f32 %v2264, %v2348
      %v2361 = vmul.f32 %v2265, %v2349
      %v2362 = vmul.f32 %v2266, %v2350
      %v2363 = vmul.f32 %v2267, %v2351
      %v2364 = vmul.f32 %v2268, %v2352
      %v2365 = vmul.f32 %v2269, %v2353
      %v2366 = vmul.f32 %v2270, %v2354
      %v2367 = vmul.f32 %v2271, %v2355
      %v2368 = vpack.c.bf16 %v2360, %v2356
      %v2369 = vpack.c.bf16 %v2361, %v2357
      %v2370 = vpack.c.bf16 %v2362, %v2358
      %v2371 = vpack.c.bf16 %v2363, %v2359
      %v2372 = vpack.c.bf16 %v2364, %v2364
      %v2373 = vpack.c.bf16 %v2365, %v2365
      %v2374 = vpack.c.bf16 %v2366, %v2366
      %v2375 = vpack.c.bf16 %v2367, %v2367
      %v2440 = vunpack.c.l.b16 %v736
      %v2441 = vunpack.c.l.b16 %v737
      %v2442 = vunpack.c.l.b16 %v738
      %v2443 = vunpack.c.l.b16 %v739
      %v2444 = vunpack.c.l.b16 %v740
      %v2445 = vunpack.c.l.b16 %v741
      %v2446 = vunpack.c.l.b16 %v742
      %v2447 = vunpack.c.l.b16 %v743
      %v2448 = vunpack.c.l.b16 %v744
      %v2449 = vunpack.c.l.b16 %v745
      %v2450 = vunpack.c.l.b16 %v746
      %v2451 = vunpack.c.l.b16 %v747
      %v2452 = vunpack.c.l.b16 %v748
      %v2453 = vunpack.c.l.b16 %v749
      %v2454 = vunpack.c.l.b16 %v750
      %v2455 = vunpack.c.l.b16 %v751
      %v2456 = vunpack.c.l.b16 %v752
      %v2457 = vunpack.c.l.b16 %v753
      %v2458 = vunpack.c.l.b16 %v754
      %v2459 = vunpack.c.l.b16 %v755
      %v2460 = vunpack.c.l.b16 %v756
      %v2461 = vunpack.c.l.b16 %v757
      %v2462 = vunpack.c.l.b16 %v758
      %v2463 = vunpack.c.l.b16 %v759
      %v2464 = vunpack.c.l.b16 %v760
      %v2465 = vunpack.c.l.b16 %v761
      %v2466 = vunpack.c.l.b16 %v762
      %v2467 = vunpack.c.l.b16 %v763
      %v2468 = vunpack.c.l.b16 %v764
      %v2469 = vunpack.c.l.b16 %v765
      %v2470 = vunpack.c.l.b16 %v766
      %v2471 = vunpack.c.l.b16 %v767
      %v2472 = vunpack.c.l.b16 %v768
      %v2473 = vunpack.c.l.b16 %v769
      %v2474 = vunpack.c.l.b16 %v770
      %v2475 = vunpack.c.l.b16 %v771
      %v2476 = vunpack.c.l.b16 %v772
      %v2477 = vunpack.c.l.b16 %v773
      %v2478 = vunpack.c.l.b16 %v774
      %v2479 = vunpack.c.l.b16 %v775
      %v2480 = vunpack.c.l.b16 %v776
      %v2481 = vunpack.c.l.b16 %v777
      %v2482 = vunpack.c.l.b16 %v778
      %v2483 = vunpack.c.l.b16 %v779
      %v2484 = vunpack.c.l.b16 %v780
      %v2485 = vunpack.c.l.b16 %v781
      %v2486 = vunpack.c.l.b16 %v782
      %v2487 = vunpack.c.l.b16 %v783
      %v2488 = vunpack.c.l.b16 %v784
      %v2489 = vunpack.c.l.b16 %v785
      %v2490 = vunpack.c.l.b16 %v786
      %v2491 = vunpack.c.l.b16 %v787
      %v2492 = vunpack.c.l.b16 %v788
      %v2493 = vunpack.c.l.b16 %v789
      %v2494 = vunpack.c.l.b16 %v790
      %v2495 = vunpack.c.l.b16 %v791
      %v2496 = vunpack.c.l.b16 %v792
      %v2497 = vunpack.c.l.b16 %v793
      %v2498 = vunpack.c.l.b16 %v794
      %v2499 = vunpack.c.l.b16 %v795
      %v2500 = vunpack.c.l.b16 %v796
      %v2501 = vunpack.c.l.b16 %v797
      %v2502 = vunpack.c.l.b16 %v798
      %v2503 = vunpack.c.l.b16 %v799
      %v2504 = vpack.c.b16 %v2441, %v2440
      %v2505 = vpack.c.b16 %v2443, %v2442
      %v2506 = vpack.c.b16 %v2445, %v2444
      %v2507 = vpack.c.b16 %v2447, %v2446
      %v2508 = vpack.c.b16 %v2449, %v2448
      %v2509 = vpack.c.b16 %v2451, %v2450
      %v2510 = vpack.c.b16 %v2453, %v2452
      %v2511 = vpack.c.b16 %v2455, %v2454
      %v2512 = vpack.c.b16 %v2457, %v2456
      %v2513 = vpack.c.b16 %v2459, %v2458
      %v2514 = vpack.c.b16 %v2461, %v2460
      %v2515 = vpack.c.b16 %v2463, %v2462
      %v2516 = vpack.c.b16 %v2465, %v2464
      %v2517 = vpack.c.b16 %v2467, %v2466
      %v2518 = vpack.c.b16 %v2469, %v2468
      %v2519 = vpack.c.b16 %v2471, %v2470
      %v2520 = vpack.c.b16 %v2473, %v2472
      %v2521 = vpack.c.b16 %v2475, %v2474
      %v2522 = vpack.c.b16 %v2477, %v2476
      %v2523 = vpack.c.b16 %v2479, %v2478
      %v2524 = vpack.c.b16 %v2481, %v2480
      %v2525 = vpack.c.b16 %v2483, %v2482
      %v2526 = vpack.c.b16 %v2485, %v2484
      %v2527 = vpack.c.b16 %v2487, %v2486
      %v2528 = vpack.c.b16 %v2489, %v2488
      %v2529 = vpack.c.b16 %v2491, %v2490
      %v2530 = vpack.c.b16 %v2493, %v2492
      %v2531 = vpack.c.b16 %v2495, %v2494
      %v2532 = vpack.c.b16 %v2497, %v2496
      %v2533 = vpack.c.b16 %v2499, %v2498
      %v2534 = vpack.c.b16 %v2501, %v2500
      %v2535 = vpack.c.b16 %v2503, %v2502
      %2568 = vmatprep.subr.bf16.mxu0 0
      %2569 = vmatpush1.bf16.msra.mxu0 %v2504
      %2570 = vmatprep.subr.bf16.mxu0 0
      %2571 = vmatpush1.bf16.msra.mxu0 %v2505
      %2572 = vmatprep.subr.bf16.mxu0 0
      %2573 = vmatpush1.bf16.msra.mxu0 %v2506
      %2574 = vmatprep.subr.bf16.mxu0 0
      %2575 = vmatpush1.bf16.msra.mxu0 %v2507
      %2576 = vmatprep.subr.bf16.mxu0 0
      %2577 = vmatpush1.bf16.msra.mxu0 %v2508
      %2578 = vmatprep.subr.bf16.mxu0 0
      %2579 = vmatpush1.bf16.msra.mxu0 %v2509
      %2580 = vmatprep.subr.bf16.mxu0 0
      %2581 = vmatpush1.bf16.msra.mxu0 %v2510
      %2582 = vmatprep.subr.bf16.mxu0 0
      %2583 = vmatpush1.bf16.msra.mxu0 %v2511
      %2584 = vmatprep.subr.bf16.mxu0 0
      %2585 = vmatpush1.bf16.msra.mxu0 %v2512
      %2586 = vmatprep.subr.bf16.mxu0 0
      %2587 = vmatpush1.bf16.msra.mxu0 %v2513
      %2588 = vmatprep.subr.bf16.mxu0 0
      %2589 = vmatpush1.bf16.msra.mxu0 %v2514
      %2590 = vmatprep.subr.bf16.mxu0 0
      %2591 = vmatpush1.bf16.msra.mxu0 %v2515
      %2592 = vmatprep.subr.bf16.mxu0 0
      %2593 = vmatpush1.bf16.msra.mxu0 %v2516
      %2594 = vmatprep.subr.bf16.mxu0 0
      %2595 = vmatpush1.bf16.msra.mxu0 %v2517
      %2596 = vmatprep.subr.bf16.mxu0 0
      %2597 = vmatpush1.bf16.msra.mxu0 %v2518
      %2598 = vmatprep.subr.bf16.mxu0 0
      %2599 = vmatpush1.bf16.msra.mxu0 %v2519
      %2600 = vmatprep.mubr.bf16.mxu0 %v2369
      %2601 = vmatmul.mubr.bf16.gmra.mrb[0].mxu0 %v2368
      %v2602 = vpop.f32.mrb[0].mxu0
      %v2603 = vadd.f32 %v809, %v2602
      %v2604 = vpop.f32.mrb[0].mxu0
      %v2605 = vpop.f32.mrb[0].mxu0
      %v2606 = vadd.f32 %v809, %v2605
      %v2607 = vpop.f32.mrb[0].mxu0
      %2608 = vmatprep.mubr.bf16.mxu0 %v2373
      %2609 = vmatmul.mubr.bf16.gmra.mrb[0].mxu0 %v2372
      %v2610 = vpop.f32.mrb[0].mxu0
      %v2611 = vadd.f32 %v809, %v2610
      %v2612 = vpop.f32.mrb[0].mxu0
      %v2613 = vpop.f32.mrb[0].mxu0
      %v2614 = vpop.f32.mrb[0].mxu0
      %2615 = vdwg.mxu0
      %2616 = vmatprep.subr.bf16.mxu0 0
      %2617 = vmatpush1.bf16.msra.mxu0 %v2520
      %2618 = vmatprep.subr.bf16.mxu0 0
      %2619 = vmatpush1.bf16.msra.mxu0 %v2521
      %2620 = vmatprep.subr.bf16.mxu0 0
      %2621 = vmatpush1.bf16.msra.mxu0 %v2522
      %2622 = vmatprep.subr.bf16.mxu0 0
      %2623 = vmatpush1.bf16.msra.mxu0 %v2523
      %2624 = vmatprep.subr.bf16.mxu0 0
      %2625 = vmatpush1.bf16.msra.mxu0 %v2524
      %2626 = vmatprep.subr.bf16.mxu0 0
      %2627 = vmatpush1.bf16.msra.mxu0 %v2525
      %2628 = vmatprep.subr.bf16.mxu0 0
      %2629 = vmatpush1.bf16.msra.mxu0 %v2526
      %2630 = vmatprep.subr.bf16.mxu0 0
      %2631 = vmatpush1.bf16.msra.mxu0 %v2527
      %2632 = vmatprep.subr.bf16.mxu0 0
      %2633 = vmatpush1.bf16.msra.mxu0 %v2528
      %2634 = vmatprep.subr.bf16.mxu0 0
      %2635 = vmatpush1.bf16.msra.mxu0 %v2529
      %2636 = vmatprep.subr.bf16.mxu0 0
      %2637 = vmatpush1.bf16.msra.mxu0 %v2530
      %2638 = vmatprep.subr.bf16.mxu0 0
      %2639 = vmatpush1.bf16.msra.mxu0 %v2531
      %2640 = vmatprep.subr.bf16.mxu0 0
      %2641 = vmatpush1.bf16.msra.mxu0 %v2532
      %2642 = vmatprep.subr.bf16.mxu0 0
      %2643 = vmatpush1.bf16.msra.mxu0 %v2533
      %2644 = vmatprep.subr.bf16.mxu0 0
      %2645 = vmatpush1.bf16.msra.mxu0 %v2534
      %2646 = vmatprep.subr.bf16.mxu0 0
      %2647 = vmatpush1.bf16.msra.mxu0 %v2535
      %2648 = vmatprep.mubr.bf16.mxu0 %v2371
      %2649 = vmatmul.mubr.bf16.gmra.mrb[0].mxu0 %v2370
      %v2650 = vpop.f32.mrb[0].mxu0
      %v2651 = vadd.f32 %v2603, %v2650
      %v2652 = vpop.f32.mrb[0].mxu0
      %v2653 = vpop.f32.mrb[0].mxu0
      %v2654 = vadd.f32 %v2606, %v2653
      %v2655 = vpop.f32.mrb[0].mxu0
      %2656 = vmatprep.mubr.bf16.mxu0 %v2375
      %2657 = vmatmul.mubr.bf16.gmra.mrb[0].mxu0 %v2374
      %v2658 = vpop.f32.mrb[0].mxu0
      %v2659 = vadd.f32 %v2611, %v2658
      %v2660 = vpop.f32.mrb[0].mxu0
      %v2661 = vpop.f32.mrb[0].mxu0
      %v2662 = vpop.f32.mrb[0].mxu0
      %2663 = vdwg.mxu0
      %v2664 = vadd.f32 %v1933, %v2651
      %v2665 = vadd.f32 %v1934, %v2654
      %v2666 = vadd.f32 %v1935, %v2659
      %2667 = vst [vmem:[#allocation2] sm:$0xff] %v2664
      %2668 = vst [vmem:[#allocation2 + $0x8] sm:$0xff] %v2665
      %2669 = vst [vmem:[#allocation2 + $0x10] sm:$0xff] %v2666
      %p2670 = scmp.eq.s32.totalorder %s28, 1
      // Predicated region
      $region73: #{vit_editor_forward.1} parent=67 // pred_check
        %p2671 = pneg %p2670
      $region74: #{vit_editor_forward.1} parent=67 // pred_check_branch
        %2673 = sbr.rel (%p2671) target = $region76
      $region75: #{vit_editor_forward.1} parent=67 // pred_region
        %v2674 = vld [vmem:[%s8] sm:$0x1]
        %v2675 = vld [vmem:[%s9] sm:$0x1]
        %2676 = vadd.xlane.f32.xlu0 %v2664
        %v2677 = vpop.xlane.xlu0 %2676
        %2678 = vadd.xlane.f32.xlu0 %v2665
        %v2679 = vpop.xlane.xlu0 %2678
        %v2680 = vmul.f32 %v2677, %v819
        %v2681 = vmul.f32 %v2679, %v819
        %v2682 = vsub.f32 %v2664, %v2680
        %v2683 = vsub.f32 %v2665, %v2681
        %v2684 = vmul.f32 %v2682, %v2682
        %v2685 = vmul.f32 %v2683, %v2683
        %2686 = vadd.xlane.f32.xlu0 %v2684
        %v2687 = vpop.xlane.xlu0 %2686
        %2688 = vadd.xlane.f32.xlu0 %v2685
        %v2689 = vpop.xlane.xlu0 %2688
        %v2690 = vmul.f32 %v2687, %v819
        %v2691 = vmul.f32 %v2689, %v819
        %v2692 = vadd.f32 %v2690, 1e-06
        %v2693 = vadd.f32 %v2691, 1e-06
        %v2694 = vrsqrt.pop %v2692
        %v2695 = vrsqrt.pop %v2693
        %v2696 = vmul.f32 %v2682, %v2694
        %v2697 = vmul.f32 %v2683, %v2695
        %v2699 = vlaneseq
        %v2700 = vshrl.u32 %v2699, 7
        %v2701 = vsub.s32 0, %v2700
        %v2702 = vrot.slane %v2674, %v2701
        %v2704 = vmul.f32 %v2696, %v2702
        %v2705 = vmul.f32 %v2697, %v2702
        %v2707 = vlaneseq
        %v2708 = vshrl.u32 %v2707, 7
        %v2709 = vsub.s32 0, %v2708
        %v2710 = vrot.slane %v2675, %v2709
        %v2712 = vadd.f32 %v2704, %v2710
        %v2713 = vadd.f32 %v2705, %v2710
        %v2714 = vpack.c.bf16 %v2713, %v2712
        %v2715 = vld [vmem:[%s10] sm:$0xff]
        %v2716 = vld [vmem:[%s10 + $0x8] sm:$0xff]
        %v2717 = vld [vmem:[%s10 + $0x10] sm:$0xff]
        %v2718 = vld [vmem:[%s10 + $0x18] sm:$0xff]
        %v2719 = vld [vmem:[%s10 + $0x20] sm:$0xff]
        %v2720 = vld [vmem:[%s10 + $0x28] sm:$0xff]
        %v2721 = vld [vmem:[%s10 + $0x30] sm:$0xff]
        %v2722 = vld [vmem:[%s10 + $0x38] sm:$0xff]
        %v2723 = vld [vmem:[%s10 + $0x40] sm:$0xff]
        %v2724 = vld [vmem:[%s10 + $0x48] sm:$0xff]
        %v2725 = vld [vmem:[%s10 + $0x50] sm:$0xff]
        %v2726 = vld [vmem:[%s10 + $0x58] sm:$0xff]
        %v2727 = vld [vmem:[%s10 + $0x60] sm:$0xff]
        %v2728 = vld [vmem:[%s10 + $0x68] sm:$0xff]
        %v2729 = vld [vmem:[%s10 + $0x70] sm:$0xff]
        %v2730 = vld [vmem:[%s10 + $0x78] sm:$0xff]
        %v2731 = vld [vmem:[%s11] sm:$0x3]
        %v2733 = vlaneseq
        %v2734 = vshrl.u32 %v2733, 7
        %v2735 = vsub.s32 0, %v2734
        %v2736 = vrot.slane %v2731, %v2735
        %v2737 = vlaneseq
        %v2738 = vshrl.u32 %v2737, 7
        %v2739 = vsub.s32 1, %v2738
        %v2740 = vrot.slane %v2731, %v2739
        %v2759 = vunpack.c.l.b16 %v2715
        %v2760 = vunpack.c.h.b16 %v2715
        %v2761 = vunpack.c.l.b16 %v2716
        %v2762 = vunpack.c.h.b16 %v2716
        %v2763 = vunpack.c.l.b16 %v2717
        %v2764 = vunpack.c.h.b16 %v2717
        %v2765 = vunpack.c.l.b16 %v2718
        %v2766 = vunpack.c.h.b16 %v2718
        %v2767 = vunpack.c.l.b16 %v2719
        %v2768 = vunpack.c.h.b16 %v2719
        %v2769 = vunpack.c.l.b16 %v2720
        %v2770 = vunpack.c.h.b16 %v2720
        %v2771 = vunpack.c.l.b16 %v2721
        %v2772 = vunpack.c.h.b16 %v2721
        %v2773 = vunpack.c.l.b16 %v2722
        %v2774 = vunpack.c.h.b16 %v2722
        %v2775 = vunpack.c.l.b16 %v2723
        %v2776 = vunpack.c.h.b16 %v2723
        %v2777 = vunpack.c.l.b16 %v2724
        %v2778 = vunpack.c.h.b16 %v2724
        %v2779 = vunpack.c.l.b16 %v2725
        %v2780 = vunpack.c.h.b16 %v2725
        %v2781 = vunpack.c.l.b16 %v2726
        %v2782 = vunpack.c.h.b16 %v2726
        %v2783 = vunpack.c.l.b16 %v2727
        %v2784 = vunpack.c.h.b16 %v2727
        %v2785 = vunpack.c.l.b16 %v2728
        %v2786 = vunpack.c.h.b16 %v2728
        %v2787 = vunpack.c.l.b16 %v2729
        %v2788 = vunpack.c.h.b16 %v2729
        %v2789 = vunpack.c.l.b16 %v2730
        %v2790 = vunpack.c.h.b16 %v2730
        %v2791 = vpack.c.b16 %v2761, %v2759
        %v2792 = vpack.c.b16 %v2762, %v2760
        %v2793 = vpack.c.b16 %v2765, %v2763
        %v2794 = vpack.c.b16 %v2766, %v2764
        %v2795 = vpack.c.b16 %v2769, %v2767
        %v2796 = vpack.c.b16 %v2770, %v2768
        %v2797 = vpack.c.b16 %v2773, %v2771
        %v2798 = vpack.c.b16 %v2774, %v2772
        %v2799 = vpack.c.b16 %v2777, %v2775
        %v2800 = vpack.c.b16 %v2778, %v2776
        %v2801 = vpack.c.b16 %v2781, %v2779
        %v2802 = vpack.c.b16 %v2782, %v2780
        %v2803 = vpack.c.b16 %v2785, %v2783
        %v2804 = vpack.c.b16 %v2786, %v2784
        %v2805 = vpack.c.b16 %v2789, %v2787
        %v2806 = vpack.c.b16 %v2790, %v2788
        %2823 = vmatprep.subr.bf16.mxu0 %v2792
        %2824 = vmatpush1.bf16.msra.mxu0 %v2791
        %2825 = vmatprep.subr.bf16.mxu0 %v2794
        %2826 = vmatpush1.bf16.msra.mxu0 %v2793
        %2827 = vmatprep.subr.bf16.mxu0 %v2796
        %2828 = vmatpush1.bf16.msra.mxu0 %v2795
        %2829 = vmatprep.subr.bf16.mxu0 %v2798
        %2830 = vmatpush1.bf16.msra.mxu0 %v2797
        %2831 = vmatprep.subr.bf16.mxu0 %v2800
        %2832 = vmatpush1.bf16.msra.mxu0 %v2799
        %2833 = vmatprep.subr.bf16.mxu0 %v2802
        %2834 = vmatpush1.bf16.msra.mxu0 %v2801
        %2835 = vmatprep.subr.bf16.mxu0 %v2804
        %2836 = vmatpush1.bf16.msra.mxu0 %v2803
        %2837 = vmatprep.subr.bf16.mxu0 %v2806
        %2838 = vmatpush1.bf16.msra.mxu0 %v2805
        %2839 = vmatprep.subr.bf16.mxu0 0
        %2840 = vmatpush1.bf16.msra.mxu0 0
        %2841 = vmatprep.subr.bf16.mxu0 0
        %2842 = vmatpush1.bf16.msra.mxu0 0
        %2843 = vmatprep.subr.bf16.mxu0 0
        %2844 = vmatpush1.bf16.msra.mxu0 0
        %2845 = vmatprep.subr.bf16.mxu0 0
        %2846 = vmatpush1.bf16.msra.mxu0 0
        %2847 = vmatprep.subr.bf16.mxu0 0
        %2848 = vmatpush1.bf16.msra.mxu0 0
        %2849 = vmatprep.subr.bf16.mxu0 0
        %2850 = vmatpush1.bf16.msra.mxu0 0
        %2851 = vmatprep.subr.bf16.mxu0 0
        %2852 = vmatpush1.bf16.msra.mxu0 0
        %2853 = vmatprep.subr.bf16.mxu0 0
        %2854 = vmatpush1.bf16.msra.mxu0 0
        %2855 = vmatprep.mubr.bf16.mxu0 0
        %2856 = vmatmul.mubr.bf16.gmra.mrb[0].mxu0 %v2714
        %v2857 = vpop.f32.mrb[0].mxu0
        %v2858 = vadd.f32 %v2736, %v2857
        %v2859 = vpop.f32.mrb[0].mxu0
        %v2860 = vadd.f32 %v2740, %v2859
        %v2861 = vpop.f32.mrb[0].mxu0
        %v2862 = vadd.f32 %v2736, %v2861
        %v2863 = vpop.f32.mrb[0].mxu0
        %v2864 = vadd.f32 %v2740, %v2863
        %2865 = vdwg.mxu0
        %2866 = vst [vmem:[%s487] sm:$0xff] %v2858
        %2867 = vst.msk [vmem:[%s487 + $0x8] sm:$0xff] %vm1827, %v2860
        %2868 = vst [vmem:[%s487 + $0x10] sm:$0xff] %v2862
        %2869 = vst.msk [vmem:[%s487 + $0x18] sm:$0xff] %vm1827, %v2864
      $region76: #{vit_editor_forward.1} parent=67 // pred_fallthru
        _
      %s2870 = smul.u32 2, %s27
      %p2871 = scmp.lt.s32.totalorder %s2870, 3
      %s2872 = scalar_select %p2871, %s2870, 3
      %s2873 = smul.addr %s2872, 2
      %s2874 = smul.addr %s2873, 8
      %s2875 = scalar_lea.vmem %s12, %s2874
      // Predicated region
      $region77: #{vit_editor_forward.1} parent=67 // pred_check
        %p2876 = pneg %p325
      $region78: #{vit_editor_forward.1} parent=67 // pred_check_branch
        %2878 = sbr.rel (%p2876) target = $region80
      $region79: #{vit_editor_forward.1} parent=67 // pred_region
        %s2879 = smul.u32 2, %s27
      $region80: #{vit_editor_forward.1} parent=67 // pred_fallthru
        _
    $region68: #{vit_editor_forward.1} parent=5 // pred_fallthru
      _
    %p2880 = scmp.le.s32.totalorder 2, %s18
    // Predicated region
    $region81: #{vit_editor_forward.1} parent=5 // pred_check
      %p2881 = pneg %p2880
    $region82: #{vit_editor_forward.1} parent=5 // pred_check_branch
      %2883 = sbr.rel (%p2881) target = $region84
    $region83: #{vit_editor_forward.1} parent=5 // pred_region
      %s2884 = ssub.s32 %s18, 2
      // Predicated region
      $region85: #{vit_editor_forward.1} parent=83 // pred_check
        %p2885 = pneg %p331
      $region86: #{vit_editor_forward.1} parent=83 // pred_check_branch
        %2887 = sbr.rel (%p2885) target = $region88
      $region87: #{vit_editor_forward.1} parent=83 // pred_region
        %s2888 = smul.u32 2, %s29
        %p2889 = scmp.lt.s32.totalorder %s2888, 3
        %s2890 = scalar_select %p2889, %s2888, 3
        %s2891 = smul.addr %s2890, 2
        %s2892 = smul.addr %s2891, 8
        %s2893 = scalar_lea.vmem %s12, %s2892
      $region88: #{vit_editor_forward.1} parent=83 // pred_fallthru
        _
    $region84: #{vit_editor_forward.1} parent=5 // pred_fallthru
      _
  $region6: #{vit_editor_forward.1} parent=0 // loop_footer
    %s22 = sadd.s32 1, %s18
  $region7: #{vit_editor_forward.1} parent=0 // loop_footer_branch
    %17 = sbr.rel target = $region3
  $region8: #{vit_editor_forward.1} parent=0 // loop_exit
    _

</llo_original>
